<compile_context>
chip_gen: v6e
topology: v6e:2x2x1
jax: 0.10.0
libtpu: 0.0.40
codegen_flags: <defaults>
</compile_context>

<pallas_src>
import jax
import jax.numpy as jnp
from jax.experimental import pallas as pl
from jax.experimental.pallas import tpu as pltpu


def _round_up(x, m):
    return (x + m - 1) // m * m


def _cdiv(a, b):
    return (a + b - 1) // b


def _tile_rows(m, align, max_tile=1024):
    """Pick a row-tile and padded row count.

    Ensures: tile is a multiple of `align`, capped at `max_tile`, and the grid
    has >= 2 steps so the "parallel" axis can shard across v7x's two TCs.
    """
    tm = min(max_tile, _round_up(max(_cdiv(m, 2), 1), align))
    steps = max(2, _cdiv(m, tm))
    return tm, steps * tm


# ----------------------------------------------------------------------------
# Pallas kernels
# ----------------------------------------------------------------------------
def _conv_relu_pool_kernel(p_ref, w_ref, b_ref, o_ref):
    """Fused conv(as ONE matmul) + 2x2 max-pool + bias + ReLU.

    p_ref : (4, tm, Kp)  bf16 -- im2col patches, axis 0 = pool-window corner
    w_ref : (Kp, 128)    bf16 -- (kh, kw, cin)-major conv weights, N padded to 128
    b_ref : (1, 128)     f32
    o_ref : (tm, 128)    bf16 -- pooled NHWC rows (b, ph, pw), channels on lanes
    """
    tm, kp = p_ref.shape[1], p_ref.shape[2]
    # Single MXU push/drain: (4*tm, Kp) @ (Kp, 128) -> f32 accumulator.
    acc = jnp.dot(p_ref[...].reshape(4 * tm, kp), w_ref[...],
                  preferred_element_type=jnp.float32)
    # 2x2 max-pool = elementwise max over the 4 corner blocks.
    pooled = jnp.max(acc.reshape(4, tm, 128), axis=0)
    # relu(max(acc) + b) == max(relu(acc + b)): bias shared across corners, ReLU monotone.
    o_ref[...] = jnp.maximum(pooled + b_ref[...], 0.0).astype(o_ref.dtype)


def _fc_fused_kernel(x_ref, w1_ref, b1_ref, w2_ref, b2_ref, w3_ref, b3_ref, o_ref):
    """fc1+ReLU -> fc2+ReLU -> fc3 in one launch; all weights VMEM-resident."""
    h = jnp.dot(x_ref[...], w1_ref[...], preferred_element_type=jnp.float32)
    h = jnp.maximum(h + b1_ref[...], 0.0)
    h = jnp.dot(h.astype(jnp.bfloat16), w2_ref[...], preferred_element_type=jnp.float32)
    h = jnp.maximum(h + b2_ref[...], 0.0)
    h = jnp.dot(h.astype(jnp.bfloat16), w3_ref[...], preferred_element_type=jnp.float32)
    o_ref[...] = (h + b3_ref[...]).astype(o_ref.dtype)


_COMPILER_PARAMS = pltpu.CompilerParams(
    dimension_semantics=("parallel",),     # shard M-grid across TCs on v7x
    vmem_limit_bytes=32 * 1024 * 1024,     # v7x-safe ceiling; also lifts v5e default
)


# ----------------------------------------------------------------------------
# Wrappers (layout/padding glue in plain JAX, compute in Pallas)
# ----------------------------------------------------------------------------
def _pooled_patches(x_nhwc, K):
    """im2col with rows grouped by 2x2 pool corner (bf16 in, bf16 out).

    x_nhwc: (B, H, W, C) -> (4, B*POH*POW, K*K*C); group g=(dh,dw) holds the patch
    for conv output position (2*ph+dh, 2*pw+dw), so pooling = max over the 4 groups.
    """
    B, H, W, C = x_nhwc.shape
    OH, OW = H - K + 1, W - K + 1
    POH, POW = OH // 2, OW // 2
    groups = []
    for dh in (0, 1):
        for dw in (0, 1):
            cols = []
            for kh in range(K):
                for kw in range(K):
                    hs, ws = dh + kh, dw + kw
                    cols.append(x_nhwc[:, hs:hs + 2 * POH - 1:2,
                                       ws:ws + 2 * POW - 1:2, :])  # (B,POH,POW,C)
            g = jnp.concatenate(cols, axis=-1)                     # (B,POH,POW,K*K*C)
            groups.append(g.reshape(B * POH * POW, K * K * C))
    return jnp.stack(groups, axis=0)


def conv_relu_pool(x_nhwc, wmat, bias, K=5):
    """x_nhwc: (B,H,W,C) bf16 -> pooled NHWC activation (B, OH//2, OW//2, 128) bf16."""
    B, H, W, C = x_nhwc.shape
    OH, OW = H - K + 1, W - K + 1
    POH, POW = OH // 2, OW // 2
    Mp = B * POH * POW
    KKC = K * K * C
    Kp = wmat.shape[0]                        # already padded to a multiple of 128

    p = _pooled_patches(x_nhwc, K)            # (4, Mp, KKC) bf16 (no f32 intermediates)
    tm, Mpad = _tile_rows(Mp, align=16)       # 16-row align: clean bf16 sublane packing
    p = jnp.pad(p, ((0, 0), (0, Mpad - Mp), (0, Kp - KKC)))

    out = pl.pallas_call(
        _conv_relu_pool_kernel,
        out_shape=jax.ShapeDtypeStruct((Mpad, 128), jnp.bfloat16),
        grid_spec=pltpu.PrefetchScalarGridSpec(
            num_scalar_prefetch=0,
            grid=(Mpad // tm,),
            in_specs=[
                pl.BlockSpec((4, tm, Kp), lambda i: (0, i, 0)),
                pl.BlockSpec((Kp, 128), lambda i: (0, 0)),
                pl.BlockSpec((1, 128), lambda i: (0, 0)),
            ],
            out_specs=pl.BlockSpec((tm, 128), lambda i: (i, 0)),
        ),
        compiler_params=_COMPILER_PARAMS,
    )(p, wmat, bias)
    return out[:Mp].reshape(B, POH, POW, 128)


def fc_fused(x, w1, b1, w2, b2, w3, b3, n_out=10):
    """x: (B, 2048) bf16 -> logits (B, n_out) f32, single fused pallas_call."""
    B, K1 = x.shape
    tm, Bp = _tile_rows(B, align=16)
    xp = jnp.pad(x, ((0, Bp - B), (0, 0)))

    out = pl.pallas_call(
        _fc_fused_kernel,
        out_shape=jax.ShapeDtypeStruct((Bp, 128), jnp.float32),
        grid_spec=pltpu.PrefetchScalarGridSpec(
            num_scalar_prefetch=0,
            grid=(Bp // tm,),
            in_specs=[
                pl.BlockSpec((tm, K1), lambda i: (i, 0)),
                pl.BlockSpec(w1.shape, lambda i: (0, 0)),
                pl.BlockSpec((1, 128), lambda i: (0, 0)),
                pl.BlockSpec(w2.shape, lambda i: (0, 0)),
                pl.BlockSpec((1, 128), lambda i: (0, 0)),
                pl.BlockSpec(w3.shape, lambda i: (0, 0)),
                pl.BlockSpec((1, 128), lambda i: (0, 0)),
            ],
            out_specs=pl.BlockSpec((tm, 128), lambda i: (i, 0)),
        ),
        compiler_params=_COMPILER_PARAMS,
    )(xp, w1, b1, w2, b2, w3, b3)
    return out[:B, :n_out]


# ----------------------------------------------------------------------------
# Parameters: PyTorch layout -> one-time kernel layout conversion
# ----------------------------------------------------------------------------
def init_params(key):
    """Parameters in the PyTorch nn.Module layout."""
    ks = jax.random.split(key, 10)
    s = 0.1
    return {
        "conv1_w": s * jax.random.normal(ks[0], (6, 1, 5, 5), jnp.float32),
        "conv1_b": s * jax.random.normal(ks[1], (6,), jnp.float32),
        "conv2_w": s * jax.random.normal(ks[2], (16, 6, 5, 5), jnp.float32),
        "conv2_b": s * jax.random.normal(ks[3], (16,), jnp.float32),
        "fc1_w": s * jax.random.normal(ks[4], (120, 16 * 4 * 4), jnp.float32),
        "fc1_b": s * jax.random.normal(ks[5], (120,), jnp.float32),
        "fc2_w": s * jax.random.normal(ks[6], (84, 120), jnp.float32),
        "fc2_b": s * jax.random.normal(ks[7], (84,), jnp.float32),
        "fc3_w": s * jax.random.normal(ks[8], (10, 84), jnp.float32),
        "fc3_b": s * jax.random.normal(ks[9], (10,), jnp.float32),
    }


def prepare_params(p):
    """One-time conversion: bf16 (K, N) matrices padded to 128-wide lanes, f32 biases."""
    def conv_wb(w, b):
        oc, c, kh, kw = w.shape
        kkc = kh * kw * c
        kp = _round_up(kkc, 128)
        m = jnp.transpose(w, (2, 3, 1, 0)).reshape(kkc, oc)   # rows = (kh, kw, cin)
        m = jnp.pad(m, ((0, kp - kkc), (0, 128 - oc)))
        bp = jnp.pad(b, (0, 128 - oc)).reshape(1, 128)
        return m.astype(jnp.bfloat16), bp.astype(jnp.float32)

    def fc_wb(w, b):
        n, k = w.shape
        m = jnp.pad(w.T, ((0, _round_up(k, 128) - k), (0, 128 - n)))
        bp = jnp.pad(b, (0, 128 - n)).reshape(1, 128)
        return m.astype(jnp.bfloat16), bp.astype(jnp.float32)

    # fc1 consumes the lane-padded NHWC-flattened conv2 activation (B, 4*4*128):
    #   * permute PyTorch's (c, h, w) feature order to (h, w, c),
    #   * pad the channel axis 16 -> 128 with ZERO rows so the 128-lane conv2 output
    #     feeds the FC kernel via a contiguous reshape (feature idx = (h*4+w)*128+c) —
    #     no lane sub-slice / relayout between kernels.
    w1 = p["fc1_w"].reshape(120, 16, 4, 4)
    w1 = jnp.transpose(w1, (2, 3, 1, 0))                             # (h, w, c, n)
    w1 = jnp.pad(w1, ((0, 0), (0, 0), (0, 128 - 16), (0, 128 - 120)))
    f1w = w1.reshape(4 * 4 * 128, 128).astype(jnp.bfloat16)
    f1b = jnp.pad(p["fc1_b"], (0, 128 - 120)).reshape(1, 128).astype(jnp.float32)

    c1w, c1b = conv_wb(p["conv1_w"], p["conv1_b"])
    c2w, c2b = conv_wb(p["conv2_w"], p["conv2_b"])
    f2w, f2b = fc_wb(p["fc2_w"], p["fc2_b"])
    f3w, f3b = fc_wb(p["fc3_w"], p["fc3_b"])
    return {
        "conv1_w": c1w, "conv1_b": c1b,
        "conv2_w": c2w, "conv2_b": c2b,
        "fc1_w": f1w, "fc1_b": f1b,
        "fc2_w": f2w, "fc2_b": f2b,
        "fc3_w": f3w, "fc3_b": f3b,
    }


# ----------------------------------------------------------------------------
# LeNet forward
# ----------------------------------------------------------------------------
@jax.jit
def lenet_forward(kparams, x_nchw):
    # x: (B, 1, 28, 28) NCHW like the PyTorch module; convert to NHWC + bf16 once here.
    x = jnp.transpose(x_nchw, (0, 2, 3, 1)).astype(jnp.bfloat16)
    B = x.shape[0]

    a1 = conv_relu_pool(x, kparams["conv1_w"], kparams["conv1_b"])            # (B,12,12,128) bf16
    # Keep the :6 channel slice here: conv2 patches on 6 real channels are far
    # smaller than padding conv2's K to 25*128 would make them.
    a2 = conv_relu_pool(a1[..., :6], kparams["conv2_w"], kparams["conv2_b"])  # (B,4,4,128) bf16

    # Lane-dense contiguous flatten of the full 128-lane activation (padded lanes
    # are exact zeros and hit zero fc1 weight rows) — no relayout slice needed.
    flat = a2.reshape(B, 4 * 4 * 128)
    return fc_fused(flat, kparams["fc1_w"], kparams["fc1_b"],
                    kparams["fc2_w"], kparams["fc2_b"],
                    kparams["fc3_w"], kparams["fc3_b"])


if __name__ == "__main__":
    key = jax.random.PRNGKey(0)
    pkey, xkey = jax.random.split(key)
    torch_params = init_params(pkey)
    kparams = prepare_params(torch_params)   # one-time layout conversion (not in hot path)
    # LeNet's fc1 (16*4*4) pins the input spatial size to 28x28; use batch=2.
    x = jax.random.normal(xkey, (2, 1, 28, 28), jnp.float32)
    out = lenet_forward(kparams, x)
    jax.block_until_ready(out)
    assert out.shape == (2, 10) and out.dtype == jnp.float32
    print("KERNEL_OK")
</pallas_src>

<mosaic_0001>
module attributes {stable_mosaic.version = 11 : i64} {
  func.func @_conv_relu_pool_kernel(%arg0: i32, %arg1: memref<4x144x128xbf16, #tpu.memory_space<vmem>>, %arg2: memref<128x128xbf16, #tpu.memory_space<vmem>>, %arg3: memref<1x128xf32, #tpu.memory_space<vmem>>, %arg4: memref<144x128xbf16, #tpu.memory_space<vmem>>) attributes {dimension_semantics = [#tpu.dimension_semantics<parallel>], iteration_bounds = array<i64: 2>, scalar_prefetch = 0 : i64, scratch_operands = 0 : i64, tpu.core_type = #tpu.core_type<tc>, window_params = [{transform_indices = @transform_0, window_bounds = array<i64: 4, 144, 128>}, {pipeline_mode = #tpu.pipeline_mode<synchronous>, transform_indices = @transform_1, window_bounds = array<i64: 128, 128>}, {pipeline_mode = #tpu.pipeline_mode<synchronous>, transform_indices = @transform_2, window_bounds = array<i64: 1, 128>}, {transform_indices = @transform_3, window_bounds = array<i64: 144, 128>}]} {
    %c0 = arith.constant 0 : index
    %c0_0 = arith.constant 0 : index
    %c0_1 = arith.constant 0 : index
    %0 = vector.load %arg1[%c0, %c0_0, %c0_1] : memref<4x144x128xbf16, #tpu.memory_space<vmem>>, vector<4x144x128xbf16>
    %1 = vector.shape_cast %0 : vector<4x144x128xbf16> to vector<576x128xbf16>
    %c0_2 = arith.constant 0 : index
    %c0_3 = arith.constant 0 : index
    %2 = vector.load %arg2[%c0_2, %c0_3] : memref<128x128xbf16, #tpu.memory_space<vmem>>, vector<128x128xbf16>
    %cst = arith.constant dense<0.000000e+00> : vector<576x128xf32>
    %3 = tpu.matmul %1, %2, %cst {dimension_numbers = #tpu.dot_dimension_numbers<[1], [0], [0], [1], [0, 0, 1, 1], [], []>} : vector<576x128xbf16>, vector<128x128xbf16>, vector<576x128xf32> -> vector<576x128xf32>
    %4 = vector.shape_cast %3 : vector<576x128xf32> to vector<4x144x128xf32>
    %cst_4 = arith.constant dense<0xFF800000> : vector<144x128xf32>
    %5 = vector.multi_reduction <maximumf>, %4, %cst_4 [0] : vector<4x144x128xf32> to vector<144x128xf32>
    %c0_5 = arith.constant 0 : index
    %c0_6 = arith.constant 0 : index
    %6 = vector.load %arg3[%c0_5, %c0_6] : memref<1x128xf32, #tpu.memory_space<vmem>>, vector<1x128xf32>
    %7 = vector.broadcast %6 : vector<1x128xf32> to vector<144x128xf32>
    %8 = arith.addf %5, %7 : vector<144x128xf32>
    %cst_7 = arith.constant 0.000000e+00 : f32
    %9 = vector.broadcast %cst_7 : f32 to vector<144x128xf32>
    %10 = arith.maximumf %8, %9 : vector<144x128xf32>
    %11 = arith.truncf %10 : vector<144x128xf32> to vector<144x128xbf16>
    %c0_8 = arith.constant 0 : index
    %c0_9 = arith.constant 0 : index
    %12 = vector.load %arg4[%c0_8, %c0_9] : memref<144x128xbf16, #tpu.memory_space<vmem>>, vector<144x128xbf16>
    tpu.vector_store %arg4[%c0_8, %c0_9], %11 {strides = array<i32>} : memref<144x128xbf16, #tpu.memory_space<vmem>>, vector<144x128xbf16>,
    return
  }
  func.func @transform_0(%arg0: i32) -> (i32, i32, i32) {
    %c0_i32 = arith.constant 0 : i32
    %c0_i32_0 = arith.constant 0 : i32
    %c0_i32_1 = arith.constant 0 : i32
    return %c0_i32, %arg0, %c0_i32_0 : i32, i32, i32
  }
  func.func @transform_1(%arg0: i32) -> (i32, i32) {
    %c0_i32 = arith.constant 0 : i32
    %c0_i32_0 = arith.constant 0 : i32
    %c0_i32_1 = arith.constant 0 : i32
    return %c0_i32, %c0_i32_0 : i32, i32
  }
  func.func @transform_2(%arg0: i32) -> (i32, i32) {
    %c0_i32 = arith.constant 0 : i32
    %c0_i32_0 = arith.constant 0 : i32
    %c0_i32_1 = arith.constant 0 : i32
    return %c0_i32, %c0_i32_0 : i32, i32
  }
  func.func @transform_3(%arg0: i32) -> (i32, i32) {
    %c0_i32 = arith.constant 0 : i32
    %c0_i32_0 = arith.constant 0 : i32
    return %arg0, %c0_i32 : i32, i32
  }
}

module attributes {stable_mosaic.version = 11 : i64} {
  func.func @_conv_relu_pool_kernel(%arg0: i32, %arg1: memref<4x16x256xbf16, #tpu.memory_space<vmem>>, %arg2: memref<256x128xbf16, #tpu.memory_space<vmem>>, %arg3: memref<1x128xf32, #tpu.memory_space<vmem>>, %arg4: memref<16x128xbf16, #tpu.memory_space<vmem>>) attributes {dimension_semantics = [#tpu.dimension_semantics<parallel>], iteration_bounds = array<i64: 2>, scalar_prefetch = 0 : i64, scratch_operands = 0 : i64, tpu.core_type = #tpu.core_type<tc>, window_params = [{transform_indices = @transform_0, window_bounds = array<i64: 4, 16, 256>}, {pipeline_mode = #tpu.pipeline_mode<synchronous>, transform_indices = @transform_1, window_bounds = array<i64: 256, 128>}, {pipeline_mode = #tpu.pipeline_mode<synchronous>, transform_indices = @transform_2, window_bounds = array<i64: 1, 128>}, {transform_indices = @transform_3, window_bounds = array<i64: 16, 128>}]} {
    %c0 = arith.constant 0 : index
    %c0_0 = arith.constant 0 : index
    %c0_1 = arith.constant 0 : index
    %0 = vector.load %arg1[%c0, %c0_0, %c0_1] : memref<4x16x256xbf16, #tpu.memory_space<vmem>>, vector<4x16x256xbf16>
    %1 = vector.shape_cast %0 : vector<4x16x256xbf16> to vector<64x256xbf16>
    %c0_2 = arith.constant 0 : index
    %c0_3 = arith.constant 0 : index
    %2 = vector.load %arg2[%c0_2, %c0_3] : memref<256x128xbf16, #tpu.memory_space<vmem>>, vector<256x128xbf16>
    %cst = arith.constant dense<0.000000e+00> : vector<64x128xf32>
    %3 = tpu.matmul %1, %2, %cst {dimension_numbers = #tpu.dot_dimension_numbers<[1], [0], [0], [1], [0, 0, 1, 1], [], []>} : vector<64x256xbf16>, vector<256x128xbf16>, vector<64x128xf32> -> vector<64x128xf32>
    %4 = vector.shape_cast %3 : vector<64x128xf32> to vector<4x16x128xf32>
    %cst_4 = arith.constant dense<0xFF800000> : vector<16x128xf32>
    %5 = vector.multi_reduction <maximumf>, %4, %cst_4 [0] : vector<4x16x128xf32> to vector<16x128xf32>
    %c0_5 = arith.constant 0 : index
    %c0_6 = arith.constant 0 : index
    %6 = vector.load %arg3[%c0_5, %c0_6] : memref<1x128xf32, #tpu.memory_space<vmem>>, vector<1x128xf32>
    %7 = vector.broadcast %6 : vector<1x128xf32> to vector<16x128xf32>
    %8 = arith.addf %5, %7 : vector<16x128xf32>
    %cst_7 = arith.constant 0.000000e+00 : f32
    %9 = vector.broadcast %cst_7 : f32 to vector<16x128xf32>
    %10 = arith.maximumf %8, %9 : vector<16x128xf32>
    %11 = arith.truncf %10 : vector<16x128xf32> to vector<16x128xbf16>
    %c0_8 = arith.constant 0 : index
    %c0_9 = arith.constant 0 : index
    %12 = vector.load %arg4[%c0_8, %c0_9] : memref<16x128xbf16, #tpu.memory_space<vmem>>, vector<16x128xbf16>
    tpu.vector_store %arg4[%c0_8, %c0_9], %11 {strides = array<i32>} : memref<16x128xbf16, #tpu.memory_space<vmem>>, vector<16x128xbf16>,
    return
  }
  func.func @transform_0(%arg0: i32) -> (i32, i32, i32) {
    %c0_i32 = arith.constant 0 : i32
    %c0_i32_0 = arith.constant 0 : i32
    %c0_i32_1 = arith.constant 0 : i32
    return %c0_i32, %arg0, %c0_i32_0 : i32, i32, i32
  }
  func.func @transform_1(%arg0: i32) -> (i32, i32) {
    %c0_i32 = arith.constant 0 : i32
    %c0_i32_0 = arith.constant 0 : i32
    %c0_i32_1 = arith.constant 0 : i32
    return %c0_i32, %c0_i32_0 : i32, i32
  }
  func.func @transform_2(%arg0: i32) -> (i32, i32) {
    %c0_i32 = arith.constant 0 : i32
    %c0_i32_0 = arith.constant 0 : i32
    %c0_i32_1 = arith.constant 0 : i32
    return %c0_i32, %c0_i32_0 : i32, i32
  }
  func.func @transform_3(%arg0: i32) -> (i32, i32) {
    %c0_i32 = arith.constant 0 : i32
    %c0_i32_0 = arith.constant 0 : i32
    return %arg0, %c0_i32 : i32, i32
  }
}

module attributes {stable_mosaic.version = 11 : i64} {
  func.func @_fc_fused_kernel(%arg0: i32, %arg1: memref<16x2048xbf16, #tpu.memory_space<vmem>>, %arg2: memref<2048x128xbf16, #tpu.memory_space<vmem>>, %arg3: memref<1x128xf32, #tpu.memory_space<vmem>>, %arg4: memref<128x128xbf16, #tpu.memory_space<vmem>>, %arg5: memref<1x128xf32, #tpu.memory_space<vmem>>, %arg6: memref<128x128xbf16, #tpu.memory_space<vmem>>, %arg7: memref<1x128xf32, #tpu.memory_space<vmem>>, %arg8: memref<16x128xf32, #tpu.memory_space<vmem>>) attributes {dimension_semantics = [#tpu.dimension_semantics<parallel>], iteration_bounds = array<i64: 2>, scalar_prefetch = 0 : i64, scratch_operands = 0 : i64, tpu.core_type = #tpu.core_type<tc>, window_params = [{transform_indices = @transform_0, window_bounds = array<i64: 16, 2048>}, {pipeline_mode = #tpu.pipeline_mode<synchronous>, transform_indices = @transform_1, window_bounds = array<i64: 2048, 128>}, {pipeline_mode = #tpu.pipeline_mode<synchronous>, transform_indices = @transform_2, window_bounds = array<i64: 1, 128>}, {pipeline_mode = #tpu.pipeline_mode<synchronous>, transform_indices = @transform_3, window_bounds = array<i64: 128, 128>}, {pipeline_mode = #tpu.pipeline_mode<synchronous>, transform_indices = @transform_4, window_bounds = array<i64: 1, 128>}, {pipeline_mode = #tpu.pipeline_mode<synchronous>, transform_indices = @transform_5, window_bounds = array<i64: 128, 128>}, {pipeline_mode = #tpu.pipeline_mode<synchronous>, transform_indices = @transform_6, window_bounds = array<i64: 1, 128>}, {transform_indices = @transform_7, window_bounds = array<i64: 16, 128>}]} {
    %c0 = arith.constant 0 : index
    %c0_0 = arith.constant 0 : index
    %0 = vector.load %arg1[%c0, %c0_0] : memref<16x2048xbf16, #tpu.memory_space<vmem>>, vector<16x2048xbf16>
    %c0_1 = arith.constant 0 : index
    %c0_2 = arith.constant 0 : index
    %1 = vector.load %arg2[%c0_1, %c0_2] : memref<2048x128xbf16, #tpu.memory_space<vmem>>, vector<2048x128xbf16>
    %cst = arith.constant dense<0.000000e+00> : vector<16x128xf32>
    %2 = tpu.matmul %0, %1, %cst {dimension_numbers = #tpu.dot_dimension_numbers<[1], [0], [0], [1], [0, 0, 1, 1], [], []>} : vector<16x2048xbf16>, vector<2048x128xbf16>, vector<16x128xf32> -> vector<16x128xf32>
    %c0_3 = arith.constant 0 : index
    %c0_4 = arith.constant 0 : index
    %3 = vector.load %arg3[%c0_3, %c0_4] : memref<1x128xf32, #tpu.memory_space<vmem>>, vector<1x128xf32>
    %4 = vector.broadcast %3 : vector<1x128xf32> to vector<16x128xf32>
    %5 = arith.addf %2, %4 : vector<16x128xf32>
    %cst_5 = arith.constant 0.000000e+00 : f32
    %6 = vector.broadcast %cst_5 : f32 to vector<16x128xf32>
    %7 = arith.maximumf %5, %6 : vector<16x128xf32>
    %8 = arith.truncf %7 : vector<16x128xf32> to vector<16x128xbf16>
    %c0_6 = arith.constant 0 : index
    %c0_7 = arith.constant 0 : index
    %9 = vector.load %arg4[%c0_6, %c0_7] : memref<128x128xbf16, #tpu.memory_space<vmem>>, vector<128x128xbf16>
    %cst_8 = arith.constant dense<0.000000e+00> : vector<16x128xf32>
    %10 = tpu.matmul %8, %9, %cst_8 {dimension_numbers = #tpu.dot_dimension_numbers<[1], [0], [0], [1], [0, 0, 1, 1], [], []>} : vector<16x128xbf16>, vector<128x128xbf16>, vector<16x128xf32> -> vector<16x128xf32>
    %c0_9 = arith.constant 0 : index
    %c0_10 = arith.constant 0 : index
    %11 = vector.load %arg5[%c0_9, %c0_10] : memref<1x128xf32, #tpu.memory_space<vmem>>, vector<1x128xf32>
    %12 = vector.broadcast %11 : vector<1x128xf32> to vector<16x128xf32>
    %13 = arith.addf %10, %12 : vector<16x128xf32>
    %cst_11 = arith.constant 0.000000e+00 : f32
    %14 = vector.broadcast %cst_11 : f32 to vector<16x128xf32>
    %15 = arith.maximumf %13, %14 : vector<16x128xf32>
    %16 = arith.truncf %15 : vector<16x128xf32> to vector<16x128xbf16>
    %c0_12 = arith.constant 0 : index
    %c0_13 = arith.constant 0 : index
    %17 = vector.load %arg6[%c0_12, %c0_13] : memref<128x128xbf16, #tpu.memory_space<vmem>>, vector<128x128xbf16>
    %cst_14 = arith.constant dense<0.000000e+00> : vector<16x128xf32>
    %18 = tpu.matmul %16, %17, %cst_14 {dimension_numbers = #tpu.dot_dimension_numbers<[1], [0], [0], [1], [0, 0, 1, 1], [], []>} : vector<16x128xbf16>, vector<128x128xbf16>, vector<16x128xf32> -> vector<16x128xf32>
    %c0_15 = arith.constant 0 : index
    %c0_16 = arith.constant 0 : index
    %19 = vector.load %arg7[%c0_15, %c0_16] : memref<1x128xf32, #tpu.memory_space<vmem>>, vector<1x128xf32>
    %20 = vector.broadcast %19 : vector<1x128xf32> to vector<16x128xf32>
    %21 = arith.addf %18, %20 : vector<16x128xf32>
    %c0_17 = arith.constant 0 : index
    %c0_18 = arith.constant 0 : index
    %22 = vector.load %arg8[%c0_17, %c0_18] : memref<16x128xf32, #tpu.memory_space<vmem>>, vector<16x128xf32>
    tpu.vector_store %arg8[%c0_17, %c0_18], %21 {strides = array<i32>} : memref<16x128xf32, #tpu.memory_space<vmem>>, vector<16x128xf32>,
    return
  }
  func.func @transform_0(%arg0: i32) -> (i32, i32) {
    %c0_i32 = arith.constant 0 : i32
    %c0_i32_0 = arith.constant 0 : i32
    return %arg0, %c0_i32 : i32, i32
  }
  func.func @transform_1(%arg0: i32) -> (i32, i32) {
    %c0_i32 = arith.constant 0 : i32
    %c0_i32_0 = arith.constant 0 : i32
    %c0_i32_1 = arith.constant 0 : i32
    return %c0_i32, %c0_i32_0 : i32, i32
  }
  func.func @transform_2(%arg0: i32) -> (i32, i32) {
    %c0_i32 = arith.constant 0 : i32
    %c0_i32_0 = arith.constant 0 : i32
    %c0_i32_1 = arith.constant 0 : i32
    return %c0_i32, %c0_i32_0 : i32, i32
  }
  func.func @transform_3(%arg0: i32) -> (i32, i32) {
    %c0_i32 = arith.constant 0 : i32
    %c0_i32_0 = arith.constant 0 : i32
    %c0_i32_1 = arith.constant 0 : i32
    return %c0_i32, %c0_i32_0 : i32, i32
  }
  func.func @transform_4(%arg0: i32) -> (i32, i32) {
    %c0_i32 = arith.constant 0 : i32
    %c0_i32_0 = arith.constant 0 : i32
    %c0_i32_1 = arith.constant 0 : i32
    return %c0_i32, %c0_i32_0 : i32, i32
  }
  func.func @transform_5(%arg0: i32) -> (i32, i32) {
    %c0_i32 = arith.constant 0 : i32
    %c0_i32_0 = arith.constant 0 : i32
    %c0_i32_1 = arith.constant 0 : i32
    return %c0_i32, %c0_i32_0 : i32, i32
  }
  func.func @transform_6(%arg0: i32) -> (i32, i32) {
    %c0_i32 = arith.constant 0 : i32
    %c0_i32_0 = arith.constant 0 : i32
    %c0_i32_1 = arith.constant 0 : i32
    return %c0_i32, %c0_i32_0 : i32, i32
  }
  func.func @transform_7(%arg0: i32) -> (i32, i32) {
    %c0_i32 = arith.constant 0 : i32
    %c0_i32_0 = arith.constant 0 : i32
    return %arg0, %c0_i32 : i32, i32
  }
}

</mosaic_0001>

<llo_original>
// kernel: lenet_forward.3
$region0: #{lenet_forward.3}
  #allocation0 [shape = 'u32[]', space=smem, size = 0x4, offset = 0x4, fixed_abs, tag = 'smem constant byte address 0x4 - core index']
  #allocation1 [shape = 'u32[144,128]{1,0:T(1,128)}', space=vmem, size = 0x12000, scoped, tag = 'internal scratch']
  %s0 = inlined_call_operand.vmem [shape: bf16[4,288,128], index: 0, kind: input, shape index: {}]
  %s1 = inlined_call_operand.vmem [shape: bf16[128,128], index: 1, kind: input, shape index: {}]
  %s2 = inlined_call_operand.vmem [shape: f32[1,128], index: 2, kind: input, shape index: {}]
  %s3 = inlined_call_operand.vmem [shape: bf16[288,128], index: 3, kind: output, shape index: {}]
  %s4 = sld [smem:[#allocation0]]
  $region86: #{lenet_forward.3} parent=0
    _
  %s6 = ssub.s32 1, %s4
  %s7 = scalar_select 0, %s6, %s4
  $region1: #{lenet_forward.3} parent=0
    #allocation2 [shape = 'u8[294912]{0}', space=vmem, size = 0x48000, scoped, tag = 'input window, operand 0']
    loop: start=0, step=1, limit=4
    $region2: #{lenet_forward.3} parent=1 // loop_pre_header
      _
    $region3: #{lenet_forward.3} parent=1 // loop_header
      %s9 = sphi 0, %s13
      %p10 = scmp.ge.s32.totalorder %s9, 4
      %s19 = sphi 0, %s21
      %s22 = sphi 0, %s19
      %s23 = sphi 0, %s22
      %s39 = sphi 0, %s23
      %s43 = sphi 0, %s43
      %s45 = sphi 0, %s43
      %s46 = sphi 0, %s45
      %s60 = sphi 0, %s46
      %s64 = sphi 0, %s64
      %s66 = sphi 0, %s64
      %s67 = sphi 0, %s66
      %s81 = sphi 0, %s67
      %s87 = sphi 0, %s89
      %s90 = sphi 0, %s87
      %s91 = sphi 0, %s90
      %s107 = sphi 0, %s91
    $region4: #{lenet_forward.3} parent=1 // loop_header_branch
      %12 = sbr.rel (%p10) target = $region8
    $region5: #{lenet_forward.3} parent=1 // loop_body
      %s14 = ssub.s32 %s9, 1
      %s15 = ssub.s32 %s9, 2
      %s16 = sadd.s32 %s9, 1
      %s17 = ssub.s32 %s9, %s16
      %p18 = scmp.eq.s32.totalorder %s17, 0
      %s20 = sadd.s32 %s19, 1
      %s21 = scalar_select %p18, %s19, %s20
      %p24 = pneg %p18
      %p25 = scmp.eq.s32.totalorder %s9, 1
      %p26 = por %p24, %p25
      %p27 = scmp.ne.s32.totalorder %s19, %s22
      %p28 = scmp.eq.s32.totalorder %s9, 0
      %p29 = por %p27, %p28
      %p30 = scmp.ne.s32.totalorder %s19, %s22
      %p31 = scmp.eq.s32.totalorder %s14, 1
      %p32 = por %p30, %p31
      %p33 = scmp.ne.s32.totalorder %s22, %s23
      %p34 = scmp.eq.s32.totalorder %s14, 0
      %p35 = por %p33, %p34
      %p36 = scmp.ne.s32.totalorder %s22, %s23
      %p37 = scmp.eq.s32.totalorder %s15, 1
      %p38 = por %p36, %p37
      %p40 = scmp.ne.s32.totalorder %s23, %s39
      %p41 = scmp.eq.s32.totalorder %s15, 0
      %p42 = por %p40, %p41
      %s44 = sadd.s32 %s43, 1
      %p47 = scmp.eq.s32.totalorder %s9, 1
      %p48 = scmp.ne.s32.totalorder %s43, %s45
      %p49 = scmp.eq.s32.totalorder %s9, 0
      %p50 = por %p48, %p49
      %p51 = scmp.ne.s32.totalorder %s43, %s45
      %p52 = scmp.eq.s32.totalorder %s14, 1
      %p53 = por %p51, %p52
      %p54 = scmp.ne.s32.totalorder %s45, %s46
      %p55 = scmp.eq.s32.totalorder %s14, 0
      %p56 = por %p54, %p55
      %p57 = scmp.ne.s32.totalorder %s45, %s46
      %p58 = scmp.eq.s32.totalorder %s15, 1
      %p59 = por %p57, %p58
      %p61 = scmp.ne.s32.totalorder %s46, %s60
      %p62 = scmp.eq.s32.totalorder %s15, 0
      %p63 = por %p61, %p62
      %s65 = sadd.s32 %s64, 1
      %p68 = scmp.eq.s32.totalorder %s9, 1
      %p69 = scmp.ne.s32.totalorder %s64, %s66
      %p70 = scmp.eq.s32.totalorder %s9, 0
      %p71 = por %p69, %p70
      %p72 = scmp.ne.s32.totalorder %s64, %s66
      %p73 = scmp.eq.s32.totalorder %s14, 1
      %p74 = por %p72, %p73
      %p75 = scmp.ne.s32.totalorder %s66, %s67
      %p76 = scmp.eq.s32.totalorder %s14, 0
      %p77 = por %p75, %p76
      %p78 = scmp.ne.s32.totalorder %s66, %s67
      %p79 = scmp.eq.s32.totalorder %s15, 1
      %p80 = por %p78, %p79
      %p82 = scmp.ne.s32.totalorder %s67, %s81
      %p83 = scmp.eq.s32.totalorder %s15, 0
      %p84 = por %p82, %p83
      %s85 = ssub.s32 %s9, %s16
      %p86 = scmp.eq.s32.totalorder %s85, 0
      %s88 = sadd.s32 %s87, 1
      %s89 = scalar_select %p86, %s87, %s88
      %p92 = pneg %p86
      %p93 = scmp.eq.s32.totalorder %s9, 1
      %p94 = por %p92, %p93
      %p95 = scmp.ne.s32.totalorder %s87, %s90
      %p96 = scmp.eq.s32.totalorder %s9, 0
      %p97 = por %p95, %p96
      %p98 = scmp.ne.s32.totalorder %s87, %s90
      %p99 = scmp.eq.s32.totalorder %s14, 1
      %p100 = por %p98, %p99
      %p101 = scmp.ne.s32.totalorder %s90, %s91
      %p102 = scmp.eq.s32.totalorder %s14, 0
      %p103 = por %p101, %p102
      %p104 = scmp.ne.s32.totalorder %s90, %s91
      %p105 = scmp.eq.s32.totalorder %s15, 1
      %p106 = por %p104, %p105
      %p108 = scmp.ne.s32.totalorder %s91, %s107
      %p109 = scmp.eq.s32.totalorder %s15, 0
      %p110 = por %p108, %p109
      %p111 = scmp.le.s32.totalorder 1, %s9
      %p112 = scmp.lt.s32.totalorder %s9, 3
      %p113 = pnand %p111, %p112
      %p114 = pneg %p113
      // Predicated region
      $region9: #{lenet_forward.3} parent=5 // pred_check
        _
      $region10: #{lenet_forward.3} parent=5 // pred_check_branch
        %116 = sbr.rel (%p113) target = $region12
      $region11: #{lenet_forward.3} parent=5 // pred_region
        %s117 = ssub.s32 %s9, 1
        // Predicated region
        $region13: #{lenet_forward.3} parent=11 // pred_check
          %p118 = pneg %p56
        $region14: #{lenet_forward.3} parent=11 // pred_check_branch
          %120 = sbr.rel (%p118) target = $region16
        $region15: #{lenet_forward.3} parent=11 // pred_region
          _
        $region16: #{lenet_forward.3} parent=11 // pred_fallthru
          _
        // Predicated region
        $region17: #{lenet_forward.3} parent=11 // pred_check
          %p121 = pneg %p77
        $region18: #{lenet_forward.3} parent=11 // pred_check_branch
          %123 = sbr.rel (%p121) target = $region20
        $region19: #{lenet_forward.3} parent=11 // pred_region
          _
        $region20: #{lenet_forward.3} parent=11 // pred_fallthru
          _
      $region12: #{lenet_forward.3} parent=5 // pred_fallthru
        _
      %p124 = scmp.lt.s32.totalorder %s9, 2
      // Predicated region
      $region21: #{lenet_forward.3} parent=5 // pred_check
        %p125 = pneg %p124
      $region22: #{lenet_forward.3} parent=5 // pred_check_branch
        %127 = sbr.rel (%p125) target = $region24
      $region23: #{lenet_forward.3} parent=5 // pred_region
        // Predicated region
        $region25: #{lenet_forward.3} parent=23 // pred_check
          %p128 = pneg %p29
        $region26: #{lenet_forward.3} parent=23 // pred_check_branch
          %130 = sbr.rel (%p128) target = $region28
        $region27: #{lenet_forward.3} parent=23 // pred_region
          %s131 = sand.u32 %s19, 1
          %s132 = sand.u32 %s19, 1
          %s133 = smul.addr %s132, 288
          %s134 = scalar_lea.vmem [#allocation2], %s133
          %s135 = smul.u32 18, %s9
          %s136 = smul.addr %s135, 4
          %s137 = scalar_lea.vmem %s0, %s136
          // Predicated region
          $region29: #{lenet_forward.3} parent=27 // pred_check
            _
          $region30: #{lenet_forward.3} parent=27 // pred_check_branch
            %139 = sbr.rel (0) target = $region32
          $region31: #{lenet_forward.3} parent=27 // pred_region
            // Predicated region
            $region33: #{lenet_forward.3} parent=31 // pred_check
              _
            $region34: #{lenet_forward.3} parent=31 // pred_check_branch
              %141 = sbr.rel target = $region36
            $region35: #{lenet_forward.3} parent=31 // pred_region
              // Predicated region
              $region48: #{lenet_forward.3} parent=35 // pred_check
                _
              $region49: #{lenet_forward.3} parent=35 // pred_check_branch
                %299 = sbr.rel (0) target = $region51
              $region50: #{lenet_forward.3} parent=35 // pred_region
                loop: start=0, step=1, limit=1
                $region52: #{lenet_forward.3} parent=50 // loop_pre_header
                  _
                $region53: #{lenet_forward.3} parent=50 // loop_header
                  %s301 = sphi 0, %s305
                  %p302 = scmp.ge.s32.totalorder %s301, 1
                  %s306 = sphi %s137, %s137
                  %s307 = sphi %s134, %s134
                $region54: #{lenet_forward.3} parent=50 // loop_header_branch
                  %304 = sbr.rel (%p302) target = $region58
                $region55: #{lenet_forward.3} parent=50 // loop_body
                  _
                $region56: #{lenet_forward.3} parent=50 // loop_footer
                  %s305 = sadd.s32 1, %s301
                $region57: #{lenet_forward.3} parent=50 // loop_footer_branch
                  %300 = sbr.rel target = $region53
                $region58: #{lenet_forward.3} parent=50 // loop_exit
                  _
                %s309 = ssub.s32 16, 1
                loop: start=0, step=1, limit=1
                $region59: #{lenet_forward.3} parent=50 // loop_pre_header
                  _
                $region60: #{lenet_forward.3} parent=50 // loop_header
                  %s311 = sphi 0, %s315
                  %p312 = scmp.ge.s32.totalorder %s311, 1
                  %s316 = sphi %s137, %s137
                  %s317 = sphi %s134, %s134
                $region61: #{lenet_forward.3} parent=50 // loop_header_branch
                  %314 = sbr.rel (%p312) target = $region65
                $region62: #{lenet_forward.3} parent=50 // loop_body
                  %v318 = vld [vmem:[%s316] sm:%s309]
                  %319 = vst [vmem:[%s317] sm:%s309] %v318
                  %v320 = vld [vmem:[%s316 + $0x4] sm:%s309]
                  %321 = vst [vmem:[%s317 + $0x4] sm:%s309] %v320
                  %v322 = vld [vmem:[%s316 + $0x8] sm:%s309]
                  %323 = vst [vmem:[%s317 + $0x8] sm:%s309] %v322
                  %v324 = vld [vmem:[%s316 + $0xc] sm:%s309]
                  %325 = vst [vmem:[%s317 + $0xc] sm:%s309] %v324
                  %v326 = vld [vmem:[%s316 + $0x10] sm:%s309]
                  %327 = vst [vmem:[%s317 + $0x10] sm:%s309] %v326
                  %v328 = vld [vmem:[%s316 + $0x14] sm:%s309]
                  %329 = vst [vmem:[%s317 + $0x14] sm:%s309] %v328
                  %v330 = vld [vmem:[%s316 + $0x18] sm:%s309]
                  %331 = vst [vmem:[%s317 + $0x18] sm:%s309] %v330
                  %v332 = vld [vmem:[%s316 + $0x1c] sm:%s309]
                  %333 = vst [vmem:[%s317 + $0x1c] sm:%s309] %v332
                  %v334 = vld [vmem:[%s316 + $0x20] sm:%s309]
                  %335 = vst [vmem:[%s317 + $0x20] sm:%s309] %v334
                  %v336 = vld [vmem:[%s316 + $0x24] sm:%s309]
                  %337 = vst [vmem:[%s317 + $0x24] sm:%s309] %v336
                  %v338 = vld [vmem:[%s316 + $0x28] sm:%s309]
                  %339 = vst [vmem:[%s317 + $0x28] sm:%s309] %v338
                  %v340 = vld [vmem:[%s316 + $0x2c] sm:%s309]
                  %341 = vst [vmem:[%s317 + $0x2c] sm:%s309] %v340
                  %v342 = vld [vmem:[%s316 + $0x30] sm:%s309]
                  %343 = vst [vmem:[%s317 + $0x30] sm:%s309] %v342
                  %v344 = vld [vmem:[%s316 + $0x34] sm:%s309]
                  %345 = vst [vmem:[%s317 + $0x34] sm:%s309] %v344
                  %v346 = vld [vmem:[%s316 + $0x38] sm:%s309]
                  %347 = vst [vmem:[%s317 + $0x38] sm:%s309] %v346
                  %v348 = vld [vmem:[%s316 + $0x3c] sm:%s309]
                  %349 = vst [vmem:[%s317 + $0x3c] sm:%s309] %v348
                  %v350 = vld [vmem:[%s316 + $0x40] sm:%s309]
                  %351 = vst [vmem:[%s317 + $0x40] sm:%s309] %v350
                  %v352 = vld [vmem:[%s316 + $0x44] sm:%s309]
                  %353 = vst [vmem:[%s317 + $0x44] sm:%s309] %v352
                  %v354 = vld [vmem:[%s316 + $0x90] sm:%s309]
                  %355 = vst [vmem:[%s317 + $0x48] sm:%s309] %v354
                  %v356 = vld [vmem:[%s316 + $0x94] sm:%s309]
                  %357 = vst [vmem:[%s317 + $0x4c] sm:%s309] %v356
                  %v358 = vld [vmem:[%s316 + $0x98] sm:%s309]
                  %359 = vst [vmem:[%s317 + $0x50] sm:%s309] %v358
                  %v360 = vld [vmem:[%s316 + $0x9c] sm:%s309]
                  %361 = vst [vmem:[%s317 + $0x54] sm:%s309] %v360
                  %v362 = vld [vmem:[%s316 + $0xa0] sm:%s309]
                  %363 = vst [vmem:[%s317 + $0x58] sm:%s309] %v362
                  %v364 = vld [vmem:[%s316 + $0xa4] sm:%s309]
                  %365 = vst [vmem:[%s317 + $0x5c] sm:%s309] %v364
                  %v366 = vld [vmem:[%s316 + $0xa8] sm:%s309]
                  %367 = vst [vmem:[%s317 + $0x60] sm:%s309] %v366
                  %v368 = vld [vmem:[%s316 + $0xac] sm:%s309]
                  %369 = vst [vmem:[%s317 + $0x64] sm:%s309] %v368
                  %v370 = vld [vmem:[%s316 + $0xb0] sm:%s309]
                  %371 = vst [vmem:[%s317 + $0x68] sm:%s309] %v370
                  %v372 = vld [vmem:[%s316 + $0xb4] sm:%s309]
                  %373 = vst [vmem:[%s317 + $0x6c] sm:%s309] %v372
                  %v374 = vld [vmem:[%s316 + $0xb8] sm:%s309]
                  %375 = vst [vmem:[%s317 + $0x70] sm:%s309] %v374
                  %v376 = vld [vmem:[%s316 + $0xbc] sm:%s309]
                  %377 = vst [vmem:[%s317 + $0x74] sm:%s309] %v376
                  %v378 = vld [vmem:[%s316 + $0xc0] sm:%s309]
                  %379 = vst [vmem:[%s317 + $0x78] sm:%s309] %v378
                  %v380 = vld [vmem:[%s316 + $0xc4] sm:%s309]
                  %381 = vst [vmem:[%s317 + $0x7c] sm:%s309] %v380
                  %v382 = vld [vmem:[%s316 + $0xc8] sm:%s309]
                  %383 = vst [vmem:[%s317 + $0x80] sm:%s309] %v382
                  %v384 = vld [vmem:[%s316 + $0xcc] sm:%s309]
                  %385 = vst [vmem:[%s317 + $0x84] sm:%s309] %v384
                  %v386 = vld [vmem:[%s316 + $0xd0] sm:%s309]
                  %387 = vst [vmem:[%s317 + $0x88] sm:%s309] %v386
                  %v388 = vld [vmem:[%s316 + $0xd4] sm:%s309]
                  %389 = vst [vmem:[%s317 + $0x8c] sm:%s309] %v388
                  %v390 = vld [vmem:[%s316 + $0x120] sm:%s309]
                  %391 = vst [vmem:[%s317 + $0x90] sm:%s309] %v390
                  %v392 = vld [vmem:[%s316 + $0x124] sm:%s309]
                  %393 = vst [vmem:[%s317 + $0x94] sm:%s309] %v392
                  %v394 = vld [vmem:[%s316 + $0x128] sm:%s309]
                  %395 = vst [vmem:[%s317 + $0x98] sm:%s309] %v394
                  %v396 = vld [vmem:[%s316 + $0x12c] sm:%s309]
                  %397 = vst [vmem:[%s317 + $0x9c] sm:%s309] %v396
                  %v398 = vld [vmem:[%s316 + $0x130] sm:%s309]
                  %399 = vst [vmem:[%s317 + $0xa0] sm:%s309] %v398
                  %v400 = vld [vmem:[%s316 + $0x134] sm:%s309]
                  %401 = vst [vmem:[%s317 + $0xa4] sm:%s309] %v400
                  %v402 = vld [vmem:[%s316 + $0x138] sm:%s309]
                  %403 = vst [vmem:[%s317 + $0xa8] sm:%s309] %v402
                  %v404 = vld [vmem:[%s316 + $0x13c] sm:%s309]
                  %405 = vst [vmem:[%s317 + $0xac] sm:%s309] %v404
                  %v406 = vld [vmem:[%s316 + $0x140] sm:%s309]
                  %407 = vst [vmem:[%s317 + $0xb0] sm:%s309] %v406
                  %v408 = vld [vmem:[%s316 + $0x144] sm:%s309]
                  %409 = vst [vmem:[%s317 + $0xb4] sm:%s309] %v408
                  %v410 = vld [vmem:[%s316 + $0x148] sm:%s309]
                  %411 = vst [vmem:[%s317 + $0xb8] sm:%s309] %v410
                  %v412 = vld [vmem:[%s316 + $0x14c] sm:%s309]
                  %413 = vst [vmem:[%s317 + $0xbc] sm:%s309] %v412
                  %v414 = vld [vmem:[%s316 + $0x150] sm:%s309]
                  %415 = vst [vmem:[%s317 + $0xc0] sm:%s309] %v414
                  %v416 = vld [vmem:[%s316 + $0x154] sm:%s309]
                  %417 = vst [vmem:[%s317 + $0xc4] sm:%s309] %v416
                  %v418 = vld [vmem:[%s316 + $0x158] sm:%s309]
                  %419 = vst [vmem:[%s317 + $0xc8] sm:%s309] %v418
                  %v420 = vld [vmem:[%s316 + $0x15c] sm:%s309]
                  %421 = vst [vmem:[%s317 + $0xcc] sm:%s309] %v420
                  %v422 = vld [vmem:[%s316 + $0x160] sm:%s309]
                  %423 = vst [vmem:[%s317 + $0xd0] sm:%s309] %v422
                  %v424 = vld [vmem:[%s316 + $0x164] sm:%s309]
                  %425 = vst [vmem:[%s317 + $0xd4] sm:%s309] %v424
                  %v426 = vld [vmem:[%s316 + $0x1b0] sm:%s309]
                  %427 = vst [vmem:[%s317 + $0xd8] sm:%s309] %v426
                  %v428 = vld [vmem:[%s316 + $0x1b4] sm:%s309]
                  %429 = vst [vmem:[%s317 + $0xdc] sm:%s309] %v428
                  %v430 = vld [vmem:[%s316 + $0x1b8] sm:%s309]
                  %431 = vst [vmem:[%s317 + $0xe0] sm:%s309] %v430
                  %v432 = vld [vmem:[%s316 + $0x1bc] sm:%s309]
                  %433 = vst [vmem:[%s317 + $0xe4] sm:%s309] %v432
                  %v434 = vld [vmem:[%s316 + $0x1c0] sm:%s309]
                  %435 = vst [vmem:[%s317 + $0xe8] sm:%s309] %v434
                  %v436 = vld [vmem:[%s316 + $0x1c4] sm:%s309]
                  %437 = vst [vmem:[%s317 + $0xec] sm:%s309] %v436
                  %v438 = vld [vmem:[%s316 + $0x1c8] sm:%s309]
                  %439 = vst [vmem:[%s317 + $0xf0] sm:%s309] %v438
                  %v440 = vld [vmem:[%s316 + $0x1cc] sm:%s309]
                  %441 = vst [vmem:[%s317 + $0xf4] sm:%s309] %v440
                  %v442 = vld [vmem:[%s316 + $0x1d0] sm:%s309]
                  %443 = vst [vmem:[%s317 + $0xf8] sm:%s309] %v442
                  %v444 = vld [vmem:[%s316 + $0x1d4] sm:%s309]
                  %445 = vst [vmem:[%s317 + $0xfc] sm:%s309] %v444
                  %v446 = vld [vmem:[%s316 + $0x1d8] sm:%s309]
                  %447 = vst [vmem:[%s317 + $0x100] sm:%s309] %v446
                  %v448 = vld [vmem:[%s316 + $0x1dc] sm:%s309]
                  %449 = vst [vmem:[%s317 + $0x104] sm:%s309] %v448
                  %v450 = vld [vmem:[%s316 + $0x1e0] sm:%s309]
                  %451 = vst [vmem:[%s317 + $0x108] sm:%s309] %v450
                  %v452 = vld [vmem:[%s316 + $0x1e4] sm:%s309]
                  %453 = vst [vmem:[%s317 + $0x10c] sm:%s309] %v452
                  %v454 = vld [vmem:[%s316 + $0x1e8] sm:%s309]
                  %455 = vst [vmem:[%s317 + $0x110] sm:%s309] %v454
                  %v456 = vld [vmem:[%s316 + $0x1ec] sm:%s309]
                  %457 = vst [vmem:[%s317 + $0x114] sm:%s309] %v456
                  %v458 = vld [vmem:[%s316 + $0x1f0] sm:%s309]
                  %459 = vst [vmem:[%s317 + $0x118] sm:%s309] %v458
                  %v460 = vld [vmem:[%s316 + $0x1f4] sm:%s309]
                  %461 = vst [vmem:[%s317 + $0x11c] sm:%s309] %v460
                $region63: #{lenet_forward.3} parent=50 // loop_footer
                  %s315 = sadd.s32 1, %s311
                $region64: #{lenet_forward.3} parent=50 // loop_footer_branch
                  %310 = sbr.rel target = $region60
                $region65: #{lenet_forward.3} parent=50 // loop_exit
                  _
              $region51: #{lenet_forward.3} parent=35 // pred_fallthru
                _
            $region36: #{lenet_forward.3} parent=31 // pred_fallthru
              _
            // Predicated region
            $region37: #{lenet_forward.3} parent=31 // pred_check
              _
            $region38: #{lenet_forward.3} parent=31 // pred_check_branch
              %143 = sbr.rel (0) target = $region40
            $region39: #{lenet_forward.3} parent=31 // pred_region
              %s145 = ssub.s32 16, 1
              loop: start=0, step=1, limit=1
              $region41: #{lenet_forward.3} parent=39 // loop_pre_header
                _
              $region42: #{lenet_forward.3} parent=39 // loop_header
                %s147 = sphi 0, %s151
                %p148 = scmp.ge.s32.totalorder %s147, 1
                %s152 = sphi %s137, %s137
                %s153 = sphi %s134, %s134
              $region43: #{lenet_forward.3} parent=39 // loop_header_branch
                %150 = sbr.rel (%p148) target = $region47
              $region44: #{lenet_forward.3} parent=39 // loop_body
                %v154 = vld [vmem:[%s152] sm:%s145]
                %155 = vst [vmem:[%s153] sm:%s145] %v154
                %v156 = vld [vmem:[%s152 + $0x4] sm:%s145]
                %157 = vst [vmem:[%s153 + $0x4] sm:%s145] %v156
                %v158 = vld [vmem:[%s152 + $0x8] sm:%s145]
                %159 = vst [vmem:[%s153 + $0x8] sm:%s145] %v158
                %v160 = vld [vmem:[%s152 + $0xc] sm:%s145]
                %161 = vst [vmem:[%s153 + $0xc] sm:%s145] %v160
                %v162 = vld [vmem:[%s152 + $0x10] sm:%s145]
                %163 = vst [vmem:[%s153 + $0x10] sm:%s145] %v162
                %v164 = vld [vmem:[%s152 + $0x14] sm:%s145]
                %165 = vst [vmem:[%s153 + $0x14] sm:%s145] %v164
                %v166 = vld [vmem:[%s152 + $0x18] sm:%s145]
                %167 = vst [vmem:[%s153 + $0x18] sm:%s145] %v166
                %v168 = vld [vmem:[%s152 + $0x1c] sm:%s145]
                %169 = vst [vmem:[%s153 + $0x1c] sm:%s145] %v168
                %v170 = vld [vmem:[%s152 + $0x20] sm:%s145]
                %171 = vst [vmem:[%s153 + $0x20] sm:%s145] %v170
                %v172 = vld [vmem:[%s152 + $0x24] sm:%s145]
                %173 = vst [vmem:[%s153 + $0x24] sm:%s145] %v172
                %v174 = vld [vmem:[%s152 + $0x28] sm:%s145]
                %175 = vst [vmem:[%s153 + $0x28] sm:%s145] %v174
                %v176 = vld [vmem:[%s152 + $0x2c] sm:%s145]
                %177 = vst [vmem:[%s153 + $0x2c] sm:%s145] %v176
                %v178 = vld [vmem:[%s152 + $0x30] sm:%s145]
                %179 = vst [vmem:[%s153 + $0x30] sm:%s145] %v178
                %v180 = vld [vmem:[%s152 + $0x34] sm:%s145]
                %181 = vst [vmem:[%s153 + $0x34] sm:%s145] %v180
                %v182 = vld [vmem:[%s152 + $0x38] sm:%s145]
                %183 = vst [vmem:[%s153 + $0x38] sm:%s145] %v182
                %v184 = vld [vmem:[%s152 + $0x3c] sm:%s145]
                %185 = vst [vmem:[%s153 + $0x3c] sm:%s145] %v184
                %v186 = vld [vmem:[%s152 + $0x40] sm:%s145]
                %187 = vst [vmem:[%s153 + $0x40] sm:%s145] %v186
                %v188 = vld [vmem:[%s152 + $0x44] sm:%s145]
                %189 = vst [vmem:[%s153 + $0x44] sm:%s145] %v188
                %v190 = vld [vmem:[%s152 + $0x90] sm:%s145]
                %191 = vst [vmem:[%s153 + $0x48] sm:%s145] %v190
                %v192 = vld [vmem:[%s152 + $0x94] sm:%s145]
                %193 = vst [vmem:[%s153 + $0x4c] sm:%s145] %v192
                %v194 = vld [vmem:[%s152 + $0x98] sm:%s145]
                %195 = vst [vmem:[%s153 + $0x50] sm:%s145] %v194
                %v196 = vld [vmem:[%s152 + $0x9c] sm:%s145]
                %197 = vst [vmem:[%s153 + $0x54] sm:%s145] %v196
                %v198 = vld [vmem:[%s152 + $0xa0] sm:%s145]
                %199 = vst [vmem:[%s153 + $0x58] sm:%s145] %v198
                %v200 = vld [vmem:[%s152 + $0xa4] sm:%s145]
                %201 = vst [vmem:[%s153 + $0x5c] sm:%s145] %v200
                %v202 = vld [vmem:[%s152 + $0xa8] sm:%s145]
                %203 = vst [vmem:[%s153 + $0x60] sm:%s145] %v202
                %v204 = vld [vmem:[%s152 + $0xac] sm:%s145]
                %205 = vst [vmem:[%s153 + $0x64] sm:%s145] %v204
                %v206 = vld [vmem:[%s152 + $0xb0] sm:%s145]
                %207 = vst [vmem:[%s153 + $0x68] sm:%s145] %v206
                %v208 = vld [vmem:[%s152 + $0xb4] sm:%s145]
                %209 = vst [vmem:[%s153 + $0x6c] sm:%s145] %v208
                %v210 = vld [vmem:[%s152 + $0xb8] sm:%s145]
                %211 = vst [vmem:[%s153 + $0x70] sm:%s145] %v210
                %v212 = vld [vmem:[%s152 + $0xbc] sm:%s145]
                %213 = vst [vmem:[%s153 + $0x74] sm:%s145] %v212
                %v214 = vld [vmem:[%s152 + $0xc0] sm:%s145]
                %215 = vst [vmem:[%s153 + $0x78] sm:%s145] %v214
                %v216 = vld [vmem:[%s152 + $0xc4] sm:%s145]
                %217 = vst [vmem:[%s153 + $0x7c] sm:%s145] %v216
                %v218 = vld [vmem:[%s152 + $0xc8] sm:%s145]
                %219 = vst [vmem:[%s153 + $0x80] sm:%s145] %v218
                %v220 = vld [vmem:[%s152 + $0xcc] sm:%s145]
                %221 = vst [vmem:[%s153 + $0x84] sm:%s145] %v220
                %v222 = vld [vmem:[%s152 + $0xd0] sm:%s145]
                %223 = vst [vmem:[%s153 + $0x88] sm:%s145] %v222
                %v224 = vld [vmem:[%s152 + $0xd4] sm:%s145]
                %225 = vst [vmem:[%s153 + $0x8c] sm:%s145] %v224
                %v226 = vld [vmem:[%s152 + $0x120] sm:%s145]
                %227 = vst [vmem:[%s153 + $0x90] sm:%s145] %v226
                %v228 = vld [vmem:[%s152 + $0x124] sm:%s145]
                %229 = vst [vmem:[%s153 + $0x94] sm:%s145] %v228
                %v230 = vld [vmem:[%s152 + $0x128] sm:%s145]
                %231 = vst [vmem:[%s153 + $0x98] sm:%s145] %v230
                %v232 = vld [vmem:[%s152 + $0x12c] sm:%s145]
                %233 = vst [vmem:[%s153 + $0x9c] sm:%s145] %v232
                %v234 = vld [vmem:[%s152 + $0x130] sm:%s145]
                %235 = vst [vmem:[%s153 + $0xa0] sm:%s145] %v234
                %v236 = vld [vmem:[%s152 + $0x134] sm:%s145]
                %237 = vst [vmem:[%s153 + $0xa4] sm:%s145] %v236
                %v238 = vld [vmem:[%s152 + $0x138] sm:%s145]
                %239 = vst [vmem:[%s153 + $0xa8] sm:%s145] %v238
                %v240 = vld [vmem:[%s152 + $0x13c] sm:%s145]
                %241 = vst [vmem:[%s153 + $0xac] sm:%s145] %v240
                %v242 = vld [vmem:[%s152 + $0x140] sm:%s145]
                %243 = vst [vmem:[%s153 + $0xb0] sm:%s145] %v242
                %v244 = vld [vmem:[%s152 + $0x144] sm:%s145]
                %245 = vst [vmem:[%s153 + $0xb4] sm:%s145] %v244
                %v246 = vld [vmem:[%s152 + $0x148] sm:%s145]
                %247 = vst [vmem:[%s153 + $0xb8] sm:%s145] %v246
                %v248 = vld [vmem:[%s152 + $0x14c] sm:%s145]
                %249 = vst [vmem:[%s153 + $0xbc] sm:%s145] %v248
                %v250 = vld [vmem:[%s152 + $0x150] sm:%s145]
                %251 = vst [vmem:[%s153 + $0xc0] sm:%s145] %v250
                %v252 = vld [vmem:[%s152 + $0x154] sm:%s145]
                %253 = vst [vmem:[%s153 + $0xc4] sm:%s145] %v252
                %v254 = vld [vmem:[%s152 + $0x158] sm:%s145]
                %255 = vst [vmem:[%s153 + $0xc8] sm:%s145] %v254
                %v256 = vld [vmem:[%s152 + $0x15c] sm:%s145]
                %257 = vst [vmem:[%s153 + $0xcc] sm:%s145] %v256
                %v258 = vld [vmem:[%s152 + $0x160] sm:%s145]
                %259 = vst [vmem:[%s153 + $0xd0] sm:%s145] %v258
                %v260 = vld [vmem:[%s152 + $0x164] sm:%s145]
                %261 = vst [vmem:[%s153 + $0xd4] sm:%s145] %v260
                %v262 = vld [vmem:[%s152 + $0x1b0] sm:%s145]
                %263 = vst [vmem:[%s153 + $0xd8] sm:%s145] %v262
                %v264 = vld [vmem:[%s152 + $0x1b4] sm:%s145]
                %265 = vst [vmem:[%s153 + $0xdc] sm:%s145] %v264
                %v266 = vld [vmem:[%s152 + $0x1b8] sm:%s145]
                %267 = vst [vmem:[%s153 + $0xe0] sm:%s145] %v266
                %v268 = vld [vmem:[%s152 + $0x1bc] sm:%s145]
                %269 = vst [vmem:[%s153 + $0xe4] sm:%s145] %v268
                %v270 = vld [vmem:[%s152 + $0x1c0] sm:%s145]
                %271 = vst [vmem:[%s153 + $0xe8] sm:%s145] %v270
                %v272 = vld [vmem:[%s152 + $0x1c4] sm:%s145]
                %273 = vst [vmem:[%s153 + $0xec] sm:%s145] %v272
                %v274 = vld [vmem:[%s152 + $0x1c8] sm:%s145]
                %275 = vst [vmem:[%s153 + $0xf0] sm:%s145] %v274
                %v276 = vld [vmem:[%s152 + $0x1cc] sm:%s145]
                %277 = vst [vmem:[%s153 + $0xf4] sm:%s145] %v276
                %v278 = vld [vmem:[%s152 + $0x1d0] sm:%s145]
                %279 = vst [vmem:[%s153 + $0xf8] sm:%s145] %v278
                %v280 = vld [vmem:[%s152 + $0x1d4] sm:%s145]
                %281 = vst [vmem:[%s153 + $0xfc] sm:%s145] %v280
                %v282 = vld [vmem:[%s152 + $0x1d8] sm:%s145]
                %283 = vst [vmem:[%s153 + $0x100] sm:%s145] %v282
                %v284 = vld [vmem:[%s152 + $0x1dc] sm:%s145]
                %285 = vst [vmem:[%s153 + $0x104] sm:%s145] %v284
                %v286 = vld [vmem:[%s152 + $0x1e0] sm:%s145]
                %287 = vst [vmem:[%s153 + $0x108] sm:%s145] %v286
                %v288 = vld [vmem:[%s152 + $0x1e4] sm:%s145]
                %289 = vst [vmem:[%s153 + $0x10c] sm:%s145] %v288
                %v290 = vld [vmem:[%s152 + $0x1e8] sm:%s145]
                %291 = vst [vmem:[%s153 + $0x110] sm:%s145] %v290
                %v292 = vld [vmem:[%s152 + $0x1ec] sm:%s145]
                %293 = vst [vmem:[%s153 + $0x114] sm:%s145] %v292
                %v294 = vld [vmem:[%s152 + $0x1f0] sm:%s145]
                %295 = vst [vmem:[%s153 + $0x118] sm:%s145] %v294
                %v296 = vld [vmem:[%s152 + $0x1f4] sm:%s145]
                %297 = vst [vmem:[%s153 + $0x11c] sm:%s145] %v296
              $region45: #{lenet_forward.3} parent=39 // loop_footer
                %s151 = sadd.s32 1, %s147
              $region46: #{lenet_forward.3} parent=39 // loop_footer_branch
                %146 = sbr.rel target = $region42
              $region47: #{lenet_forward.3} parent=39 // loop_exit
                _
            $region40: #{lenet_forward.3} parent=31 // pred_fallthru
              _
          $region32: #{lenet_forward.3} parent=27 // pred_fallthru
            _
          %462 = vnop
        $region28: #{lenet_forward.3} parent=23 // pred_fallthru
          _
      $region24: #{lenet_forward.3} parent=5 // pred_fallthru
        _
      %p463 = scmp.le.s32.totalorder 1, %s9
      %p464 = scmp.lt.s32.totalorder %s9, 3
      %p465 = pnand %p463, %p464
      %p466 = pneg %p465
      // Predicated region
      $region66: #{lenet_forward.3} parent=5 // pred_check
        _
      $region67: #{lenet_forward.3} parent=5 // pred_check_branch
        %468 = sbr.rel (%p465) target = $region69
      $region68: #{lenet_forward.3} parent=5 // pred_region
        %s469 = ssub.s32 %s9, 1
        %s470 = sand.u32 %s22, 1
        %s471 = sand.u32 %s22, 1
        %s472 = smul.addr %s471, 288
        %s473 = scalar_lea.vmem [#allocation2], %s472
        // Predicated region
        $region70: #{lenet_forward.3} parent=68 // pred_check
          %p474 = pneg %p35
        $region71: #{lenet_forward.3} parent=68 // pred_check_branch
          %476 = sbr.rel (%p474) target = $region73
        $region72: #{lenet_forward.3} parent=68 // pred_region
          _
        $region73: #{lenet_forward.3} parent=68 // pred_fallthru
          _
        %s477 = sand.u32 %s22, 1
        %s478 = sand.u32 %s22, 1
        %s479 = smul.addr %s478, 288
        %s480 = scalar_lea.vmem [#allocation2], %s479
        %p481 = pneg %p35
        %p482 = pneg %p32
        %p483 = pneg %p56
        %p484 = pneg %p53
        %p485 = pneg %p77
        %p486 = pneg %p74
        %p487 = pneg %p103
        %p488 = pneg %p100
        %s489 = smul.u32 18, %s14
        %p490 = scmp.lt.s32.totalorder %s489, 35
        %s491 = scalar_select %p490, %s489, 35
        %s492 = smul.addr %s491, 4
        %s493 = scalar_lea.vmem %s3, %s492
        %s494 = smul.u32 18, %s14
        %s495 = smul.u32 18, %s14
        %p496 = scmp.lt.s32.totalorder %s495, 35
        %s497 = scalar_select %p496, %s495, 35
        %s498 = smul.addr %s497, 4
        %s499 = scalar_lea.vmem %s3, %s498
        %s500 = smul.u32 18, %s14
        %v502 = vld [vmem:[%s473] sm:$0xf]
        %v503 = vld [vmem:[%s473 + $0x4] sm:$0xf]
        %v504 = vld [vmem:[%s473 + $0x8] sm:$0xf]
        %v505 = vld [vmem:[%s473 + $0xc] sm:$0xf]
        %v506 = vld [vmem:[%s473 + $0x10] sm:$0xf]
        %v507 = vld [vmem:[%s473 + $0x14] sm:$0xf]
        %v508 = vld [vmem:[%s473 + $0x18] sm:$0xf]
        %v509 = vld [vmem:[%s473 + $0x1c] sm:$0xf]
        %v510 = vld [vmem:[%s473 + $0x20] sm:$0xf]
        %v511 = vld [vmem:[%s473 + $0x24] sm:$0xf]
        %v512 = vld [vmem:[%s473 + $0x28] sm:$0xf]
        %v513 = vld [vmem:[%s473 + $0x2c] sm:$0xf]
        %v514 = vld [vmem:[%s473 + $0x30] sm:$0xf]
        %v515 = vld [vmem:[%s473 + $0x34] sm:$0xf]
        %v516 = vld [vmem:[%s473 + $0x38] sm:$0xf]
        %v517 = vld [vmem:[%s473 + $0x3c] sm:$0xf]
        %v518 = vld [vmem:[%s473 + $0x40] sm:$0xf]
        %v519 = vld [vmem:[%s473 + $0x44] sm:$0xf]
        %v520 = vld [vmem:[%s473 + $0x48] sm:$0xf]
        %v521 = vld [vmem:[%s473 + $0x4c] sm:$0xf]
        %v522 = vld [vmem:[%s473 + $0x50] sm:$0xf]
        %v523 = vld [vmem:[%s473 + $0x54] sm:$0xf]
        %v524 = vld [vmem:[%s473 + $0x58] sm:$0xf]
        %v525 = vld [vmem:[%s473 + $0x5c] sm:$0xf]
        %v526 = vld [vmem:[%s473 + $0x60] sm:$0xf]
        %v527 = vld [vmem:[%s473 + $0x64] sm:$0xf]
        %v528 = vld [vmem:[%s473 + $0x68] sm:$0xf]
        %v529 = vld [vmem:[%s473 + $0x6c] sm:$0xf]
        %v530 = vld [vmem:[%s473 + $0x70] sm:$0xf]
        %v531 = vld [vmem:[%s473 + $0x74] sm:$0xf]
        %v532 = vld [vmem:[%s473 + $0x78] sm:$0xf]
        %v533 = vld [vmem:[%s473 + $0x7c] sm:$0xf]
        %v534 = vld [vmem:[%s473 + $0x80] sm:$0xf]
        %v535 = vld [vmem:[%s473 + $0x84] sm:$0xf]
        %v536 = vld [vmem:[%s473 + $0x88] sm:$0xf]
        %v537 = vld [vmem:[%s473 + $0x8c] sm:$0xf]
        %v538 = vld [vmem:[%s473 + $0x90] sm:$0xf]
        %v539 = vld [vmem:[%s473 + $0x94] sm:$0xf]
        %v540 = vld [vmem:[%s473 + $0x98] sm:$0xf]
        %v541 = vld [vmem:[%s473 + $0x9c] sm:$0xf]
        %v542 = vld [vmem:[%s473 + $0xa0] sm:$0xf]
        %v543 = vld [vmem:[%s473 + $0xa4] sm:$0xf]
        %v544 = vld [vmem:[%s473 + $0xa8] sm:$0xf]
        %v545 = vld [vmem:[%s473 + $0xac] sm:$0xf]
        %v546 = vld [vmem:[%s473 + $0xb0] sm:$0xf]
        %v547 = vld [vmem:[%s473 + $0xb4] sm:$0xf]
        %v548 = vld [vmem:[%s473 + $0xb8] sm:$0xf]
        %v549 = vld [vmem:[%s473 + $0xbc] sm:$0xf]
        %v550 = vld [vmem:[%s473 + $0xc0] sm:$0xf]
        %v551 = vld [vmem:[%s473 + $0xc4] sm:$0xf]
        %v552 = vld [vmem:[%s473 + $0xc8] sm:$0xf]
        %v553 = vld [vmem:[%s473 + $0xcc] sm:$0xf]
        %v554 = vld [vmem:[%s473 + $0xd0] sm:$0xf]
        %v555 = vld [vmem:[%s473 + $0xd4] sm:$0xf]
        %v556 = vld [vmem:[%s473 + $0xd8] sm:$0xf]
        %v557 = vld [vmem:[%s473 + $0xdc] sm:$0xf]
        %v558 = vld [vmem:[%s473 + $0xe0] sm:$0xf]
        %v559 = vld [vmem:[%s473 + $0xe4] sm:$0xf]
        %v560 = vld [vmem:[%s473 + $0xe8] sm:$0xf]
        %v561 = vld [vmem:[%s473 + $0xec] sm:$0xf]
        %v562 = vld [vmem:[%s473 + $0xf0] sm:$0xf]
        %v563 = vld [vmem:[%s473 + $0xf4] sm:$0xf]
        %v564 = vld [vmem:[%s473 + $0xf8] sm:$0xf]
        %v565 = vld [vmem:[%s473 + $0xfc] sm:$0xf]
        %v566 = vld [vmem:[%s473 + $0x100] sm:$0xf]
        %v567 = vld [vmem:[%s473 + $0x104] sm:$0xf]
        %v568 = vld [vmem:[%s473 + $0x108] sm:$0xf]
        %v569 = vld [vmem:[%s473 + $0x10c] sm:$0xf]
        %v570 = vld [vmem:[%s473 + $0x110] sm:$0xf]
        %v571 = vld [vmem:[%s473 + $0x114] sm:$0xf]
        %v572 = vld [vmem:[%s473 + $0x118] sm:$0xf]
        %v573 = vld [vmem:[%s473 + $0x11c] sm:$0xf]
        %v574 = vld [vmem:[%s1] sm:$0xf]
        %v575 = vld [vmem:[%s1 + $0x4] sm:$0xf]
        %v576 = vld [vmem:[%s1 + $0x8] sm:$0xf]
        %v577 = vld [vmem:[%s1 + $0xc] sm:$0xf]
        %v578 = vld [vmem:[%s1 + $0x10] sm:$0xf]
        %v579 = vld [vmem:[%s1 + $0x14] sm:$0xf]
        %v580 = vld [vmem:[%s1 + $0x18] sm:$0xf]
        %v581 = vld [vmem:[%s1 + $0x1c] sm:$0xf]
        %v582 = vld [vmem:[%s1 + $0x20] sm:$0xf]
        %v583 = vld [vmem:[%s1 + $0x24] sm:$0xf]
        %v584 = vld [vmem:[%s1 + $0x28] sm:$0xf]
        %v585 = vld [vmem:[%s1 + $0x2c] sm:$0xf]
        %v586 = vld [vmem:[%s1 + $0x30] sm:$0xf]
        %v587 = vld [vmem:[%s1 + $0x34] sm:$0xf]
        %v588 = vld [vmem:[%s1 + $0x38] sm:$0xf]
        %v589 = vld [vmem:[%s1 + $0x3c] sm:$0xf]
        %v662 = vunpack.c.l.b16 %v502
        %v663 = vunpack.c.l.b16 %v503
        %v664 = vunpack.c.l.b16 %v504
        %v665 = vunpack.c.l.b16 %v505
        %v666 = vunpack.c.l.b16 %v506
        %v667 = vunpack.c.l.b16 %v507
        %v668 = vunpack.c.l.b16 %v508
        %v669 = vunpack.c.l.b16 %v509
        %v670 = vunpack.c.l.b16 %v510
        %v671 = vunpack.c.l.b16 %v511
        %v672 = vunpack.c.l.b16 %v512
        %v673 = vunpack.c.l.b16 %v513
        %v674 = vunpack.c.l.b16 %v514
        %v675 = vunpack.c.l.b16 %v515
        %v676 = vunpack.c.l.b16 %v516
        %v677 = vunpack.c.l.b16 %v517
        %v678 = vunpack.c.l.b16 %v518
        %v679 = vunpack.c.l.b16 %v519
        %v680 = vunpack.c.l.b16 %v520
        %v681 = vunpack.c.l.b16 %v521
        %v682 = vunpack.c.l.b16 %v522
        %v683 = vunpack.c.l.b16 %v523
        %v684 = vunpack.c.l.b16 %v524
        %v685 = vunpack.c.l.b16 %v525
        %v686 = vunpack.c.l.b16 %v526
        %v687 = vunpack.c.l.b16 %v527
        %v688 = vunpack.c.l.b16 %v528
        %v689 = vunpack.c.l.b16 %v529
        %v690 = vunpack.c.l.b16 %v530
        %v691 = vunpack.c.l.b16 %v531
        %v692 = vunpack.c.l.b16 %v532
        %v693 = vunpack.c.l.b16 %v533
        %v694 = vunpack.c.l.b16 %v534
        %v695 = vunpack.c.l.b16 %v535
        %v696 = vunpack.c.l.b16 %v536
        %v697 = vunpack.c.l.b16 %v537
        %v698 = vunpack.c.l.b16 %v538
        %v699 = vunpack.c.l.b16 %v539
        %v700 = vunpack.c.l.b16 %v540
        %v701 = vunpack.c.l.b16 %v541
        %v702 = vunpack.c.l.b16 %v542
        %v703 = vunpack.c.l.b16 %v543
        %v704 = vunpack.c.l.b16 %v544
        %v705 = vunpack.c.l.b16 %v545
        %v706 = vunpack.c.l.b16 %v546
        %v707 = vunpack.c.l.b16 %v547
        %v708 = vunpack.c.l.b16 %v548
        %v709 = vunpack.c.l.b16 %v549
        %v710 = vunpack.c.l.b16 %v550
        %v711 = vunpack.c.l.b16 %v551
        %v712 = vunpack.c.l.b16 %v552
        %v713 = vunpack.c.l.b16 %v553
        %v714 = vunpack.c.l.b16 %v554
        %v715 = vunpack.c.l.b16 %v555
        %v716 = vunpack.c.l.b16 %v556
        %v717 = vunpack.c.l.b16 %v557
        %v718 = vunpack.c.l.b16 %v558
        %v719 = vunpack.c.l.b16 %v559
        %v720 = vunpack.c.l.b16 %v560
        %v721 = vunpack.c.l.b16 %v561
        %v722 = vunpack.c.l.b16 %v562
        %v723 = vunpack.c.l.b16 %v563
        %v724 = vunpack.c.l.b16 %v564
        %v725 = vunpack.c.l.b16 %v565
        %v726 = vunpack.c.l.b16 %v566
        %v727 = vunpack.c.l.b16 %v567
        %v728 = vunpack.c.l.b16 %v568
        %v729 = vunpack.c.l.b16 %v569
        %v730 = vunpack.c.l.b16 %v570
        %v731 = vunpack.c.l.b16 %v571
        %v732 = vunpack.c.l.b16 %v572
        %v733 = vunpack.c.l.b16 %v573
        %v734 = vpack.c.b16 %v663, %v662
        %v735 = vpack.c.b16 %v665, %v664
        %v736 = vpack.c.b16 %v667, %v666
        %v737 = vpack.c.b16 %v669, %v668
        %v738 = vpack.c.b16 %v671, %v670
        %v739 = vpack.c.b16 %v673, %v672
        %v740 = vpack.c.b16 %v675, %v674
        %v741 = vpack.c.b16 %v677, %v676
        %v742 = vpack.c.b16 %v679, %v678
        %v743 = vpack.c.b16 %v681, %v680
        %v744 = vpack.c.b16 %v683, %v682
        %v745 = vpack.c.b16 %v685, %v684
        %v746 = vpack.c.b16 %v687, %v686
        %v747 = vpack.c.b16 %v689, %v688
        %v748 = vpack.c.b16 %v691, %v690
        %v749 = vpack.c.b16 %v693, %v692
        %v750 = vpack.c.b16 %v695, %v694
        %v751 = vpack.c.b16 %v697, %v696
        %v752 = vpack.c.b16 %v699, %v698
        %v753 = vpack.c.b16 %v701, %v700
        %v754 = vpack.c.b16 %v703, %v702
        %v755 = vpack.c.b16 %v705, %v704
        %v756 = vpack.c.b16 %v707, %v706
        %v757 = vpack.c.b16 %v709, %v708
        %v758 = vpack.c.b16 %v711, %v710
        %v759 = vpack.c.b16 %v713, %v712
        %v760 = vpack.c.b16 %v715, %v714
        %v761 = vpack.c.b16 %v717, %v716
        %v762 = vpack.c.b16 %v719, %v718
        %v763 = vpack.c.b16 %v721, %v720
        %v764 = vpack.c.b16 %v723, %v722
        %v765 = vpack.c.b16 %v725, %v724
        %v766 = vpack.c.b16 %v727, %v726
        %v767 = vpack.c.b16 %v729, %v728
        %v768 = vpack.c.b16 %v731, %v730
        %v769 = vpack.c.b16 %v733, %v732
        %v822 = vunpack.c.l.b16 %v574
        %v823 = vunpack.c.l.b16 %v575
        %v824 = vunpack.c.l.b16 %v576
        %v825 = vunpack.c.l.b16 %v577
        %v826 = vunpack.c.l.b16 %v578
        %v827 = vunpack.c.l.b16 %v579
        %v828 = vunpack.c.l.b16 %v580
        %v829 = vunpack.c.l.b16 %v581
        %v830 = vunpack.c.l.b16 %v582
        %v831 = vunpack.c.l.b16 %v583
        %v832 = vunpack.c.l.b16 %v584
        %v833 = vunpack.c.l.b16 %v585
        %v834 = vunpack.c.l.b16 %v586
        %v835 = vunpack.c.l.b16 %v587
        %v836 = vunpack.c.l.b16 %v588
        %v837 = vunpack.c.l.b16 %v589
        %v838 = vpack.c.b16 %v823, %v822
        %v839 = vpack.c.b16 %v825, %v824
        %v840 = vpack.c.b16 %v827, %v826
        %v841 = vpack.c.b16 %v829, %v828
        %v842 = vpack.c.b16 %v831, %v830
        %v843 = vpack.c.b16 %v833, %v832
        %v844 = vpack.c.b16 %v835, %v834
        %v845 = vpack.c.b16 %v837, %v836
        %854 = vmatprep.subr.bf16.mxu0 0
        %855 = vmatpush1.bf16.msra.mxu0 %v845
        %856 = vmatprep.subr.bf16.mxu0 0
        %857 = vmatpush1.bf16.msra.mxu0 %v844
        %858 = vmatprep.subr.bf16.mxu0 0
        %859 = vmatpush1.bf16.msra.mxu0 %v843
        %860 = vmatprep.subr.bf16.mxu0 0
        %861 = vmatpush1.bf16.msra.mxu0 %v842
        %862 = vmatprep.subr.bf16.mxu0 0
        %863 = vmatpush1.bf16.msra.mxu0 %v841
        %864 = vmatprep.subr.bf16.mxu0 0
        %865 = vmatpush1.bf16.msra.mxu0 %v840
        %866 = vmatprep.subr.bf16.mxu0 0
        %867 = vmatpush1.bf16.msra.mxu0 %v839
        %868 = vmatprep.subr.bf16.mxu0 0
        %869 = vmatpush1.bf16.msra.mxu0 %v838
        %870 = vmatprep.subr.bf16.mxu0 0
        %871 = vmatpush2.bf16.msra.mxu0 0
        %872 = vmatprep.subr.bf16.mxu0 0
        %873 = vmatpush2.bf16.msra.mxu0 0
        %874 = vmatprep.subr.bf16.mxu0 0
        %875 = vmatpush2.bf16.msra.mxu0 0
        %876 = vmatprep.subr.bf16.mxu0 0
        %877 = vmatpush2.bf16.msra.mxu0 0
        %878 = vmatprep.subr.bf16.mxu0 0
        %879 = vmatpush2.bf16.msra.mxu0 0
        %880 = vmatprep.subr.bf16.mxu0 0
        %881 = vmatpush2.bf16.msra.mxu0 0
        %882 = vmatprep.subr.bf16.mxu0 0
        %883 = vmatpush2.bf16.msra.mxu0 0
        %884 = vmatprep.subr.bf16.mxu0 0
        %885 = vmatpush2.bf16.msra.mxu0 0
        %886 = vmatprep.mubr.bf16.mxu0 0
        %887 = vmatmul.mubr.bf16.gmra.mxu0 %v734
        %v888 = vpop.f32.mrf.mxu0
        %v889 = vadd.f32 0.0, %v888
        %v890 = vpop.f32.mrf.mxu0
        %v891 = vpop.f32.mrf.mxu0
        %v892 = vadd.f32 0.0, %v891
        %v893 = vpop.f32.mrf.mxu0
        %894 = vmatprep.mubr.bf16.mxu0 0
        %895 = vmatmul.mubr.bf16.gmra.mxu0 %v735
        %v896 = vpop.f32.mrf.mxu0
        %v897 = vadd.f32 0.0, %v896
        %v898 = vpop.f32.mrf.mxu0
        %v899 = vpop.f32.mrf.mxu0
        %v900 = vadd.f32 0.0, %v899
        %v901 = vpop.f32.mrf.mxu0
        %902 = vmatprep.mubr.bf16.mxu0 0
        %903 = vmatmul.mubr.bf16.gmra.mxu0 %v736
        %v904 = vpop.f32.mrf.mxu0
        %v905 = vadd.f32 0.0, %v904
        %v906 = vpop.f32.mrf.mxu0
        %v907 = vpop.f32.mrf.mxu0
        %v908 = vadd.f32 0.0, %v907
        %v909 = vpop.f32.mrf.mxu0
        %910 = vmatprep.mubr.bf16.mxu0 0
        %911 = vmatmul.mubr.bf16.gmra.mxu0 %v737
        %v912 = vpop.f32.mrf.mxu0
        %v913 = vadd.f32 0.0, %v912
        %v914 = vpop.f32.mrf.mxu0
        %v915 = vpop.f32.mrf.mxu0
        %v916 = vadd.f32 0.0, %v915
        %v917 = vpop.f32.mrf.mxu0
        %918 = vmatprep.mubr.bf16.mxu0 0
        %919 = vmatmul.mubr.bf16.gmra.mxu0 %v738
        %v920 = vpop.f32.mrf.mxu0
        %v921 = vadd.f32 0.0, %v920
        %v922 = vpop.f32.mrf.mxu0
        %v923 = vpop.f32.mrf.mxu0
        %v924 = vadd.f32 0.0, %v923
        %v925 = vpop.f32.mrf.mxu0
        %926 = vmatprep.mubr.bf16.mxu0 0
        %927 = vmatmul.mubr.bf16.gmra.mxu0 %v739
        %v928 = vpop.f32.mrf.mxu0
        %v929 = vadd.f32 0.0, %v928
        %v930 = vpop.f32.mrf.mxu0
        %v931 = vpop.f32.mrf.mxu0
        %v932 = vadd.f32 0.0, %v931
        %v933 = vpop.f32.mrf.mxu0
        %934 = vmatprep.mubr.bf16.mxu0 0
        %935 = vmatmul.mubr.bf16.gmra.mxu0 %v740
        %v936 = vpop.f32.mrf.mxu0
        %v937 = vadd.f32 0.0, %v936
        %v938 = vpop.f32.mrf.mxu0
        %v939 = vpop.f32.mrf.mxu0
        %v940 = vadd.f32 0.0, %v939
        %v941 = vpop.f32.mrf.mxu0
        %942 = vmatprep.mubr.bf16.mxu0 0
        %943 = vmatmul.mubr.bf16.gmra.mxu0 %v741
        %v944 = vpop.f32.mrf.mxu0
        %v945 = vadd.f32 0.0, %v944
        %v946 = vpop.f32.mrf.mxu0
        %v947 = vpop.f32.mrf.mxu0
        %v948 = vadd.f32 0.0, %v947
        %v949 = vpop.f32.mrf.mxu0
        %950 = vmatprep.mubr.bf16.mxu0 0
        %951 = vmatmul.mubr.bf16.gmra.mxu0 %v742
        %v952 = vpop.f32.mrf.mxu0
        %v953 = vadd.f32 0.0, %v952
        %v954 = vpop.f32.mrf.mxu0
        %v955 = vpop.f32.mrf.mxu0
        %v956 = vadd.f32 0.0, %v955
        %v957 = vpop.f32.mrf.mxu0
        %958 = vmatprep.mubr.bf16.mxu0 0
        %959 = vmatmul.mubr.bf16.gmra.mxu0 %v743
        %v960 = vpop.f32.mrf.mxu0
        %v961 = vadd.f32 0.0, %v960
        %v962 = vpop.f32.mrf.mxu0
        %v963 = vpop.f32.mrf.mxu0
        %v964 = vadd.f32 0.0, %v963
        %v965 = vpop.f32.mrf.mxu0
        %966 = vmatprep.mubr.bf16.mxu0 0
        %967 = vmatmul.mubr.bf16.gmra.mxu0 %v744
        %v968 = vpop.f32.mrf.mxu0
        %v969 = vadd.f32 0.0, %v968
        %v970 = vpop.f32.mrf.mxu0
        %v971 = vpop.f32.mrf.mxu0
        %v972 = vadd.f32 0.0, %v971
        %v973 = vpop.f32.mrf.mxu0
        %974 = vmatprep.mubr.bf16.mxu0 0
        %975 = vmatmul.mubr.bf16.gmra.mxu0 %v745
        %v976 = vpop.f32.mrf.mxu0
        %v977 = vadd.f32 0.0, %v976
        %v978 = vpop.f32.mrf.mxu0
        %v979 = vpop.f32.mrf.mxu0
        %v980 = vadd.f32 0.0, %v979
        %v981 = vpop.f32.mrf.mxu0
        %982 = vmatprep.mubr.bf16.mxu0 0
        %983 = vmatmul.mubr.bf16.gmra.mxu0 %v746
        %v984 = vpop.f32.mrf.mxu0
        %v985 = vadd.f32 0.0, %v984
        %v986 = vpop.f32.mrf.mxu0
        %v987 = vpop.f32.mrf.mxu0
        %v988 = vadd.f32 0.0, %v987
        %v989 = vpop.f32.mrf.mxu0
        %990 = vmatprep.mubr.bf16.mxu0 0
        %991 = vmatmul.mubr.bf16.gmra.mxu0 %v747
        %v992 = vpop.f32.mrf.mxu0
        %v993 = vadd.f32 0.0, %v992
        %v994 = vpop.f32.mrf.mxu0
        %v995 = vpop.f32.mrf.mxu0
        %v996 = vadd.f32 0.0, %v995
        %v997 = vpop.f32.mrf.mxu0
        %998 = vmatprep.mubr.bf16.mxu0 0
        %999 = vmatmul.mubr.bf16.gmra.mxu0 %v748
        %v1000 = vpop.f32.mrf.mxu0
        %v1001 = vadd.f32 0.0, %v1000
        %v1002 = vpop.f32.mrf.mxu0
        %v1003 = vpop.f32.mrf.mxu0
        %v1004 = vadd.f32 0.0, %v1003
        %v1005 = vpop.f32.mrf.mxu0
        %1006 = vmatprep.mubr.bf16.mxu0 0
        %1007 = vmatmul.mubr.bf16.gmra.mxu0 %v749
        %v1008 = vpop.f32.mrf.mxu0
        %v1009 = vadd.f32 0.0, %v1008
        %v1010 = vpop.f32.mrf.mxu0
        %v1011 = vpop.f32.mrf.mxu0
        %v1012 = vadd.f32 0.0, %v1011
        %v1013 = vpop.f32.mrf.mxu0
        %1014 = vmatprep.mubr.bf16.mxu0 0
        %1015 = vmatmul.mubr.bf16.gmra.mxu0 %v750
        %v1016 = vpop.f32.mrf.mxu0
        %v1017 = vadd.f32 0.0, %v1016
        %v1018 = vpop.f32.mrf.mxu0
        %v1019 = vpop.f32.mrf.mxu0
        %v1020 = vadd.f32 0.0, %v1019
        %v1021 = vpop.f32.mrf.mxu0
        %1022 = vmatprep.mubr.bf16.mxu0 0
        %1023 = vmatmul.mubr.bf16.gmra.mxu0 %v751
        %v1024 = vpop.f32.mrf.mxu0
        %v1025 = vadd.f32 0.0, %v1024
        %v1026 = vpop.f32.mrf.mxu0
        %v1027 = vpop.f32.mrf.mxu0
        %v1028 = vadd.f32 0.0, %v1027
        %v1029 = vpop.f32.mrf.mxu0
        %1030 = vmatprep.mubr.bf16.mxu0 0
        %1031 = vmatmul.mubr.bf16.gmra.mxu0 %v752
        %v1032 = vpop.f32.mrf.mxu0
        %v1033 = vadd.f32 0.0, %v1032
        %v1034 = vpop.f32.mrf.mxu0
        %v1035 = vpop.f32.mrf.mxu0
        %v1036 = vadd.f32 0.0, %v1035
        %v1037 = vpop.f32.mrf.mxu0
        %1038 = vmatprep.mubr.bf16.mxu0 0
        %1039 = vmatmul.mubr.bf16.gmra.mxu0 %v753
        %v1040 = vpop.f32.mrf.mxu0
        %v1041 = vadd.f32 0.0, %v1040
        %v1042 = vpop.f32.mrf.mxu0
        %v1043 = vpop.f32.mrf.mxu0
        %v1044 = vadd.f32 0.0, %v1043
        %v1045 = vpop.f32.mrf.mxu0
        %1046 = vmatprep.mubr.bf16.mxu0 0
        %1047 = vmatmul.mubr.bf16.gmra.mxu0 %v754
        %v1048 = vpop.f32.mrf.mxu0
        %v1049 = vadd.f32 0.0, %v1048
        %v1050 = vpop.f32.mrf.mxu0
        %v1051 = vpop.f32.mrf.mxu0
        %v1052 = vadd.f32 0.0, %v1051
        %v1053 = vpop.f32.mrf.mxu0
        %1054 = vmatprep.mubr.bf16.mxu0 0
        %1055 = vmatmul.mubr.bf16.gmra.mxu0 %v755
        %v1056 = vpop.f32.mrf.mxu0
        %v1057 = vadd.f32 0.0, %v1056
        %v1058 = vpop.f32.mrf.mxu0
        %v1059 = vpop.f32.mrf.mxu0
        %v1060 = vadd.f32 0.0, %v1059
        %v1061 = vpop.f32.mrf.mxu0
        %1062 = vmatprep.mubr.bf16.mxu0 0
        %1063 = vmatmul.mubr.bf16.gmra.mxu0 %v756
        %v1064 = vpop.f32.mrf.mxu0
        %v1065 = vadd.f32 0.0, %v1064
        %v1066 = vpop.f32.mrf.mxu0
        %v1067 = vpop.f32.mrf.mxu0
        %v1068 = vadd.f32 0.0, %v1067
        %v1069 = vpop.f32.mrf.mxu0
        %1070 = vmatprep.mubr.bf16.mxu0 0
        %1071 = vmatmul.mubr.bf16.gmra.mxu0 %v757
        %v1072 = vpop.f32.mrf.mxu0
        %v1073 = vadd.f32 0.0, %v1072
        %v1074 = vpop.f32.mrf.mxu0
        %v1075 = vpop.f32.mrf.mxu0
        %v1076 = vadd.f32 0.0, %v1075
        %v1077 = vpop.f32.mrf.mxu0
        %1078 = vmatprep.mubr.bf16.mxu0 0
        %1079 = vmatmul.mubr.bf16.gmra.mxu0 %v758
        %v1080 = vpop.f32.mrf.mxu0
        %v1081 = vadd.f32 0.0, %v1080
        %v1082 = vpop.f32.mrf.mxu0
        %v1083 = vpop.f32.mrf.mxu0
        %v1084 = vadd.f32 0.0, %v1083
        %v1085 = vpop.f32.mrf.mxu0
        %1086 = vmatprep.mubr.bf16.mxu0 0
        %1087 = vmatmul.mubr.bf16.gmra.mxu0 %v759
        %v1088 = vpop.f32.mrf.mxu0
        %v1089 = vadd.f32 0.0, %v1088
        %v1090 = vpop.f32.mrf.mxu0
        %v1091 = vpop.f32.mrf.mxu0
        %v1092 = vadd.f32 0.0, %v1091
        %v1093 = vpop.f32.mrf.mxu0
        %1094 = vmatprep.mubr.bf16.mxu0 0
        %1095 = vmatmul.mubr.bf16.gmra.mxu0 %v760
        %v1096 = vpop.f32.mrf.mxu0
        %v1097 = vadd.f32 0.0, %v1096
        %v1098 = vpop.f32.mrf.mxu0
        %v1099 = vpop.f32.mrf.mxu0
        %v1100 = vadd.f32 0.0, %v1099
        %v1101 = vpop.f32.mrf.mxu0
        %1102 = vmatprep.mubr.bf16.mxu0 0
        %1103 = vmatmul.mubr.bf16.gmra.mxu0 %v761
        %v1104 = vpop.f32.mrf.mxu0
        %v1105 = vadd.f32 0.0, %v1104
        %v1106 = vpop.f32.mrf.mxu0
        %v1107 = vpop.f32.mrf.mxu0
        %v1108 = vadd.f32 0.0, %v1107
        %v1109 = vpop.f32.mrf.mxu0
        %1110 = vmatprep.mubr.bf16.mxu0 0
        %1111 = vmatmul.mubr.bf16.gmra.mxu0 %v762
        %v1112 = vpop.f32.mrf.mxu0
        %v1113 = vadd.f32 0.0, %v1112
        %v1114 = vpop.f32.mrf.mxu0
        %v1115 = vpop.f32.mrf.mxu0
        %v1116 = vadd.f32 0.0, %v1115
        %v1117 = vpop.f32.mrf.mxu0
        %1118 = vmatprep.mubr.bf16.mxu0 0
        %1119 = vmatmul.mubr.bf16.gmra.mxu0 %v763
        %v1120 = vpop.f32.mrf.mxu0
        %v1121 = vadd.f32 0.0, %v1120
        %v1122 = vpop.f32.mrf.mxu0
        %v1123 = vpop.f32.mrf.mxu0
        %v1124 = vadd.f32 0.0, %v1123
        %v1125 = vpop.f32.mrf.mxu0
        %1126 = vmatprep.mubr.bf16.mxu0 0
        %1127 = vmatmul.mubr.bf16.gmra.mxu0 %v764
        %v1128 = vpop.f32.mrf.mxu0
        %v1129 = vadd.f32 0.0, %v1128
        %v1130 = vpop.f32.mrf.mxu0
        %v1131 = vpop.f32.mrf.mxu0
        %v1132 = vadd.f32 0.0, %v1131
        %v1133 = vpop.f32.mrf.mxu0
        %1134 = vmatprep.mubr.bf16.mxu0 0
        %1135 = vmatmul.mubr.bf16.gmra.mxu0 %v765
        %v1136 = vpop.f32.mrf.mxu0
        %v1137 = vadd.f32 0.0, %v1136
        %v1138 = vpop.f32.mrf.mxu0
        %v1139 = vpop.f32.mrf.mxu0
        %v1140 = vadd.f32 0.0, %v1139
        %v1141 = vpop.f32.mrf.mxu0
        %1142 = vmatprep.mubr.bf16.mxu0 0
        %1143 = vmatmul.mubr.bf16.gmra.mxu0 %v766
        %v1144 = vpop.f32.mrf.mxu0
        %v1145 = vadd.f32 0.0, %v1144
        %v1146 = vpop.f32.mrf.mxu0
        %v1147 = vpop.f32.mrf.mxu0
        %v1148 = vadd.f32 0.0, %v1147
        %v1149 = vpop.f32.mrf.mxu0
        %1150 = vmatprep.mubr.bf16.mxu0 0
        %1151 = vmatmul.mubr.bf16.gmra.mxu0 %v767
        %v1152 = vpop.f32.mrf.mxu0
        %v1153 = vadd.f32 0.0, %v1152
        %v1154 = vpop.f32.mrf.mxu0
        %v1155 = vpop.f32.mrf.mxu0
        %v1156 = vadd.f32 0.0, %v1155
        %v1157 = vpop.f32.mrf.mxu0
        %1158 = vmatprep.mubr.bf16.mxu0 0
        %1159 = vmatmul.mubr.bf16.gmra.mxu0 %v768
        %v1160 = vpop.f32.mrf.mxu0
        %v1161 = vadd.f32 0.0, %v1160
        %v1162 = vpop.f32.mrf.mxu0
        %v1163 = vpop.f32.mrf.mxu0
        %v1164 = vadd.f32 0.0, %v1163
        %v1165 = vpop.f32.mrf.mxu0
        %1166 = vmatprep.mubr.bf16.mxu0 0
        %1167 = vmatmul.mubr.bf16.gmra.mxu0 %v769
        %v1168 = vpop.f32.mrf.mxu0
        %v1169 = vadd.f32 0.0, %v1168
        %v1170 = vpop.f32.mrf.mxu0
        %v1171 = vpop.f32.mrf.mxu0
        %v1172 = vadd.f32 0.0, %v1171
        %v1173 = vpop.f32.mrf.mxu0
        %1174 = vdwg.mxu0
        %v1175 = vmax.f32 %v889, %v961
        %v1176 = vmax.f32 %v1175, %v1033
        %v1177 = vmax.f32 %v1176, %v1105
        %v1178 = vmax.f32 %v892, %v964
        %v1179 = vmax.f32 %v1178, %v1036
        %v1180 = vmax.f32 %v1179, %v1108
        %v1181 = vmax.f32 %v897, %v969
        %v1182 = vmax.f32 %v1181, %v1041
        %v1183 = vmax.f32 %v1182, %v1113
        %v1184 = vmax.f32 %v900, %v972
        %v1185 = vmax.f32 %v1184, %v1044
        %v1186 = vmax.f32 %v1185, %v1116
        %v1187 = vmax.f32 %v905, %v977
        %v1188 = vmax.f32 %v1187, %v1049
        %v1189 = vmax.f32 %v1188, %v1121
        %v1190 = vmax.f32 %v908, %v980
        %v1191 = vmax.f32 %v1190, %v1052
        %v1192 = vmax.f32 %v1191, %v1124
        %v1193 = vmax.f32 %v913, %v985
        %v1194 = vmax.f32 %v1193, %v1057
        %v1195 = vmax.f32 %v1194, %v1129
        %v1196 = vmax.f32 %v916, %v988
        %v1197 = vmax.f32 %v1196, %v1060
        %v1198 = vmax.f32 %v1197, %v1132
        %v1199 = vmax.f32 %v921, %v993
        %v1200 = vmax.f32 %v1199, %v1065
        %v1201 = vmax.f32 %v1200, %v1137
        %v1202 = vmax.f32 %v924, %v996
        %v1203 = vmax.f32 %v1202, %v1068
        %v1204 = vmax.f32 %v1203, %v1140
        %v1205 = vmax.f32 %v929, %v1001
        %v1206 = vmax.f32 %v1205, %v1073
        %v1207 = vmax.f32 %v1206, %v1145
        %v1208 = vmax.f32 %v932, %v1004
        %v1209 = vmax.f32 %v1208, %v1076
        %v1210 = vmax.f32 %v1209, %v1148
        %v1211 = vmax.f32 %v937, %v1009
        %v1212 = vmax.f32 %v1211, %v1081
        %v1213 = vmax.f32 %v1212, %v1153
        %v1214 = vmax.f32 %v940, %v1012
        %v1215 = vmax.f32 %v1214, %v1084
        %v1216 = vmax.f32 %v1215, %v1156
        %v1217 = vmax.f32 %v945, %v1017
        %v1218 = vmax.f32 %v1217, %v1089
        %v1219 = vmax.f32 %v1218, %v1161
        %v1220 = vmax.f32 %v948, %v1020
        %v1221 = vmax.f32 %v1220, %v1092
        %v1222 = vmax.f32 %v1221, %v1164
        %v1223 = vmax.f32 %v953, %v1025
        %v1224 = vmax.f32 %v1223, %v1097
        %v1225 = vmax.f32 %v1224, %v1169
        %v1226 = vmax.f32 %v956, %v1028
        %v1227 = vmax.f32 %v1226, %v1100
        %v1228 = vmax.f32 %v1227, %v1172
        %v1229 = vld [vmem:[%s2] sm:$0x1]
        %v1231 = vlaneseq
        %v1232 = vshrl.u32 %v1231, 7
        %v1233 = vsub.s32 0, %v1232
        %v1234 = vrot.slane %v1229, %v1233
        %v1236 = vadd.f32 %v1177, %v1234
        %v1237 = vadd.f32 %v1180, %v1234
        %v1238 = vadd.f32 %v1183, %v1234
        %v1239 = vadd.f32 %v1186, %v1234
        %v1240 = vadd.f32 %v1189, %v1234
        %v1241 = vadd.f32 %v1192, %v1234
        %v1242 = vadd.f32 %v1195, %v1234
        %v1243 = vadd.f32 %v1198, %v1234
        %v1244 = vadd.f32 %v1201, %v1234
        %v1245 = vadd.f32 %v1204, %v1234
        %v1246 = vadd.f32 %v1207, %v1234
        %v1247 = vadd.f32 %v1210, %v1234
        %v1248 = vadd.f32 %v1213, %v1234
        %v1249 = vadd.f32 %v1216, %v1234
        %v1250 = vadd.f32 %v1219, %v1234
        %v1251 = vadd.f32 %v1222, %v1234
        %v1252 = vadd.f32 %v1225, %v1234
        %v1253 = vadd.f32 %v1228, %v1234
        %v1254 = vmax.f32 %v1236, 0.0
        %v1255 = vmax.f32 %v1237, 0.0
        %v1256 = vmax.f32 %v1238, 0.0
        %v1257 = vmax.f32 %v1239, 0.0
        %v1258 = vmax.f32 %v1240, 0.0
        %v1259 = vmax.f32 %v1241, 0.0
        %v1260 = vmax.f32 %v1242, 0.0
        %v1261 = vmax.f32 %v1243, 0.0
        %v1262 = vmax.f32 %v1244, 0.0
        %v1263 = vmax.f32 %v1245, 0.0
        %v1264 = vmax.f32 %v1246, 0.0
        %v1265 = vmax.f32 %v1247, 0.0
        %v1266 = vmax.f32 %v1248, 0.0
        %v1267 = vmax.f32 %v1249, 0.0
        %v1268 = vmax.f32 %v1250, 0.0
        %v1269 = vmax.f32 %v1251, 0.0
        %v1270 = vmax.f32 %v1252, 0.0
        %v1271 = vmax.f32 %v1253, 0.0
        %v1272 = vpack.c.bf16 %v1255, %v1254
        %v1273 = vpack.c.bf16 %v1257, %v1256
        %v1274 = vpack.c.bf16 %v1259, %v1258
        %v1275 = vpack.c.bf16 %v1261, %v1260
        %v1276 = vpack.c.bf16 %v1263, %v1262
        %v1277 = vpack.c.bf16 %v1265, %v1264
        %v1278 = vpack.c.bf16 %v1267, %v1266
        %v1279 = vpack.c.bf16 %v1269, %v1268
        %v1280 = vpack.c.bf16 %v1271, %v1270
        %v1290 = vunpack.c.l.b16 %v1272
        %v1291 = vunpack.c.h.b16 %v1272
        %v1292 = vunpack.c.l.b16 %v1273
        %v1293 = vunpack.c.h.b16 %v1273
        %v1294 = vunpack.c.l.b16 %v1274
        %v1295 = vunpack.c.h.b16 %v1274
        %v1296 = vunpack.c.l.b16 %v1275
        %v1297 = vunpack.c.h.b16 %v1275
        %v1298 = vunpack.c.l.b16 %v1276
        %v1299 = vunpack.c.h.b16 %v1276
        %v1300 = vunpack.c.l.b16 %v1277
        %v1301 = vunpack.c.h.b16 %v1277
        %v1302 = vunpack.c.l.b16 %v1278
        %v1303 = vunpack.c.h.b16 %v1278
        %v1304 = vunpack.c.l.b16 %v1279
        %v1305 = vunpack.c.h.b16 %v1279
        %v1306 = vunpack.c.l.b16 %v1280
        %v1307 = vunpack.c.h.b16 %v1280
        %v1308 = vpack.c.b16 %v1290, %v1290
        %v1309 = vpack.c.b16 %v1291, %v1291
        %v1310 = vpack.c.b16 %v1292, %v1292
        %v1311 = vpack.c.b16 %v1293, %v1293
        %v1312 = vpack.c.b16 %v1294, %v1294
        %v1313 = vpack.c.b16 %v1295, %v1295
        %v1314 = vpack.c.b16 %v1296, %v1296
        %v1315 = vpack.c.b16 %v1297, %v1297
        %v1316 = vpack.c.b16 %v1298, %v1298
        %v1317 = vpack.c.b16 %v1299, %v1299
        %v1318 = vpack.c.b16 %v1300, %v1300
        %v1319 = vpack.c.b16 %v1301, %v1301
        %v1320 = vpack.c.b16 %v1302, %v1302
        %v1321 = vpack.c.b16 %v1303, %v1303
        %v1322 = vpack.c.b16 %v1304, %v1304
        %v1323 = vpack.c.b16 %v1305, %v1305
        %v1324 = vpack.c.b16 %v1306, %v1306
        %v1325 = vpack.c.b16 %v1307, %v1307
        %1344 = vst [vmem:[%s499] sm:$0xf] %v1308
        %1345 = vst [vmem:[%s499 + $0x4] sm:$0xf] %v1309
        %1346 = vst [vmem:[%s499 + $0x8] sm:$0xf] %v1310
        %1347 = vst [vmem:[%s499 + $0xc] sm:$0xf] %v1311
        %1348 = vst [vmem:[%s499 + $0x10] sm:$0xf] %v1312
        %1349 = vst [vmem:[%s499 + $0x14] sm:$0xf] %v1313
        %1350 = vst [vmem:[%s499 + $0x18] sm:$0xf] %v1314
        %1351 = vst [vmem:[%s499 + $0x1c] sm:$0xf] %v1315
        %1352 = vst [vmem:[%s499 + $0x20] sm:$0xf] %v1316
        %1353 = vst [vmem:[%s499 + $0x24] sm:$0xf] %v1317
        %1354 = vst [vmem:[%s499 + $0x28] sm:$0xf] %v1318
        %1355 = vst [vmem:[%s499 + $0x2c] sm:$0xf] %v1319
        %1356 = vst [vmem:[%s499 + $0x30] sm:$0xf] %v1320
        %1357 = vst [vmem:[%s499 + $0x34] sm:$0xf] %v1321
        %1358 = vst [vmem:[%s499 + $0x38] sm:$0xf] %v1322
        %1359 = vst [vmem:[%s499 + $0x3c] sm:$0xf] %v1323
        %1360 = vst [vmem:[%s499 + $0x40] sm:$0xf] %v1324
        %1361 = vst [vmem:[%s499 + $0x44] sm:$0xf] %v1325
        %s1362 = smul.u32 18, %s14
        %p1363 = scmp.lt.s32.totalorder %s1362, 35
        %s1364 = scalar_select %p1363, %s1362, 35
        %s1365 = smul.addr %s1364, 4
        %s1366 = scalar_lea.vmem %s3, %s1365
        // Predicated region
        $region74: #{lenet_forward.3} parent=68 // pred_check
          %p1367 = pneg %p100
        $region75: #{lenet_forward.3} parent=68 // pred_check_branch
          %1369 = sbr.rel (%p1367) target = $region77
        $region76: #{lenet_forward.3} parent=68 // pred_region
          %s1370 = smul.u32 18, %s14
        $region77: #{lenet_forward.3} parent=68 // pred_fallthru
          _
      $region69: #{lenet_forward.3} parent=5 // pred_fallthru
        _
      %p1371 = scmp.le.s32.totalorder 2, %s9
      // Predicated region
      $region78: #{lenet_forward.3} parent=5 // pred_check
        %p1372 = pneg %p1371
      $region79: #{lenet_forward.3} parent=5 // pred_check_branch
        %1374 = sbr.rel (%p1372) target = $region81
      $region80: #{lenet_forward.3} parent=5 // pred_region
        %s1375 = ssub.s32 %s9, 2
        // Predicated region
        $region82: #{lenet_forward.3} parent=80 // pred_check
          %p1376 = pneg %p106
        $region83: #{lenet_forward.3} parent=80 // pred_check_branch
          %1378 = sbr.rel (%p1376) target = $region85
        $region84: #{lenet_forward.3} parent=80 // pred_region
          %s1379 = smul.u32 18, %s15
          %p1380 = scmp.lt.s32.totalorder %s1379, 35
          %s1381 = scalar_select %p1380, %s1379, 35
          %s1382 = smul.addr %s1381, 4
          %s1383 = scalar_lea.vmem %s3, %s1382
        $region85: #{lenet_forward.3} parent=80 // pred_fallthru
          _
      $region81: #{lenet_forward.3} parent=5 // pred_fallthru
        _
    $region6: #{lenet_forward.3} parent=1 // loop_footer
      %s13 = sadd.s32 1, %s9
    $region7: #{lenet_forward.3} parent=1 // loop_footer_branch
      %8 = sbr.rel target = $region3
    $region8: #{lenet_forward.3} parent=1 // loop_exit
      _

// kernel: lenet_forward.4
$region0: #{lenet_forward.4}
  #allocation0 [shape = 'u32[]', space=smem, size = 0x4, offset = 0x4, fixed_abs, tag = 'smem constant byte address 0x4 - core index']
  #allocation1 [shape = 'u32[144,128]{1,0:T(1,128)}', space=vmem, size = 0x12000, scoped, tag = 'internal scratch']
  %s0 = inlined_call_operand.vmem [shape: bf16[4,32,256], index: 0, kind: input, shape index: {}]
  %s1 = inlined_call_operand.vmem [shape: bf16[256,128], index: 1, kind: input, shape index: {}]
  %s2 = inlined_call_operand.vmem [shape: f32[1,128], index: 2, kind: input, shape index: {}]
  %s3 = inlined_call_operand.vmem [shape: bf16[32,128], index: 3, kind: output, shape index: {}]
  %s4 = sld [smem:[#allocation0]]
  $region83: #{lenet_forward.4} parent=0
    _
  %s6 = ssub.s32 1, %s4
  %s7 = scalar_select 0, %s6, %s4
  $region1: #{lenet_forward.4} parent=0
    #allocation2 [shape = 'u8[65536]{0}', space=vmem, size = 0x10000, scoped, tag = 'input window, operand 0']
    loop: start=0, step=1, limit=4
    $region2: #{lenet_forward.4} parent=1 // loop_pre_header
      _
    $region3: #{lenet_forward.4} parent=1 // loop_header
      %s9 = sphi 0, %s13
      %p10 = scmp.ge.s32.totalorder %s9, 4
      %s19 = sphi 0, %s21
      %s22 = sphi 0, %s19
      %s23 = sphi 0, %s22
      %s39 = sphi 0, %s23
      %s43 = sphi 0, %s43
      %s45 = sphi 0, %s43
      %s46 = sphi 0, %s45
      %s60 = sphi 0, %s46
      %s64 = sphi 0, %s64
      %s66 = sphi 0, %s64
      %s67 = sphi 0, %s66
      %s81 = sphi 0, %s67
      %s87 = sphi 0, %s89
      %s90 = sphi 0, %s87
      %s91 = sphi 0, %s90
      %s107 = sphi 0, %s91
    $region4: #{lenet_forward.4} parent=1 // loop_header_branch
      %12 = sbr.rel (%p10) target = $region8
    $region5: #{lenet_forward.4} parent=1 // loop_body
      %s14 = ssub.s32 %s9, 1
      %s15 = ssub.s32 %s9, 2
      %s16 = sadd.s32 %s9, 1
      %s17 = ssub.s32 %s9, %s16
      %p18 = scmp.eq.s32.totalorder %s17, 0
      %s20 = sadd.s32 %s19, 1
      %s21 = scalar_select %p18, %s19, %s20
      %p24 = pneg %p18
      %p25 = scmp.eq.s32.totalorder %s9, 1
      %p26 = por %p24, %p25
      %p27 = scmp.ne.s32.totalorder %s19, %s22
      %p28 = scmp.eq.s32.totalorder %s9, 0
      %p29 = por %p27, %p28
      %p30 = scmp.ne.s32.totalorder %s19, %s22
      %p31 = scmp.eq.s32.totalorder %s14, 1
      %p32 = por %p30, %p31
      %p33 = scmp.ne.s32.totalorder %s22, %s23
      %p34 = scmp.eq.s32.totalorder %s14, 0
      %p35 = por %p33, %p34
      %p36 = scmp.ne.s32.totalorder %s22, %s23
      %p37 = scmp.eq.s32.totalorder %s15, 1
      %p38 = por %p36, %p37
      %p40 = scmp.ne.s32.totalorder %s23, %s39
      %p41 = scmp.eq.s32.totalorder %s15, 0
      %p42 = por %p40, %p41
      %s44 = sadd.s32 %s43, 1
      %p47 = scmp.eq.s32.totalorder %s9, 1
      %p48 = scmp.ne.s32.totalorder %s43, %s45
      %p49 = scmp.eq.s32.totalorder %s9, 0
      %p50 = por %p48, %p49
      %p51 = scmp.ne.s32.totalorder %s43, %s45
      %p52 = scmp.eq.s32.totalorder %s14, 1
      %p53 = por %p51, %p52
      %p54 = scmp.ne.s32.totalorder %s45, %s46
      %p55 = scmp.eq.s32.totalorder %s14, 0
      %p56 = por %p54, %p55
      %p57 = scmp.ne.s32.totalorder %s45, %s46
      %p58 = scmp.eq.s32.totalorder %s15, 1
      %p59 = por %p57, %p58
      %p61 = scmp.ne.s32.totalorder %s46, %s60
      %p62 = scmp.eq.s32.totalorder %s15, 0
      %p63 = por %p61, %p62
      %s65 = sadd.s32 %s64, 1
      %p68 = scmp.eq.s32.totalorder %s9, 1
      %p69 = scmp.ne.s32.totalorder %s64, %s66
      %p70 = scmp.eq.s32.totalorder %s9, 0
      %p71 = por %p69, %p70
      %p72 = scmp.ne.s32.totalorder %s64, %s66
      %p73 = scmp.eq.s32.totalorder %s14, 1
      %p74 = por %p72, %p73
      %p75 = scmp.ne.s32.totalorder %s66, %s67
      %p76 = scmp.eq.s32.totalorder %s14, 0
      %p77 = por %p75, %p76
      %p78 = scmp.ne.s32.totalorder %s66, %s67
      %p79 = scmp.eq.s32.totalorder %s15, 1
      %p80 = por %p78, %p79
      %p82 = scmp.ne.s32.totalorder %s67, %s81
      %p83 = scmp.eq.s32.totalorder %s15, 0
      %p84 = por %p82, %p83
      %s85 = ssub.s32 %s9, %s16
      %p86 = scmp.eq.s32.totalorder %s85, 0
      %s88 = sadd.s32 %s87, 1
      %s89 = scalar_select %p86, %s87, %s88
      %p92 = pneg %p86
      %p93 = scmp.eq.s32.totalorder %s9, 1
      %p94 = por %p92, %p93
      %p95 = scmp.ne.s32.totalorder %s87, %s90
      %p96 = scmp.eq.s32.totalorder %s9, 0
      %p97 = por %p95, %p96
      %p98 = scmp.ne.s32.totalorder %s87, %s90
      %p99 = scmp.eq.s32.totalorder %s14, 1
      %p100 = por %p98, %p99
      %p101 = scmp.ne.s32.totalorder %s90, %s91
      %p102 = scmp.eq.s32.totalorder %s14, 0
      %p103 = por %p101, %p102
      %p104 = scmp.ne.s32.totalorder %s90, %s91
      %p105 = scmp.eq.s32.totalorder %s15, 1
      %p106 = por %p104, %p105
      %p108 = scmp.ne.s32.totalorder %s91, %s107
      %p109 = scmp.eq.s32.totalorder %s15, 0
      %p110 = por %p108, %p109
      %p111 = scmp.le.s32.totalorder 1, %s9
      %p112 = scmp.lt.s32.totalorder %s9, 3
      %p113 = pnand %p111, %p112
      %p114 = pneg %p113
      // Predicated region
      $region9: #{lenet_forward.4} parent=5 // pred_check
        _
      $region10: #{lenet_forward.4} parent=5 // pred_check_branch
        %116 = sbr.rel (%p113) target = $region12
      $region11: #{lenet_forward.4} parent=5 // pred_region
        %s117 = ssub.s32 %s9, 1
        // Predicated region
        $region13: #{lenet_forward.4} parent=11 // pred_check
          %p118 = pneg %p56
        $region14: #{lenet_forward.4} parent=11 // pred_check_branch
          %120 = sbr.rel (%p118) target = $region16
        $region15: #{lenet_forward.4} parent=11 // pred_region
          _
        $region16: #{lenet_forward.4} parent=11 // pred_fallthru
          _
        // Predicated region
        $region17: #{lenet_forward.4} parent=11 // pred_check
          %p121 = pneg %p77
        $region18: #{lenet_forward.4} parent=11 // pred_check_branch
          %123 = sbr.rel (%p121) target = $region20
        $region19: #{lenet_forward.4} parent=11 // pred_region
          _
        $region20: #{lenet_forward.4} parent=11 // pred_fallthru
          _
      $region12: #{lenet_forward.4} parent=5 // pred_fallthru
        _
      %p124 = scmp.lt.s32.totalorder %s9, 2
      // Predicated region
      $region21: #{lenet_forward.4} parent=5 // pred_check
        %p125 = pneg %p124
      $region22: #{lenet_forward.4} parent=5 // pred_check_branch
        %127 = sbr.rel (%p125) target = $region24
      $region23: #{lenet_forward.4} parent=5 // pred_region
        // Predicated region
        $region25: #{lenet_forward.4} parent=23 // pred_check
          %p128 = pneg %p29
        $region26: #{lenet_forward.4} parent=23 // pred_check_branch
          %130 = sbr.rel (%p128) target = $region28
        $region27: #{lenet_forward.4} parent=23 // pred_region
          %s131 = sand.u32 %s19, 1
          %s132 = sand.u32 %s19, 1
          %s133 = smul.addr %s132, 64
          %s134 = scalar_lea.vmem [#allocation2], %s133
          %s135 = smul.u32 2, %s9
          %s136 = smul.addr %s135, 2
          %s137 = smul.addr %s136, 4
          %s138 = scalar_lea.vmem %s0, %s137
          // Predicated region
          $region29: #{lenet_forward.4} parent=27 // pred_check
            _
          $region30: #{lenet_forward.4} parent=27 // pred_check_branch
            %140 = sbr.rel (0) target = $region32
          $region31: #{lenet_forward.4} parent=27 // pred_region
            // Predicated region
            $region33: #{lenet_forward.4} parent=31 // pred_check
              _
            $region34: #{lenet_forward.4} parent=31 // pred_check_branch
              %142 = sbr.rel (0) target = $region36
            $region35: #{lenet_forward.4} parent=31 // pred_region
              // Predicated region
              $region48: #{lenet_forward.4} parent=35 // pred_check
                _
              $region49: #{lenet_forward.4} parent=35 // pred_check_branch
                %172 = sbr.rel (0) target = $region51
              $region50: #{lenet_forward.4} parent=35 // pred_region
                loop: start=0, step=1, limit=1
                $region52: #{lenet_forward.4} parent=50 // loop_pre_header
                  _
                $region53: #{lenet_forward.4} parent=50 // loop_header
                  %s174 = sphi 0, %s178
                  %p175 = scmp.ge.s32.totalorder %s174, 1
                  %s179 = sphi %s138, %s138
                  %s180 = sphi %s134, %s134
                $region54: #{lenet_forward.4} parent=50 // loop_header_branch
                  %177 = sbr.rel (%p175) target = $region58
                $region55: #{lenet_forward.4} parent=50 // loop_body
                  %v181 = vld [vmem:[%s179] sm:$0xff]
                  %182 = vst [vmem:[%s180] sm:$0xff] %v181
                  %v183 = vld [vmem:[%s179 + $0x8] sm:$0xff]
                  %184 = vst [vmem:[%s180 + $0x8] sm:$0xff] %v183
                  %v185 = vld [vmem:[%s179 + $0x20] sm:$0xff]
                  %186 = vst [vmem:[%s180 + $0x10] sm:$0xff] %v185
                  %v187 = vld [vmem:[%s179 + $0x28] sm:$0xff]
                  %188 = vst [vmem:[%s180 + $0x18] sm:$0xff] %v187
                  %v189 = vld [vmem:[%s179 + $0x40] sm:$0xff]
                  %190 = vst [vmem:[%s180 + $0x20] sm:$0xff] %v189
                  %v191 = vld [vmem:[%s179 + $0x48] sm:$0xff]
                  %192 = vst [vmem:[%s180 + $0x28] sm:$0xff] %v191
                  %v193 = vld [vmem:[%s179 + $0x60] sm:$0xff]
                  %194 = vst [vmem:[%s180 + $0x30] sm:$0xff] %v193
                  %v195 = vld [vmem:[%s179 + $0x68] sm:$0xff]
                  %196 = vst [vmem:[%s180 + $0x38] sm:$0xff] %v195
                $region56: #{lenet_forward.4} parent=50 // loop_footer
                  %s178 = sadd.s32 1, %s174
                $region57: #{lenet_forward.4} parent=50 // loop_footer_branch
                  %173 = sbr.rel target = $region53
                $region58: #{lenet_forward.4} parent=50 // loop_exit
                  _
              $region51: #{lenet_forward.4} parent=35 // pred_fallthru
                _
              // Predicated region
              $region59: #{lenet_forward.4} parent=35 // pred_check
                _
              $region60: #{lenet_forward.4} parent=35 // pred_check_branch
                %198 = sbr.rel target = $region62
              $region61: #{lenet_forward.4} parent=35 // pred_region
                _
              $region62: #{lenet_forward.4} parent=35 // pred_fallthru
                _
            $region36: #{lenet_forward.4} parent=31 // pred_fallthru
              _
            // Predicated region
            $region37: #{lenet_forward.4} parent=31 // pred_check
              _
            $region38: #{lenet_forward.4} parent=31 // pred_check_branch
              %144 = sbr.rel target = $region40
            $region39: #{lenet_forward.4} parent=31 // pred_region
              %s146 = ssub.s32 256, 1
              loop: start=0, step=1, limit=1
              $region41: #{lenet_forward.4} parent=39 // loop_pre_header
                _
              $region42: #{lenet_forward.4} parent=39 // loop_header
                %s148 = sphi 0, %s152
                %p149 = scmp.ge.s32.totalorder %s148, 1
                %s153 = sphi %s138, %s138
                %s154 = sphi %s134, %s134
              $region43: #{lenet_forward.4} parent=39 // loop_header_branch
                %151 = sbr.rel (%p149) target = $region47
              $region44: #{lenet_forward.4} parent=39 // loop_body
                %v155 = vld [vmem:[%s153] sm:%s146]
                %156 = vst [vmem:[%s154] sm:%s146] %v155
                %v157 = vld [vmem:[%s153 + $0x8] sm:%s146]
                %158 = vst [vmem:[%s154 + $0x8] sm:%s146] %v157
                %v159 = vld [vmem:[%s153 + $0x20] sm:%s146]
                %160 = vst [vmem:[%s154 + $0x10] sm:%s146] %v159
                %v161 = vld [vmem:[%s153 + $0x28] sm:%s146]
                %162 = vst [vmem:[%s154 + $0x18] sm:%s146] %v161
                %v163 = vld [vmem:[%s153 + $0x40] sm:%s146]
                %164 = vst [vmem:[%s154 + $0x20] sm:%s146] %v163
                %v165 = vld [vmem:[%s153 + $0x48] sm:%s146]
                %166 = vst [vmem:[%s154 + $0x28] sm:%s146] %v165
                %v167 = vld [vmem:[%s153 + $0x60] sm:%s146]
                %168 = vst [vmem:[%s154 + $0x30] sm:%s146] %v167
                %v169 = vld [vmem:[%s153 + $0x68] sm:%s146]
                %170 = vst [vmem:[%s154 + $0x38] sm:%s146] %v169
              $region45: #{lenet_forward.4} parent=39 // loop_footer
                %s152 = sadd.s32 1, %s148
              $region46: #{lenet_forward.4} parent=39 // loop_footer_branch
                %147 = sbr.rel target = $region42
              $region47: #{lenet_forward.4} parent=39 // loop_exit
                _
            $region40: #{lenet_forward.4} parent=31 // pred_fallthru
              _
          $region32: #{lenet_forward.4} parent=27 // pred_fallthru
            _
          %199 = vnop
        $region28: #{lenet_forward.4} parent=23 // pred_fallthru
          _
      $region24: #{lenet_forward.4} parent=5 // pred_fallthru
        _
      %p200 = scmp.le.s32.totalorder 1, %s9
      %p201 = scmp.lt.s32.totalorder %s9, 3
      %p202 = pnand %p200, %p201
      %p203 = pneg %p202
      // Predicated region
      $region63: #{lenet_forward.4} parent=5 // pred_check
        _
      $region64: #{lenet_forward.4} parent=5 // pred_check_branch
        %205 = sbr.rel (%p202) target = $region66
      $region65: #{lenet_forward.4} parent=5 // pred_region
        %s206 = ssub.s32 %s9, 1
        %s207 = sand.u32 %s22, 1
        %s208 = sand.u32 %s22, 1
        %s209 = smul.addr %s208, 64
        %s210 = scalar_lea.vmem [#allocation2], %s209
        // Predicated region
        $region67: #{lenet_forward.4} parent=65 // pred_check
          %p211 = pneg %p35
        $region68: #{lenet_forward.4} parent=65 // pred_check_branch
          %213 = sbr.rel (%p211) target = $region70
        $region69: #{lenet_forward.4} parent=65 // pred_region
          _
        $region70: #{lenet_forward.4} parent=65 // pred_fallthru
          _
        %s214 = sand.u32 %s22, 1
        %s215 = sand.u32 %s22, 1
        %s216 = smul.addr %s215, 64
        %s217 = scalar_lea.vmem [#allocation2], %s216
        %p218 = pneg %p35
        %p219 = pneg %p32
        %p220 = pneg %p56
        %p221 = pneg %p53
        %p222 = pneg %p77
        %p223 = pneg %p74
        %p224 = pneg %p103
        %p225 = pneg %p100
        %s226 = smul.u32 2, %s14
        %p227 = scmp.lt.s32.totalorder %s226, 3
        %s228 = scalar_select %p227, %s226, 3
        %s229 = smul.addr %s228, 4
        %s230 = scalar_lea.vmem %s3, %s229
        %s231 = smul.u32 2, %s14
        %s232 = smul.u32 2, %s14
        %p233 = scmp.lt.s32.totalorder %s232, 3
        %s234 = scalar_select %p233, %s232, 3
        %s235 = smul.addr %s234, 4
        %s236 = scalar_lea.vmem %s3, %s235
        %s237 = smul.u32 2, %s14
        %v239 = vld [vmem:[%s210] sm:$0xff]
        %v240 = vld [vmem:[%s210 + $0x8] sm:$0xff]
        %v241 = vld [vmem:[%s210 + $0x10] sm:$0xff]
        %v242 = vld [vmem:[%s210 + $0x18] sm:$0xff]
        %v243 = vld [vmem:[%s210 + $0x20] sm:$0xff]
        %v244 = vld [vmem:[%s210 + $0x28] sm:$0xff]
        %v245 = vld [vmem:[%s210 + $0x30] sm:$0xff]
        %v246 = vld [vmem:[%s210 + $0x38] sm:$0xff]
        %v247 = vld [vmem:[%s1] sm:$0xf]
        %v248 = vld [vmem:[%s1 + $0x4] sm:$0xf]
        %v249 = vld [vmem:[%s1 + $0x8] sm:$0xf]
        %v250 = vld [vmem:[%s1 + $0xc] sm:$0xf]
        %v251 = vld [vmem:[%s1 + $0x10] sm:$0xf]
        %v252 = vld [vmem:[%s1 + $0x14] sm:$0xf]
        %v253 = vld [vmem:[%s1 + $0x18] sm:$0xf]
        %v254 = vld [vmem:[%s1 + $0x1c] sm:$0xf]
        %v255 = vld [vmem:[%s1 + $0x20] sm:$0xf]
        %v256 = vld [vmem:[%s1 + $0x24] sm:$0xf]
        %v257 = vld [vmem:[%s1 + $0x28] sm:$0xf]
        %v258 = vld [vmem:[%s1 + $0x2c] sm:$0xf]
        %v259 = vld [vmem:[%s1 + $0x30] sm:$0xf]
        %v260 = vld [vmem:[%s1 + $0x34] sm:$0xf]
        %v261 = vld [vmem:[%s1 + $0x38] sm:$0xf]
        %v262 = vld [vmem:[%s1 + $0x3c] sm:$0xf]
        %v263 = vld [vmem:[%s1 + $0x40] sm:$0xf]
        %v264 = vld [vmem:[%s1 + $0x44] sm:$0xf]
        %v265 = vld [vmem:[%s1 + $0x48] sm:$0xf]
        %v266 = vld [vmem:[%s1 + $0x4c] sm:$0xf]
        %v267 = vld [vmem:[%s1 + $0x50] sm:$0xf]
        %v268 = vld [vmem:[%s1 + $0x54] sm:$0xf]
        %v269 = vld [vmem:[%s1 + $0x58] sm:$0xf]
        %v270 = vld [vmem:[%s1 + $0x5c] sm:$0xf]
        %v271 = vld [vmem:[%s1 + $0x60] sm:$0xf]
        %v272 = vld [vmem:[%s1 + $0x64] sm:$0xf]
        %v273 = vld [vmem:[%s1 + $0x68] sm:$0xf]
        %v274 = vld [vmem:[%s1 + $0x6c] sm:$0xf]
        %v275 = vld [vmem:[%s1 + $0x70] sm:$0xf]
        %v276 = vld [vmem:[%s1 + $0x74] sm:$0xf]
        %v277 = vld [vmem:[%s1 + $0x78] sm:$0xf]
        %v278 = vld [vmem:[%s1 + $0x7c] sm:$0xf]
        %v287 = vunpack.c.l.b16 %v239
        %v288 = vunpack.c.h.b16 %v239
        %v289 = vunpack.c.l.b16 %v240
        %v290 = vunpack.c.h.b16 %v240
        %v291 = vunpack.c.l.b16 %v241
        %v292 = vunpack.c.h.b16 %v241
        %v293 = vunpack.c.l.b16 %v242
        %v294 = vunpack.c.h.b16 %v242
        %v295 = vunpack.c.l.b16 %v243
        %v296 = vunpack.c.h.b16 %v243
        %v297 = vunpack.c.l.b16 %v244
        %v298 = vunpack.c.h.b16 %v244
        %v299 = vunpack.c.l.b16 %v245
        %v300 = vunpack.c.h.b16 %v245
        %v301 = vunpack.c.l.b16 %v246
        %v302 = vunpack.c.h.b16 %v246
        %v303 = vpack.c.b16 %v289, %v287
        %v304 = vpack.c.b16 %v290, %v288
        %v305 = vpack.c.b16 %v293, %v291
        %v306 = vpack.c.b16 %v294, %v292
        %v307 = vpack.c.b16 %v297, %v295
        %v308 = vpack.c.b16 %v298, %v296
        %v309 = vpack.c.b16 %v301, %v299
        %v310 = vpack.c.b16 %v302, %v300
        %v351 = vunpack.c.l.b16 %v247
        %v352 = vunpack.c.l.b16 %v248
        %v353 = vunpack.c.l.b16 %v249
        %v354 = vunpack.c.l.b16 %v250
        %v355 = vunpack.c.l.b16 %v251
        %v356 = vunpack.c.l.b16 %v252
        %v357 = vunpack.c.l.b16 %v253
        %v358 = vunpack.c.l.b16 %v254
        %v359 = vunpack.c.l.b16 %v255
        %v360 = vunpack.c.l.b16 %v256
        %v361 = vunpack.c.l.b16 %v257
        %v362 = vunpack.c.l.b16 %v258
        %v363 = vunpack.c.l.b16 %v259
        %v364 = vunpack.c.l.b16 %v260
        %v365 = vunpack.c.l.b16 %v261
        %v366 = vunpack.c.l.b16 %v262
        %v367 = vunpack.c.l.b16 %v263
        %v368 = vunpack.c.l.b16 %v264
        %v369 = vunpack.c.l.b16 %v265
        %v370 = vunpack.c.l.b16 %v266
        %v371 = vunpack.c.l.b16 %v267
        %v372 = vunpack.c.l.b16 %v268
        %v373 = vunpack.c.l.b16 %v269
        %v374 = vunpack.c.l.b16 %v270
        %v375 = vunpack.c.l.b16 %v271
        %v376 = vunpack.c.l.b16 %v272
        %v377 = vunpack.c.l.b16 %v273
        %v378 = vunpack.c.l.b16 %v274
        %v379 = vunpack.c.l.b16 %v275
        %v380 = vunpack.c.l.b16 %v276
        %v381 = vunpack.c.l.b16 %v277
        %v382 = vunpack.c.l.b16 %v278
        %v383 = vpack.c.b16 %v352, %v351
        %v384 = vpack.c.b16 %v354, %v353
        %v385 = vpack.c.b16 %v356, %v355
        %v386 = vpack.c.b16 %v358, %v357
        %v387 = vpack.c.b16 %v360, %v359
        %v388 = vpack.c.b16 %v362, %v361
        %v389 = vpack.c.b16 %v364, %v363
        %v390 = vpack.c.b16 %v366, %v365
        %v391 = vpack.c.b16 %v368, %v367
        %v392 = vpack.c.b16 %v370, %v369
        %v393 = vpack.c.b16 %v372, %v371
        %v394 = vpack.c.b16 %v374, %v373
        %v395 = vpack.c.b16 %v376, %v375
        %v396 = vpack.c.b16 %v378, %v377
        %v397 = vpack.c.b16 %v380, %v379
        %v398 = vpack.c.b16 %v382, %v381
        %415 = vmatprep.subr.bf16.mxu0 0
        %416 = vmatpush1.bf16.msra.mxu0 %v390
        %417 = vmatprep.subr.bf16.mxu0 0
        %418 = vmatpush1.bf16.msra.mxu0 %v389
        %419 = vmatprep.subr.bf16.mxu0 0
        %420 = vmatpush1.bf16.msra.mxu0 %v388
        %421 = vmatprep.subr.bf16.mxu0 0
        %422 = vmatpush1.bf16.msra.mxu0 %v387
        %423 = vmatprep.subr.bf16.mxu0 0
        %424 = vmatpush1.bf16.msra.mxu0 %v386
        %425 = vmatprep.subr.bf16.mxu0 0
        %426 = vmatpush1.bf16.msra.mxu0 %v385
        %427 = vmatprep.subr.bf16.mxu0 0
        %428 = vmatpush1.bf16.msra.mxu0 %v384
        %429 = vmatprep.subr.bf16.mxu0 0
        %430 = vmatpush1.bf16.msra.mxu0 %v383
        %431 = vmatprep.subr.bf16.mxu0 0
        %432 = vmatpush2.bf16.msra.mxu0 %v398
        %433 = vmatprep.subr.bf16.mxu0 0
        %434 = vmatpush2.bf16.msra.mxu0 %v397
        %435 = vmatprep.subr.bf16.mxu0 0
        %436 = vmatpush2.bf16.msra.mxu0 %v396
        %437 = vmatprep.subr.bf16.mxu0 0
        %438 = vmatpush2.bf16.msra.mxu0 %v395
        %439 = vmatprep.subr.bf16.mxu0 0
        %440 = vmatpush2.bf16.msra.mxu0 %v394
        %441 = vmatprep.subr.bf16.mxu0 0
        %442 = vmatpush2.bf16.msra.mxu0 %v393
        %443 = vmatprep.subr.bf16.mxu0 0
        %444 = vmatpush2.bf16.msra.mxu0 %v392
        %445 = vmatprep.subr.bf16.mxu0 0
        %446 = vmatpush2.bf16.msra.mxu0 %v391
        %447 = vmatprep.mubr.bf16.mxu0 %v304
        %448 = vmatmul.mubr.bf16.gmra.mxu0 %v303
        %v449 = vpop.f32.mrf.mxu0
        %v450 = vadd.f32 0.0, %v449
        %v451 = vpop.f32.mrf.mxu0
        %v452 = vpop.f32.mrf.mxu0
        %v453 = vadd.f32 0.0, %v452
        %v454 = vpop.f32.mrf.mxu0
        %455 = vmatprep.mubr.bf16.mxu0 %v306
        %456 = vmatmul.mubr.bf16.gmra.mxu0 %v305
        %v457 = vpop.f32.mrf.mxu0
        %v458 = vadd.f32 0.0, %v457
        %v459 = vpop.f32.mrf.mxu0
        %v460 = vpop.f32.mrf.mxu0
        %v461 = vadd.f32 0.0, %v460
        %v462 = vpop.f32.mrf.mxu0
        %463 = vmatprep.mubr.bf16.mxu0 %v308
        %464 = vmatmul.mubr.bf16.gmra.mxu0 %v307
        %v465 = vpop.f32.mrf.mxu0
        %v466 = vadd.f32 0.0, %v465
        %v467 = vpop.f32.mrf.mxu0
        %v468 = vpop.f32.mrf.mxu0
        %v469 = vadd.f32 0.0, %v468
        %v470 = vpop.f32.mrf.mxu0
        %471 = vmatprep.mubr.bf16.mxu0 %v310
        %472 = vmatmul.mubr.bf16.gmra.mxu0 %v309
        %v473 = vpop.f32.mrf.mxu0
        %v474 = vadd.f32 0.0, %v473
        %v475 = vpop.f32.mrf.mxu0
        %v476 = vpop.f32.mrf.mxu0
        %v477 = vadd.f32 0.0, %v476
        %v478 = vpop.f32.mrf.mxu0
        %479 = vdwg.mxu0
        %v480 = vmax.f32 %v450, %v466
        %v481 = vmax.f32 %v458, %v474
        %v482 = vmax.f32 %v480, %v481
        %v483 = vmax.f32 %v453, %v469
        %v484 = vmax.f32 %v461, %v477
        %v485 = vmax.f32 %v483, %v484
        %v486 = vld [vmem:[%s2] sm:$0x1]
        %v488 = vlaneseq
        %v489 = vshrl.u32 %v488, 7
        %v490 = vsub.s32 0, %v489
        %v491 = vrot.slane %v486, %v490
        %v493 = vadd.f32 %v482, %v491
        %v494 = vadd.f32 %v485, %v491
        %v495 = vmax.f32 %v493, 0.0
        %v496 = vmax.f32 %v494, 0.0
        %v497 = vpack.c.bf16 %v496, %v495
        %v499 = vunpack.c.l.b16 %v497
        %v500 = vunpack.c.h.b16 %v497
        %v501 = vpack.c.b16 %v499, %v499
        %v502 = vpack.c.b16 %v500, %v500
        %505 = vst [vmem:[%s236] sm:$0xf] %v501
        %506 = vst [vmem:[%s236 + $0x4] sm:$0xf] %v502
        %s507 = smul.u32 2, %s14
        %p508 = scmp.lt.s32.totalorder %s507, 3
        %s509 = scalar_select %p508, %s507, 3
        %s510 = smul.addr %s509, 4
        %s511 = scalar_lea.vmem %s3, %s510
        // Predicated region
        $region71: #{lenet_forward.4} parent=65 // pred_check
          %p512 = pneg %p100
        $region72: #{lenet_forward.4} parent=65 // pred_check_branch
          %514 = sbr.rel (%p512) target = $region74
        $region73: #{lenet_forward.4} parent=65 // pred_region
          %s515 = smul.u32 2, %s14
        $region74: #{lenet_forward.4} parent=65 // pred_fallthru
          _
      $region66: #{lenet_forward.4} parent=5 // pred_fallthru
        _
      %p516 = scmp.le.s32.totalorder 2, %s9
      // Predicated region
      $region75: #{lenet_forward.4} parent=5 // pred_check
        %p517 = pneg %p516
      $region76: #{lenet_forward.4} parent=5 // pred_check_branch
        %519 = sbr.rel (%p517) target = $region78
      $region77: #{lenet_forward.4} parent=5 // pred_region
        %s520 = ssub.s32 %s9, 2
        // Predicated region
        $region79: #{lenet_forward.4} parent=77 // pred_check
          %p521 = pneg %p106
        $region80: #{lenet_forward.4} parent=77 // pred_check_branch
          %523 = sbr.rel (%p521) target = $region82
        $region81: #{lenet_forward.4} parent=77 // pred_region
          %s524 = smul.u32 2, %s15
          %p525 = scmp.lt.s32.totalorder %s524, 3
          %s526 = scalar_select %p525, %s524, 3
          %s527 = smul.addr %s526, 4
          %s528 = scalar_lea.vmem %s3, %s527
        $region82: #{lenet_forward.4} parent=77 // pred_fallthru
          _
      $region78: #{lenet_forward.4} parent=5 // pred_fallthru
        _
    $region6: #{lenet_forward.4} parent=1 // loop_footer
      %s13 = sadd.s32 1, %s9
    $region7: #{lenet_forward.4} parent=1 // loop_footer_branch
      %8 = sbr.rel target = $region3
    $region8: #{lenet_forward.4} parent=1 // loop_exit
      _

// kernel: lenet_forward.5
$region0: #{lenet_forward.5}
  #allocation0 [shape = 'u32[]', space=smem, size = 0x4, offset = 0x4, fixed_abs, tag = 'smem constant byte address 0x4 - core index']
  #allocation1 [shape = 'u32[144,128]{1,0:T(1,128)}', space=vmem, size = 0x12000, scoped, tag = 'internal scratch']
  %s0 = inlined_call_operand.vmem [shape: bf16[32,2048], index: 0, kind: input, shape index: {}]
  %s1 = inlined_call_operand.vmem [shape: bf16[2048,128], index: 1, kind: input, shape index: {}]
  %s2 = inlined_call_operand.vmem [shape: f32[1,128], index: 2, kind: input, shape index: {}]
  %s3 = inlined_call_operand.vmem [shape: bf16[128,128], index: 3, kind: input, shape index: {}]
  %s4 = inlined_call_operand.vmem [shape: f32[1,128], index: 4, kind: input, shape index: {}]
  %s5 = inlined_call_operand.vmem [shape: bf16[128,128], index: 5, kind: input, shape index: {}]
  %s6 = inlined_call_operand.vmem [shape: f32[1,128], index: 6, kind: input, shape index: {}]
  %s7 = inlined_call_operand.vmem [shape: f32[32,128], index: 7, kind: output, shape index: {}]
  %s8 = sld [smem:[#allocation0]]
  $region61: #{lenet_forward.5} parent=0
    _
  %s10 = ssub.s32 1, %s8
  %s11 = scalar_select 0, %s10, %s8
  loop: start=0, step=1, limit=4
  $region2: #{lenet_forward.5} parent=0 // loop_pre_header
    _
  $region3: #{lenet_forward.5} parent=0 // loop_header
    %s13 = sphi 0, %s17
    %p14 = scmp.ge.s32.totalorder %s13, 4
    %s23 = sphi 0, %s25
    %s26 = sphi 0, %s23
    %s27 = sphi 0, %s26
    %s43 = sphi 0, %s27
    %s47 = sphi 0, %s47
    %s49 = sphi 0, %s47
    %s50 = sphi 0, %s49
    %s64 = sphi 0, %s50
    %s68 = sphi 0, %s68
    %s70 = sphi 0, %s68
    %s71 = sphi 0, %s70
    %s85 = sphi 0, %s71
    %s89 = sphi 0, %s89
    %s91 = sphi 0, %s89
    %s92 = sphi 0, %s91
    %s106 = sphi 0, %s92
    %s110 = sphi 0, %s110
    %s112 = sphi 0, %s110
    %s113 = sphi 0, %s112
    %s127 = sphi 0, %s113
    %s131 = sphi 0, %s131
    %s133 = sphi 0, %s131
    %s134 = sphi 0, %s133
    %s148 = sphi 0, %s134
    %s152 = sphi 0, %s152
    %s154 = sphi 0, %s152
    %s155 = sphi 0, %s154
    %s169 = sphi 0, %s155
    %s175 = sphi 0, %s177
    %s178 = sphi 0, %s175
    %s179 = sphi 0, %s178
    %s195 = sphi 0, %s179
  $region4: #{lenet_forward.5} parent=0 // loop_header_branch
    %16 = sbr.rel (%p14) target = $region8
  $region5: #{lenet_forward.5} parent=0 // loop_body
    %s18 = ssub.s32 %s13, 1
    %s19 = ssub.s32 %s13, 2
    %s20 = sadd.s32 %s13, 1
    %s21 = ssub.s32 %s13, %s20
    %p22 = scmp.eq.s32.totalorder %s21, 0
    %s24 = sadd.s32 %s23, 1
    %s25 = scalar_select %p22, %s23, %s24
    %p28 = pneg %p22
    %p29 = scmp.eq.s32.totalorder %s13, 1
    %p30 = por %p28, %p29
    %p31 = scmp.ne.s32.totalorder %s23, %s26
    %p32 = scmp.eq.s32.totalorder %s13, 0
    %p33 = por %p31, %p32
    %p34 = scmp.ne.s32.totalorder %s23, %s26
    %p35 = scmp.eq.s32.totalorder %s18, 1
    %p36 = por %p34, %p35
    %p37 = scmp.ne.s32.totalorder %s26, %s27
    %p38 = scmp.eq.s32.totalorder %s18, 0
    %p39 = por %p37, %p38
    %p40 = scmp.ne.s32.totalorder %s26, %s27
    %p41 = scmp.eq.s32.totalorder %s19, 1
    %p42 = por %p40, %p41
    %p44 = scmp.ne.s32.totalorder %s27, %s43
    %p45 = scmp.eq.s32.totalorder %s19, 0
    %p46 = por %p44, %p45
    %s48 = sadd.s32 %s47, 1
    %p51 = scmp.eq.s32.totalorder %s13, 1
    %p52 = scmp.ne.s32.totalorder %s47, %s49
    %p53 = scmp.eq.s32.totalorder %s13, 0
    %p54 = por %p52, %p53
    %p55 = scmp.ne.s32.totalorder %s47, %s49
    %p56 = scmp.eq.s32.totalorder %s18, 1
    %p57 = por %p55, %p56
    %p58 = scmp.ne.s32.totalorder %s49, %s50
    %p59 = scmp.eq.s32.totalorder %s18, 0
    %p60 = por %p58, %p59
    %p61 = scmp.ne.s32.totalorder %s49, %s50
    %p62 = scmp.eq.s32.totalorder %s19, 1
    %p63 = por %p61, %p62
    %p65 = scmp.ne.s32.totalorder %s50, %s64
    %p66 = scmp.eq.s32.totalorder %s19, 0
    %p67 = por %p65, %p66
    %s69 = sadd.s32 %s68, 1
    %p72 = scmp.eq.s32.totalorder %s13, 1
    %p73 = scmp.ne.s32.totalorder %s68, %s70
    %p74 = scmp.eq.s32.totalorder %s13, 0
    %p75 = por %p73, %p74
    %p76 = scmp.ne.s32.totalorder %s68, %s70
    %p77 = scmp.eq.s32.totalorder %s18, 1
    %p78 = por %p76, %p77
    %p79 = scmp.ne.s32.totalorder %s70, %s71
    %p80 = scmp.eq.s32.totalorder %s18, 0
    %p81 = por %p79, %p80
    %p82 = scmp.ne.s32.totalorder %s70, %s71
    %p83 = scmp.eq.s32.totalorder %s19, 1
    %p84 = por %p82, %p83
    %p86 = scmp.ne.s32.totalorder %s71, %s85
    %p87 = scmp.eq.s32.totalorder %s19, 0
    %p88 = por %p86, %p87
    %s90 = sadd.s32 %s89, 1
    %p93 = scmp.eq.s32.totalorder %s13, 1
    %p94 = scmp.ne.s32.totalorder %s89, %s91
    %p95 = scmp.eq.s32.totalorder %s13, 0
    %p96 = por %p94, %p95
    %p97 = scmp.ne.s32.totalorder %s89, %s91
    %p98 = scmp.eq.s32.totalorder %s18, 1
    %p99 = por %p97, %p98
    %p100 = scmp.ne.s32.totalorder %s91, %s92
    %p101 = scmp.eq.s32.totalorder %s18, 0
    %p102 = por %p100, %p101
    %p103 = scmp.ne.s32.totalorder %s91, %s92
    %p104 = scmp.eq.s32.totalorder %s19, 1
    %p105 = por %p103, %p104
    %p107 = scmp.ne.s32.totalorder %s92, %s106
    %p108 = scmp.eq.s32.totalorder %s19, 0
    %p109 = por %p107, %p108
    %s111 = sadd.s32 %s110, 1
    %p114 = scmp.eq.s32.totalorder %s13, 1
    %p115 = scmp.ne.s32.totalorder %s110, %s112
    %p116 = scmp.eq.s32.totalorder %s13, 0
    %p117 = por %p115, %p116
    %p118 = scmp.ne.s32.totalorder %s110, %s112
    %p119 = scmp.eq.s32.totalorder %s18, 1
    %p120 = por %p118, %p119
    %p121 = scmp.ne.s32.totalorder %s112, %s113
    %p122 = scmp.eq.s32.totalorder %s18, 0
    %p123 = por %p121, %p122
    %p124 = scmp.ne.s32.totalorder %s112, %s113
    %p125 = scmp.eq.s32.totalorder %s19, 1
    %p126 = por %p124, %p125
    %p128 = scmp.ne.s32.totalorder %s113, %s127
    %p129 = scmp.eq.s32.totalorder %s19, 0
    %p130 = por %p128, %p129
    %s132 = sadd.s32 %s131, 1
    %p135 = scmp.eq.s32.totalorder %s13, 1
    %p136 = scmp.ne.s32.totalorder %s131, %s133
    %p137 = scmp.eq.s32.totalorder %s13, 0
    %p138 = por %p136, %p137
    %p139 = scmp.ne.s32.totalorder %s131, %s133
    %p140 = scmp.eq.s32.totalorder %s18, 1
    %p141 = por %p139, %p140
    %p142 = scmp.ne.s32.totalorder %s133, %s134
    %p143 = scmp.eq.s32.totalorder %s18, 0
    %p144 = por %p142, %p143
    %p145 = scmp.ne.s32.totalorder %s133, %s134
    %p146 = scmp.eq.s32.totalorder %s19, 1
    %p147 = por %p145, %p146
    %p149 = scmp.ne.s32.totalorder %s134, %s148
    %p150 = scmp.eq.s32.totalorder %s19, 0
    %p151 = por %p149, %p150
    %s153 = sadd.s32 %s152, 1
    %p156 = scmp.eq.s32.totalorder %s13, 1
    %p157 = scmp.ne.s32.totalorder %s152, %s154
    %p158 = scmp.eq.s32.totalorder %s13, 0
    %p159 = por %p157, %p158
    %p160 = scmp.ne.s32.totalorder %s152, %s154
    %p161 = scmp.eq.s32.totalorder %s18, 1
    %p162 = por %p160, %p161
    %p163 = scmp.ne.s32.totalorder %s154, %s155
    %p164 = scmp.eq.s32.totalorder %s18, 0
    %p165 = por %p163, %p164
    %p166 = scmp.ne.s32.totalorder %s154, %s155
    %p167 = scmp.eq.s32.totalorder %s19, 1
    %p168 = por %p166, %p167
    %p170 = scmp.ne.s32.totalorder %s155, %s169
    %p171 = scmp.eq.s32.totalorder %s19, 0
    %p172 = por %p170, %p171
    %s173 = ssub.s32 %s13, %s20
    %p174 = scmp.eq.s32.totalorder %s173, 0
    %s176 = sadd.s32 %s175, 1
    %s177 = scalar_select %p174, %s175, %s176
    %p180 = pneg %p174
    %p181 = scmp.eq.s32.totalorder %s13, 1
    %p182 = por %p180, %p181
    %p183 = scmp.ne.s32.totalorder %s175, %s178
    %p184 = scmp.eq.s32.totalorder %s13, 0
    %p185 = por %p183, %p184
    %p186 = scmp.ne.s32.totalorder %s175, %s178
    %p187 = scmp.eq.s32.totalorder %s18, 1
    %p188 = por %p186, %p187
    %p189 = scmp.ne.s32.totalorder %s178, %s179
    %p190 = scmp.eq.s32.totalorder %s18, 0
    %p191 = por %p189, %p190
    %p192 = scmp.ne.s32.totalorder %s178, %s179
    %p193 = scmp.eq.s32.totalorder %s19, 1
    %p194 = por %p192, %p193
    %p196 = scmp.ne.s32.totalorder %s179, %s195
    %p197 = scmp.eq.s32.totalorder %s19, 0
    %p198 = por %p196, %p197
    %p199 = scmp.le.s32.totalorder 1, %s13
    %p200 = scmp.lt.s32.totalorder %s13, 3
    %p201 = pnand %p199, %p200
    %p202 = pneg %p201
    // Predicated region
    $region9: #{lenet_forward.5} parent=5 // pred_check
      _
    $region10: #{lenet_forward.5} parent=5 // pred_check_branch
      %204 = sbr.rel (%p201) target = $region12
    $region11: #{lenet_forward.5} parent=5 // pred_region
      %s205 = ssub.s32 %s13, 1
      // Predicated region
      $region13: #{lenet_forward.5} parent=11 // pred_check
        %p206 = pneg %p60
      $region14: #{lenet_forward.5} parent=11 // pred_check_branch
        %208 = sbr.rel (%p206) target = $region16
      $region15: #{lenet_forward.5} parent=11 // pred_region
        _
      $region16: #{lenet_forward.5} parent=11 // pred_fallthru
        _
      // Predicated region
      $region17: #{lenet_forward.5} parent=11 // pred_check
        %p209 = pneg %p81
      $region18: #{lenet_forward.5} parent=11 // pred_check_branch
        %211 = sbr.rel (%p209) target = $region20
      $region19: #{lenet_forward.5} parent=11 // pred_region
        _
      $region20: #{lenet_forward.5} parent=11 // pred_fallthru
        _
      // Predicated region
      $region21: #{lenet_forward.5} parent=11 // pred_check
        %p212 = pneg %p102
      $region22: #{lenet_forward.5} parent=11 // pred_check_branch
        %214 = sbr.rel (%p212) target = $region24
      $region23: #{lenet_forward.5} parent=11 // pred_region
        _
      $region24: #{lenet_forward.5} parent=11 // pred_fallthru
        _
      // Predicated region
      $region25: #{lenet_forward.5} parent=11 // pred_check
        %p215 = pneg %p123
      $region26: #{lenet_forward.5} parent=11 // pred_check_branch
        %217 = sbr.rel (%p215) target = $region28
      $region27: #{lenet_forward.5} parent=11 // pred_region
        _
      $region28: #{lenet_forward.5} parent=11 // pred_fallthru
        _
      // Predicated region
      $region29: #{lenet_forward.5} parent=11 // pred_check
        %p218 = pneg %p144
      $region30: #{lenet_forward.5} parent=11 // pred_check_branch
        %220 = sbr.rel (%p218) target = $region32
      $region31: #{lenet_forward.5} parent=11 // pred_region
        _
      $region32: #{lenet_forward.5} parent=11 // pred_fallthru
        _
      // Predicated region
      $region33: #{lenet_forward.5} parent=11 // pred_check
        %p221 = pneg %p165
      $region34: #{lenet_forward.5} parent=11 // pred_check_branch
        %223 = sbr.rel (%p221) target = $region36
      $region35: #{lenet_forward.5} parent=11 // pred_region
        _
      $region36: #{lenet_forward.5} parent=11 // pred_fallthru
        _
    $region12: #{lenet_forward.5} parent=5 // pred_fallthru
      _
    %p224 = scmp.lt.s32.totalorder %s13, 2
    // Predicated region
    $region37: #{lenet_forward.5} parent=5 // pred_check
      %p225 = pneg %p224
    $region38: #{lenet_forward.5} parent=5 // pred_check_branch
      %227 = sbr.rel (%p225) target = $region40
    $region39: #{lenet_forward.5} parent=5 // pred_region
      // Predicated region
      $region41: #{lenet_forward.5} parent=39 // pred_check
        %p228 = pneg %p33
      $region42: #{lenet_forward.5} parent=39 // pred_check_branch
        %230 = sbr.rel (%p228) target = $region44
      $region43: #{lenet_forward.5} parent=39 // pred_region
        %s231 = smul.u32 2, %s13
        %p232 = scmp.lt.s32.totalorder %s231, 3
        %s233 = scalar_select %p232, %s231, 3
        %s234 = smul.addr %s233, 16
        %s235 = smul.addr %s234, 4
        %s236 = scalar_lea.vmem %s0, %s235
        %s237 = smul.u32 2, %s13
      $region44: #{lenet_forward.5} parent=39 // pred_fallthru
        _
    $region40: #{lenet_forward.5} parent=5 // pred_fallthru
      _
    %p238 = scmp.le.s32.totalorder 1, %s13
    %p239 = scmp.lt.s32.totalorder %s13, 3
    %p240 = pnand %p238, %p239
    %p241 = pneg %p240
    // Predicated region
    $region45: #{lenet_forward.5} parent=5 // pred_check
      _
    $region46: #{lenet_forward.5} parent=5 // pred_check_branch
      %243 = sbr.rel (%p240) target = $region48
    $region47: #{lenet_forward.5} parent=5 // pred_region
      %s244 = ssub.s32 %s13, 1
      %s245 = smul.u32 2, %s18
      %p246 = scmp.lt.s32.totalorder %s245, 3
      %s247 = scalar_select %p246, %s245, 3
      %s248 = smul.addr %s247, 16
      %s249 = smul.addr %s248, 4
      %s250 = scalar_lea.vmem %s0, %s249
      %p251 = pneg %p39
      %p252 = pneg %p36
      %p253 = pneg %p60
      %p254 = pneg %p57
      %p255 = pneg %p81
      %p256 = pneg %p78
      %p257 = pneg %p102
      %p258 = pneg %p99
      %p259 = pneg %p123
      %p260 = pneg %p120
      %p261 = pneg %p144
      %p262 = pneg %p141
      %p263 = pneg %p165
      %p264 = pneg %p162
      %p265 = pneg %p191
      %p266 = pneg %p188
      %s267 = smul.u32 2, %s18
      %p268 = scmp.lt.s32.totalorder %s267, 3
      %s269 = scalar_select %p268, %s267, 3
      %s270 = smul.addr %s269, 8
      %s271 = scalar_lea.vmem %s7, %s270
      %s272 = smul.u32 2, %s18
      %p273 = scmp.lt.s32.totalorder %s272, 3
      %s274 = scalar_select %p273, %s272, 3
      %s275 = smul.addr %s274, 16
      %s276 = smul.addr %s275, 4
      %s277 = scalar_lea.vmem %s0, %s276
      %s278 = smul.u32 2, %s18
      %s279 = smul.u32 2, %s18
      %p280 = scmp.lt.s32.totalorder %s279, 3
      %s281 = scalar_select %p280, %s279, 3
      %s282 = smul.addr %s281, 8
      %s283 = scalar_lea.vmem %s7, %s282
      %s284 = smul.u32 2, %s18
      %v286 = vld [vmem:[%s277] sm:$0xff]
      %v287 = vld [vmem:[%s277 + $0x8] sm:$0xff]
      %v288 = vld [vmem:[%s277 + $0x10] sm:$0xff]
      %v289 = vld [vmem:[%s277 + $0x18] sm:$0xff]
      %v290 = vld [vmem:[%s277 + $0x20] sm:$0xff]
      %v291 = vld [vmem:[%s277 + $0x28] sm:$0xff]
      %v292 = vld [vmem:[%s277 + $0x30] sm:$0xff]
      %v293 = vld [vmem:[%s277 + $0x38] sm:$0xff]
      %v294 = vld [vmem:[%s277 + $0x40] sm:$0xff]
      %v295 = vld [vmem:[%s277 + $0x48] sm:$0xff]
      %v296 = vld [vmem:[%s277 + $0x50] sm:$0xff]
      %v297 = vld [vmem:[%s277 + $0x58] sm:$0xff]
      %v298 = vld [vmem:[%s277 + $0x60] sm:$0xff]
      %v299 = vld [vmem:[%s277 + $0x68] sm:$0xff]
      %v300 = vld [vmem:[%s277 + $0x70] sm:$0xff]
      %v301 = vld [vmem:[%s277 + $0x78] sm:$0xff]
      %v302 = vld [vmem:[%s1] sm:$0xf]
      %v303 = vld [vmem:[%s1 + $0x4] sm:$0xf]
      %v304 = vld [vmem:[%s1 + $0x8] sm:$0xf]
      %v305 = vld [vmem:[%s1 + $0xc] sm:$0xf]
      %v306 = vld [vmem:[%s1 + $0x10] sm:$0xf]
      %v307 = vld [vmem:[%s1 + $0x14] sm:$0xf]
      %v308 = vld [vmem:[%s1 + $0x18] sm:$0xf]
      %v309 = vld [vmem:[%s1 + $0x1c] sm:$0xf]
      %v310 = vld [vmem:[%s1 + $0x20] sm:$0xf]
      %v311 = vld [vmem:[%s1 + $0x24] sm:$0xf]
      %v312 = vld [vmem:[%s1 + $0x28] sm:$0xf]
      %v313 = vld [vmem:[%s1 + $0x2c] sm:$0xf]
      %v314 = vld [vmem:[%s1 + $0x30] sm:$0xf]
      %v315 = vld [vmem:[%s1 + $0x34] sm:$0xf]
      %v316 = vld [vmem:[%s1 + $0x38] sm:$0xf]
      %v317 = vld [vmem:[%s1 + $0x3c] sm:$0xf]
      %v318 = vld [vmem:[%s1 + $0x40] sm:$0xf]
      %v319 = vld [vmem:[%s1 + $0x44] sm:$0xf]
      %v320 = vld [vmem:[%s1 + $0x48] sm:$0xf]
      %v321 = vld [vmem:[%s1 + $0x4c] sm:$0xf]
      %v322 = vld [vmem:[%s1 + $0x50] sm:$0xf]
      %v323 = vld [vmem:[%s1 + $0x54] sm:$0xf]
      %v324 = vld [vmem:[%s1 + $0x58] sm:$0xf]
      %v325 = vld [vmem:[%s1 + $0x5c] sm:$0xf]
      %v326 = vld [vmem:[%s1 + $0x60] sm:$0xf]
      %v327 = vld [vmem:[%s1 + $0x64] sm:$0xf]
      %v328 = vld [vmem:[%s1 + $0x68] sm:$0xf]
      %v329 = vld [vmem:[%s1 + $0x6c] sm:$0xf]
      %v330 = vld [vmem:[%s1 + $0x70] sm:$0xf]
      %v331 = vld [vmem:[%s1 + $0x74] sm:$0xf]
      %v332 = vld [vmem:[%s1 + $0x78] sm:$0xf]
      %v333 = vld [vmem:[%s1 + $0x7c] sm:$0xf]
      %v334 = vld [vmem:[%s1 + $0x80] sm:$0xf]
      %v335 = vld [vmem:[%s1 + $0x84] sm:$0xf]
      %v336 = vld [vmem:[%s1 + $0x88] sm:$0xf]
      %v337 = vld [vmem:[%s1 + $0x8c] sm:$0xf]
      %v338 = vld [vmem:[%s1 + $0x90] sm:$0xf]
      %v339 = vld [vmem:[%s1 + $0x94] sm:$0xf]
      %v340 = vld [vmem:[%s1 + $0x98] sm:$0xf]
      %v341 = vld [vmem:[%s1 + $0x9c] sm:$0xf]
      %v342 = vld [vmem:[%s1 + $0xa0] sm:$0xf]
      %v343 = vld [vmem:[%s1 + $0xa4] sm:$0xf]
      %v344 = vld [vmem:[%s1 + $0xa8] sm:$0xf]
      %v345 = vld [vmem:[%s1 + $0xac] sm:$0xf]
      %v346 = vld [vmem:[%s1 + $0xb0] sm:$0xf]
      %v347 = vld [vmem:[%s1 + $0xb4] sm:$0xf]
      %v348 = vld [vmem:[%s1 + $0xb8] sm:$0xf]
      %v349 = vld [vmem:[%s1 + $0xbc] sm:$0xf]
      %v350 = vld [vmem:[%s1 + $0xc0] sm:$0xf]
      %v351 = vld [vmem:[%s1 + $0xc4] sm:$0xf]
      %v352 = vld [vmem:[%s1 + $0xc8] sm:$0xf]
      %v353 = vld [vmem:[%s1 + $0xcc] sm:$0xf]
      %v354 = vld [vmem:[%s1 + $0xd0] sm:$0xf]
      %v355 = vld [vmem:[%s1 + $0xd4] sm:$0xf]
      %v356 = vld [vmem:[%s1 + $0xd8] sm:$0xf]
      %v357 = vld [vmem:[%s1 + $0xdc] sm:$0xf]
      %v358 = vld [vmem:[%s1 + $0xe0] sm:$0xf]
      %v359 = vld [vmem:[%s1 + $0xe4] sm:$0xf]
      %v360 = vld [vmem:[%s1 + $0xe8] sm:$0xf]
      %v361 = vld [vmem:[%s1 + $0xec] sm:$0xf]
      %v362 = vld [vmem:[%s1 + $0xf0] sm:$0xf]
      %v363 = vld [vmem:[%s1 + $0xf4] sm:$0xf]
      %v364 = vld [vmem:[%s1 + $0xf8] sm:$0xf]
      %v365 = vld [vmem:[%s1 + $0xfc] sm:$0xf]
      %v366 = vld [vmem:[%s1 + $0x100] sm:$0xf]
      %v367 = vld [vmem:[%s1 + $0x104] sm:$0xf]
      %v368 = vld [vmem:[%s1 + $0x108] sm:$0xf]
      %v369 = vld [vmem:[%s1 + $0x10c] sm:$0xf]
      %v370 = vld [vmem:[%s1 + $0x110] sm:$0xf]
      %v371 = vld [vmem:[%s1 + $0x114] sm:$0xf]
      %v372 = vld [vmem:[%s1 + $0x118] sm:$0xf]
      %v373 = vld [vmem:[%s1 + $0x11c] sm:$0xf]
      %v374 = vld [vmem:[%s1 + $0x120] sm:$0xf]
      %v375 = vld [vmem:[%s1 + $0x124] sm:$0xf]
      %v376 = vld [vmem:[%s1 + $0x128] sm:$0xf]
      %v377 = vld [vmem:[%s1 + $0x12c] sm:$0xf]
      %v378 = vld [vmem:[%s1 + $0x130] sm:$0xf]
      %v379 = vld [vmem:[%s1 + $0x134] sm:$0xf]
      %v380 = vld [vmem:[%s1 + $0x138] sm:$0xf]
      %v381 = vld [vmem:[%s1 + $0x13c] sm:$0xf]
      %v382 = vld [vmem:[%s1 + $0x140] sm:$0xf]
      %v383 = vld [vmem:[%s1 + $0x144] sm:$0xf]
      %v384 = vld [vmem:[%s1 + $0x148] sm:$0xf]
      %v385 = vld [vmem:[%s1 + $0x14c] sm:$0xf]
      %v386 = vld [vmem:[%s1 + $0x150] sm:$0xf]
      %v387 = vld [vmem:[%s1 + $0x154] sm:$0xf]
      %v388 = vld [vmem:[%s1 + $0x158] sm:$0xf]
      %v389 = vld [vmem:[%s1 + $0x15c] sm:$0xf]
      %v390 = vld [vmem:[%s1 + $0x160] sm:$0xf]
      %v391 = vld [vmem:[%s1 + $0x164] sm:$0xf]
      %v392 = vld [vmem:[%s1 + $0x168] sm:$0xf]
      %v393 = vld [vmem:[%s1 + $0x16c] sm:$0xf]
      %v394 = vld [vmem:[%s1 + $0x170] sm:$0xf]
      %v395 = vld [vmem:[%s1 + $0x174] sm:$0xf]
      %v396 = vld [vmem:[%s1 + $0x178] sm:$0xf]
      %v397 = vld [vmem:[%s1 + $0x17c] sm:$0xf]
      %v398 = vld [vmem:[%s1 + $0x180] sm:$0xf]
      %v399 = vld [vmem:[%s1 + $0x184] sm:$0xf]
      %v400 = vld [vmem:[%s1 + $0x188] sm:$0xf]
      %v401 = vld [vmem:[%s1 + $0x18c] sm:$0xf]
      %v402 = vld [vmem:[%s1 + $0x190] sm:$0xf]
      %v403 = vld [vmem:[%s1 + $0x194] sm:$0xf]
      %v404 = vld [vmem:[%s1 + $0x198] sm:$0xf]
      %v405 = vld [vmem:[%s1 + $0x19c] sm:$0xf]
      %v406 = vld [vmem:[%s1 + $0x1a0] sm:$0xf]
      %v407 = vld [vmem:[%s1 + $0x1a4] sm:$0xf]
      %v408 = vld [vmem:[%s1 + $0x1a8] sm:$0xf]
      %v409 = vld [vmem:[%s1 + $0x1ac] sm:$0xf]
      %v410 = vld [vmem:[%s1 + $0x1b0] sm:$0xf]
      %v411 = vld [vmem:[%s1 + $0x1b4] sm:$0xf]
      %v412 = vld [vmem:[%s1 + $0x1b8] sm:$0xf]
      %v413 = vld [vmem:[%s1 + $0x1bc] sm:$0xf]
      %v414 = vld [vmem:[%s1 + $0x1c0] sm:$0xf]
      %v415 = vld [vmem:[%s1 + $0x1c4] sm:$0xf]
      %v416 = vld [vmem:[%s1 + $0x1c8] sm:$0xf]
      %v417 = vld [vmem:[%s1 + $0x1cc] sm:$0xf]
      %v418 = vld [vmem:[%s1 + $0x1d0] sm:$0xf]
      %v419 = vld [vmem:[%s1 + $0x1d4] sm:$0xf]
      %v420 = vld [vmem:[%s1 + $0x1d8] sm:$0xf]
      %v421 = vld [vmem:[%s1 + $0x1dc] sm:$0xf]
      %v422 = vld [vmem:[%s1 + $0x1e0] sm:$0xf]
      %v423 = vld [vmem:[%s1 + $0x1e4] sm:$0xf]
      %v424 = vld [vmem:[%s1 + $0x1e8] sm:$0xf]
      %v425 = vld [vmem:[%s1 + $0x1ec] sm:$0xf]
      %v426 = vld [vmem:[%s1 + $0x1f0] sm:$0xf]
      %v427 = vld [vmem:[%s1 + $0x1f4] sm:$0xf]
      %v428 = vld [vmem:[%s1 + $0x1f8] sm:$0xf]
      %v429 = vld [vmem:[%s1 + $0x1fc] sm:$0xf]
      %v430 = vld [vmem:[%s1 + $0x200] sm:$0xf]
      %v431 = vld [vmem:[%s1 + $0x204] sm:$0xf]
      %v432 = vld [vmem:[%s1 + $0x208] sm:$0xf]
      %v433 = vld [vmem:[%s1 + $0x20c] sm:$0xf]
      %v434 = vld [vmem:[%s1 + $0x210] sm:$0xf]
      %v435 = vld [vmem:[%s1 + $0x214] sm:$0xf]
      %v436 = vld [vmem:[%s1 + $0x218] sm:$0xf]
      %v437 = vld [vmem:[%s1 + $0x21c] sm:$0xf]
      %v438 = vld [vmem:[%s1 + $0x220] sm:$0xf]
      %v439 = vld [vmem:[%s1 + $0x224] sm:$0xf]
      %v440 = vld [vmem:[%s1 + $0x228] sm:$0xf]
      %v441 = vld [vmem:[%s1 + $0x22c] sm:$0xf]
      %v442 = vld [vmem:[%s1 + $0x230] sm:$0xf]
      %v443 = vld [vmem:[%s1 + $0x234] sm:$0xf]
      %v444 = vld [vmem:[%s1 + $0x238] sm:$0xf]
      %v445 = vld [vmem:[%s1 + $0x23c] sm:$0xf]
      %v446 = vld [vmem:[%s1 + $0x240] sm:$0xf]
      %v447 = vld [vmem:[%s1 + $0x244] sm:$0xf]
      %v448 = vld [vmem:[%s1 + $0x248] sm:$0xf]
      %v449 = vld [vmem:[%s1 + $0x24c] sm:$0xf]
      %v450 = vld [vmem:[%s1 + $0x250] sm:$0xf]
      %v451 = vld [vmem:[%s1 + $0x254] sm:$0xf]
      %v452 = vld [vmem:[%s1 + $0x258] sm:$0xf]
      %v453 = vld [vmem:[%s1 + $0x25c] sm:$0xf]
      %v454 = vld [vmem:[%s1 + $0x260] sm:$0xf]
      %v455 = vld [vmem:[%s1 + $0x264] sm:$0xf]
      %v456 = vld [vmem:[%s1 + $0x268] sm:$0xf]
      %v457 = vld [vmem:[%s1 + $0x26c] sm:$0xf]
      %v458 = vld [vmem:[%s1 + $0x270] sm:$0xf]
      %v459 = vld [vmem:[%s1 + $0x274] sm:$0xf]
      %v460 = vld [vmem:[%s1 + $0x278] sm:$0xf]
      %v461 = vld [vmem:[%s1 + $0x27c] sm:$0xf]
      %v462 = vld [vmem:[%s1 + $0x280] sm:$0xf]
      %v463 = vld [vmem:[%s1 + $0x284] sm:$0xf]
      %v464 = vld [vmem:[%s1 + $0x288] sm:$0xf]
      %v465 = vld [vmem:[%s1 + $0x28c] sm:$0xf]
      %v466 = vld [vmem:[%s1 + $0x290] sm:$0xf]
      %v467 = vld [vmem:[%s1 + $0x294] sm:$0xf]
      %v468 = vld [vmem:[%s1 + $0x298] sm:$0xf]
      %v469 = vld [vmem:[%s1 + $0x29c] sm:$0xf]
      %v470 = vld [vmem:[%s1 + $0x2a0] sm:$0xf]
      %v471 = vld [vmem:[%s1 + $0x2a4] sm:$0xf]
      %v472 = vld [vmem:[%s1 + $0x2a8] sm:$0xf]
      %v473 = vld [vmem:[%s1 + $0x2ac] sm:$0xf]
      %v474 = vld [vmem:[%s1 + $0x2b0] sm:$0xf]
      %v475 = vld [vmem:[%s1 + $0x2b4] sm:$0xf]
      %v476 = vld [vmem:[%s1 + $0x2b8] sm:$0xf]
      %v477 = vld [vmem:[%s1 + $0x2bc] sm:$0xf]
      %v478 = vld [vmem:[%s1 + $0x2c0] sm:$0xf]
      %v479 = vld [vmem:[%s1 + $0x2c4] sm:$0xf]
      %v480 = vld [vmem:[%s1 + $0x2c8] sm:$0xf]
      %v481 = vld [vmem:[%s1 + $0x2cc] sm:$0xf]
      %v482 = vld [vmem:[%s1 + $0x2d0] sm:$0xf]
      %v483 = vld [vmem:[%s1 + $0x2d4] sm:$0xf]
      %v484 = vld [vmem:[%s1 + $0x2d8] sm:$0xf]
      %v485 = vld [vmem:[%s1 + $0x2dc] sm:$0xf]
      %v486 = vld [vmem:[%s1 + $0x2e0] sm:$0xf]
      %v487 = vld [vmem:[%s1 + $0x2e4] sm:$0xf]
      %v488 = vld [vmem:[%s1 + $0x2e8] sm:$0xf]
      %v489 = vld [vmem:[%s1 + $0x2ec] sm:$0xf]
      %v490 = vld [vmem:[%s1 + $0x2f0] sm:$0xf]
      %v491 = vld [vmem:[%s1 + $0x2f4] sm:$0xf]
      %v492 = vld [vmem:[%s1 + $0x2f8] sm:$0xf]
      %v493 = vld [vmem:[%s1 + $0x2fc] sm:$0xf]
      %v494 = vld [vmem:[%s1 + $0x300] sm:$0xf]
      %v495 = vld [vmem:[%s1 + $0x304] sm:$0xf]
      %v496 = vld [vmem:[%s1 + $0x308] sm:$0xf]
      %v497 = vld [vmem:[%s1 + $0x30c] sm:$0xf]
      %v498 = vld [vmem:[%s1 + $0x310] sm:$0xf]
      %v499 = vld [vmem:[%s1 + $0x314] sm:$0xf]
      %v500 = vld [vmem:[%s1 + $0x318] sm:$0xf]
      %v501 = vld [vmem:[%s1 + $0x31c] sm:$0xf]
      %v502 = vld [vmem:[%s1 + $0x320] sm:$0xf]
      %v503 = vld [vmem:[%s1 + $0x324] sm:$0xf]
      %v504 = vld [vmem:[%s1 + $0x328] sm:$0xf]
      %v505 = vld [vmem:[%s1 + $0x32c] sm:$0xf]
      %v506 = vld [vmem:[%s1 + $0x330] sm:$0xf]
      %v507 = vld [vmem:[%s1 + $0x334] sm:$0xf]
      %v508 = vld [vmem:[%s1 + $0x338] sm:$0xf]
      %v509 = vld [vmem:[%s1 + $0x33c] sm:$0xf]
      %v510 = vld [vmem:[%s1 + $0x340] sm:$0xf]
      %v511 = vld [vmem:[%s1 + $0x344] sm:$0xf]
      %v512 = vld [vmem:[%s1 + $0x348] sm:$0xf]
      %v513 = vld [vmem:[%s1 + $0x34c] sm:$0xf]
      %v514 = vld [vmem:[%s1 + $0x350] sm:$0xf]
      %v515 = vld [vmem:[%s1 + $0x354] sm:$0xf]
      %v516 = vld [vmem:[%s1 + $0x358] sm:$0xf]
      %v517 = vld [vmem:[%s1 + $0x35c] sm:$0xf]
      %v518 = vld [vmem:[%s1 + $0x360] sm:$0xf]
      %v519 = vld [vmem:[%s1 + $0x364] sm:$0xf]
      %v520 = vld [vmem:[%s1 + $0x368] sm:$0xf]
      %v521 = vld [vmem:[%s1 + $0x36c] sm:$0xf]
      %v522 = vld [vmem:[%s1 + $0x370] sm:$0xf]
      %v523 = vld [vmem:[%s1 + $0x374] sm:$0xf]
      %v524 = vld [vmem:[%s1 + $0x378] sm:$0xf]
      %v525 = vld [vmem:[%s1 + $0x37c] sm:$0xf]
      %v526 = vld [vmem:[%s1 + $0x380] sm:$0xf]
      %v527 = vld [vmem:[%s1 + $0x384] sm:$0xf]
      %v528 = vld [vmem:[%s1 + $0x388] sm:$0xf]
      %v529 = vld [vmem:[%s1 + $0x38c] sm:$0xf]
      %v530 = vld [vmem:[%s1 + $0x390] sm:$0xf]
      %v531 = vld [vmem:[%s1 + $0x394] sm:$0xf]
      %v532 = vld [vmem:[%s1 + $0x398] sm:$0xf]
      %v533 = vld [vmem:[%s1 + $0x39c] sm:$0xf]
      %v534 = vld [vmem:[%s1 + $0x3a0] sm:$0xf]
      %v535 = vld [vmem:[%s1 + $0x3a4] sm:$0xf]
      %v536 = vld [vmem:[%s1 + $0x3a8] sm:$0xf]
      %v537 = vld [vmem:[%s1 + $0x3ac] sm:$0xf]
      %v538 = vld [vmem:[%s1 + $0x3b0] sm:$0xf]
      %v539 = vld [vmem:[%s1 + $0x3b4] sm:$0xf]
      %v540 = vld [vmem:[%s1 + $0x3b8] sm:$0xf]
      %v541 = vld [vmem:[%s1 + $0x3bc] sm:$0xf]
      %v542 = vld [vmem:[%s1 + $0x3c0] sm:$0xf]
      %v543 = vld [vmem:[%s1 + $0x3c4] sm:$0xf]
      %v544 = vld [vmem:[%s1 + $0x3c8] sm:$0xf]
      %v545 = vld [vmem:[%s1 + $0x3cc] sm:$0xf]
      %v546 = vld [vmem:[%s1 + $0x3d0] sm:$0xf]
      %v547 = vld [vmem:[%s1 + $0x3d4] sm:$0xf]
      %v548 = vld [vmem:[%s1 + $0x3d8] sm:$0xf]
      %v549 = vld [vmem:[%s1 + $0x3dc] sm:$0xf]
      %v550 = vld [vmem:[%s1 + $0x3e0] sm:$0xf]
      %v551 = vld [vmem:[%s1 + $0x3e4] sm:$0xf]
      %v552 = vld [vmem:[%s1 + $0x3e8] sm:$0xf]
      %v553 = vld [vmem:[%s1 + $0x3ec] sm:$0xf]
      %v554 = vld [vmem:[%s1 + $0x3f0] sm:$0xf]
      %v555 = vld [vmem:[%s1 + $0x3f4] sm:$0xf]
      %v556 = vld [vmem:[%s1 + $0x3f8] sm:$0xf]
      %v557 = vld [vmem:[%s1 + $0x3fc] sm:$0xf]
      %v558 = vld [vmem:[%s2] sm:$0x1]
      %v560 = vlaneseq
      %v561 = vshrl.u32 %v560, 7
      %v562 = vsub.s32 0, %v561
      %v563 = vrot.slane %v558, %v562
      %v581 = vunpack.c.l.b16 %v286
      %v582 = vunpack.c.h.b16 %v286
      %v583 = vunpack.c.l.b16 %v287
      %v584 = vunpack.c.h.b16 %v287
      %v585 = vunpack.c.l.b16 %v288
      %v586 = vunpack.c.h.b16 %v288
      %v587 = vunpack.c.l.b16 %v289
      %v588 = vunpack.c.h.b16 %v289
      %v589 = vunpack.c.l.b16 %v290
      %v590 = vunpack.c.h.b16 %v290
      %v591 = vunpack.c.l.b16 %v291
      %v592 = vunpack.c.h.b16 %v291
      %v593 = vunpack.c.l.b16 %v292
      %v594 = vunpack.c.h.b16 %v292
      %v595 = vunpack.c.l.b16 %v293
      %v596 = vunpack.c.h.b16 %v293
      %v597 = vunpack.c.l.b16 %v294
      %v598 = vunpack.c.h.b16 %v294
      %v599 = vunpack.c.l.b16 %v295
      %v600 = vunpack.c.h.b16 %v295
      %v601 = vunpack.c.l.b16 %v296
      %v602 = vunpack.c.h.b16 %v296
      %v603 = vunpack.c.l.b16 %v297
      %v604 = vunpack.c.h.b16 %v297
      %v605 = vunpack.c.l.b16 %v298
      %v606 = vunpack.c.h.b16 %v298
      %v607 = vunpack.c.l.b16 %v299
      %v608 = vunpack.c.h.b16 %v299
      %v609 = vunpack.c.l.b16 %v300
      %v610 = vunpack.c.h.b16 %v300
      %v611 = vunpack.c.l.b16 %v301
      %v612 = vunpack.c.h.b16 %v301
      %v613 = vpack.c.b16 %v597, %v581
      %v614 = vpack.c.b16 %v598, %v582
      %v615 = vpack.c.b16 %v599, %v583
      %v616 = vpack.c.b16 %v600, %v584
      %v617 = vpack.c.b16 %v601, %v585
      %v618 = vpack.c.b16 %v602, %v586
      %v619 = vpack.c.b16 %v603, %v587
      %v620 = vpack.c.b16 %v604, %v588
      %v621 = vpack.c.b16 %v605, %v589
      %v622 = vpack.c.b16 %v606, %v590
      %v623 = vpack.c.b16 %v607, %v591
      %v624 = vpack.c.b16 %v608, %v592
      %v625 = vpack.c.b16 %v609, %v593
      %v626 = vpack.c.b16 %v610, %v594
      %v627 = vpack.c.b16 %v611, %v595
      %v628 = vpack.c.b16 %v612, %v596
      %v901 = vunpack.c.l.b16 %v302
      %v902 = vunpack.c.l.b16 %v303
      %v903 = vunpack.c.l.b16 %v304
      %v904 = vunpack.c.l.b16 %v305
      %v905 = vunpack.c.l.b16 %v306
      %v906 = vunpack.c.l.b16 %v307
      %v907 = vunpack.c.l.b16 %v308
      %v908 = vunpack.c.l.b16 %v309
      %v909 = vunpack.c.l.b16 %v310
      %v910 = vunpack.c.l.b16 %v311
      %v911 = vunpack.c.l.b16 %v312
      %v912 = vunpack.c.l.b16 %v313
      %v913 = vunpack.c.l.b16 %v314
      %v914 = vunpack.c.l.b16 %v315
      %v915 = vunpack.c.l.b16 %v316
      %v916 = vunpack.c.l.b16 %v317
      %v917 = vunpack.c.l.b16 %v318
      %v918 = vunpack.c.l.b16 %v319
      %v919 = vunpack.c.l.b16 %v320
      %v920 = vunpack.c.l.b16 %v321
      %v921 = vunpack.c.l.b16 %v322
      %v922 = vunpack.c.l.b16 %v323
      %v923 = vunpack.c.l.b16 %v324
      %v924 = vunpack.c.l.b16 %v325
      %v925 = vunpack.c.l.b16 %v326
      %v926 = vunpack.c.l.b16 %v327
      %v927 = vunpack.c.l.b16 %v328
      %v928 = vunpack.c.l.b16 %v329
      %v929 = vunpack.c.l.b16 %v330
      %v930 = vunpack.c.l.b16 %v331
      %v931 = vunpack.c.l.b16 %v332
      %v932 = vunpack.c.l.b16 %v333
      %v933 = vunpack.c.l.b16 %v334
      %v934 = vunpack.c.l.b16 %v335
      %v935 = vunpack.c.l.b16 %v336
      %v936 = vunpack.c.l.b16 %v337
      %v937 = vunpack.c.l.b16 %v338
      %v938 = vunpack.c.l.b16 %v339
      %v939 = vunpack.c.l.b16 %v340
      %v940 = vunpack.c.l.b16 %v341
      %v941 = vunpack.c.l.b16 %v342
      %v942 = vunpack.c.l.b16 %v343
      %v943 = vunpack.c.l.b16 %v344
      %v944 = vunpack.c.l.b16 %v345
      %v945 = vunpack.c.l.b16 %v346
      %v946 = vunpack.c.l.b16 %v347
      %v947 = vunpack.c.l.b16 %v348
      %v948 = vunpack.c.l.b16 %v349
      %v949 = vunpack.c.l.b16 %v350
      %v950 = vunpack.c.l.b16 %v351
      %v951 = vunpack.c.l.b16 %v352
      %v952 = vunpack.c.l.b16 %v353
      %v953 = vunpack.c.l.b16 %v354
      %v954 = vunpack.c.l.b16 %v355
      %v955 = vunpack.c.l.b16 %v356
      %v956 = vunpack.c.l.b16 %v357
      %v957 = vunpack.c.l.b16 %v358
      %v958 = vunpack.c.l.b16 %v359
      %v959 = vunpack.c.l.b16 %v360
      %v960 = vunpack.c.l.b16 %v361
      %v961 = vunpack.c.l.b16 %v362
      %v962 = vunpack.c.l.b16 %v363
      %v963 = vunpack.c.l.b16 %v364
      %v964 = vunpack.c.l.b16 %v365
      %v965 = vunpack.c.l.b16 %v366
      %v966 = vunpack.c.l.b16 %v367
      %v967 = vunpack.c.l.b16 %v368
      %v968 = vunpack.c.l.b16 %v369
      %v969 = vunpack.c.l.b16 %v370
      %v970 = vunpack.c.l.b16 %v371
      %v971 = vunpack.c.l.b16 %v372
      %v972 = vunpack.c.l.b16 %v373
      %v973 = vunpack.c.l.b16 %v374
      %v974 = vunpack.c.l.b16 %v375
      %v975 = vunpack.c.l.b16 %v376
      %v976 = vunpack.c.l.b16 %v377
      %v977 = vunpack.c.l.b16 %v378
      %v978 = vunpack.c.l.b16 %v379
      %v979 = vunpack.c.l.b16 %v380
      %v980 = vunpack.c.l.b16 %v381
      %v981 = vunpack.c.l.b16 %v382
      %v982 = vunpack.c.l.b16 %v383
      %v983 = vunpack.c.l.b16 %v384
      %v984 = vunpack.c.l.b16 %v385
      %v985 = vunpack.c.l.b16 %v386
      %v986 = vunpack.c.l.b16 %v387
      %v987 = vunpack.c.l.b16 %v388
      %v988 = vunpack.c.l.b16 %v389
      %v989 = vunpack.c.l.b16 %v390
      %v990 = vunpack.c.l.b16 %v391
      %v991 = vunpack.c.l.b16 %v392
      %v992 = vunpack.c.l.b16 %v393
      %v993 = vunpack.c.l.b16 %v394
      %v994 = vunpack.c.l.b16 %v395
      %v995 = vunpack.c.l.b16 %v396
      %v996 = vunpack.c.l.b16 %v397
      %v997 = vunpack.c.l.b16 %v398
      %v998 = vunpack.c.l.b16 %v399
      %v999 = vunpack.c.l.b16 %v400
      %v1000 = vunpack.c.l.b16 %v401
      %v1001 = vunpack.c.l.b16 %v402
      %v1002 = vunpack.c.l.b16 %v403
      %v1003 = vunpack.c.l.b16 %v404
      %v1004 = vunpack.c.l.b16 %v405
      %v1005 = vunpack.c.l.b16 %v406
      %v1006 = vunpack.c.l.b16 %v407
      %v1007 = vunpack.c.l.b16 %v408
      %v1008 = vunpack.c.l.b16 %v409
      %v1009 = vunpack.c.l.b16 %v410
      %v1010 = vunpack.c.l.b16 %v411
      %v1011 = vunpack.c.l.b16 %v412
      %v1012 = vunpack.c.l.b16 %v413
      %v1013 = vunpack.c.l.b16 %v414
      %v1014 = vunpack.c.l.b16 %v415
      %v1015 = vunpack.c.l.b16 %v416
      %v1016 = vunpack.c.l.b16 %v417
      %v1017 = vunpack.c.l.b16 %v418
      %v1018 = vunpack.c.l.b16 %v419
      %v1019 = vunpack.c.l.b16 %v420
      %v1020 = vunpack.c.l.b16 %v421
      %v1021 = vunpack.c.l.b16 %v422
      %v1022 = vunpack.c.l.b16 %v423
      %v1023 = vunpack.c.l.b16 %v424
      %v1024 = vunpack.c.l.b16 %v425
      %v1025 = vunpack.c.l.b16 %v426
      %v1026 = vunpack.c.l.b16 %v427
      %v1027 = vunpack.c.l.b16 %v428
      %v1028 = vunpack.c.l.b16 %v429
      %v1029 = vunpack.c.l.b16 %v430
      %v1030 = vunpack.c.l.b16 %v431
      %v1031 = vunpack.c.l.b16 %v432
      %v1032 = vunpack.c.l.b16 %v433
      %v1033 = vunpack.c.l.b16 %v434
      %v1034 = vunpack.c.l.b16 %v435
      %v1035 = vunpack.c.l.b16 %v436
      %v1036 = vunpack.c.l.b16 %v437
      %v1037 = vunpack.c.l.b16 %v438
      %v1038 = vunpack.c.l.b16 %v439
      %v1039 = vunpack.c.l.b16 %v440
      %v1040 = vunpack.c.l.b16 %v441
      %v1041 = vunpack.c.l.b16 %v442
      %v1042 = vunpack.c.l.b16 %v443
      %v1043 = vunpack.c.l.b16 %v444
      %v1044 = vunpack.c.l.b16 %v445
      %v1045 = vunpack.c.l.b16 %v446
      %v1046 = vunpack.c.l.b16 %v447
      %v1047 = vunpack.c.l.b16 %v448
      %v1048 = vunpack.c.l.b16 %v449
      %v1049 = vunpack.c.l.b16 %v450
      %v1050 = vunpack.c.l.b16 %v451
      %v1051 = vunpack.c.l.b16 %v452
      %v1052 = vunpack.c.l.b16 %v453
      %v1053 = vunpack.c.l.b16 %v454
      %v1054 = vunpack.c.l.b16 %v455
      %v1055 = vunpack.c.l.b16 %v456
      %v1056 = vunpack.c.l.b16 %v457
      %v1057 = vunpack.c.l.b16 %v458
      %v1058 = vunpack.c.l.b16 %v459
      %v1059 = vunpack.c.l.b16 %v460
      %v1060 = vunpack.c.l.b16 %v461
      %v1061 = vunpack.c.l.b16 %v462
      %v1062 = vunpack.c.l.b16 %v463
      %v1063 = vunpack.c.l.b16 %v464
      %v1064 = vunpack.c.l.b16 %v465
      %v1065 = vunpack.c.l.b16 %v466
      %v1066 = vunpack.c.l.b16 %v467
      %v1067 = vunpack.c.l.b16 %v468
      %v1068 = vunpack.c.l.b16 %v469
      %v1069 = vunpack.c.l.b16 %v470
      %v1070 = vunpack.c.l.b16 %v471
      %v1071 = vunpack.c.l.b16 %v472
      %v1072 = vunpack.c.l.b16 %v473
      %v1073 = vunpack.c.l.b16 %v474
      %v1074 = vunpack.c.l.b16 %v475
      %v1075 = vunpack.c.l.b16 %v476
      %v1076 = vunpack.c.l.b16 %v477
      %v1077 = vunpack.c.l.b16 %v478
      %v1078 = vunpack.c.l.b16 %v479
      %v1079 = vunpack.c.l.b16 %v480
      %v1080 = vunpack.c.l.b16 %v481
      %v1081 = vunpack.c.l.b16 %v482
      %v1082 = vunpack.c.l.b16 %v483
      %v1083 = vunpack.c.l.b16 %v484
      %v1084 = vunpack.c.l.b16 %v485
      %v1085 = vunpack.c.l.b16 %v486
      %v1086 = vunpack.c.l.b16 %v487
      %v1087 = vunpack.c.l.b16 %v488
      %v1088 = vunpack.c.l.b16 %v489
      %v1089 = vunpack.c.l.b16 %v490
      %v1090 = vunpack.c.l.b16 %v491
      %v1091 = vunpack.c.l.b16 %v492
      %v1092 = vunpack.c.l.b16 %v493
      %v1093 = vunpack.c.l.b16 %v494
      %v1094 = vunpack.c.l.b16 %v495
      %v1095 = vunpack.c.l.b16 %v496
      %v1096 = vunpack.c.l.b16 %v497
      %v1097 = vunpack.c.l.b16 %v498
      %v1098 = vunpack.c.l.b16 %v499
      %v1099 = vunpack.c.l.b16 %v500
      %v1100 = vunpack.c.l.b16 %v501
      %v1101 = vunpack.c.l.b16 %v502
      %v1102 = vunpack.c.l.b16 %v503
      %v1103 = vunpack.c.l.b16 %v504
      %v1104 = vunpack.c.l.b16 %v505
      %v1105 = vunpack.c.l.b16 %v506
      %v1106 = vunpack.c.l.b16 %v507
      %v1107 = vunpack.c.l.b16 %v508
      %v1108 = vunpack.c.l.b16 %v509
      %v1109 = vunpack.c.l.b16 %v510
      %v1110 = vunpack.c.l.b16 %v511
      %v1111 = vunpack.c.l.b16 %v512
      %v1112 = vunpack.c.l.b16 %v513
      %v1113 = vunpack.c.l.b16 %v514
      %v1114 = vunpack.c.l.b16 %v515
      %v1115 = vunpack.c.l.b16 %v516
      %v1116 = vunpack.c.l.b16 %v517
      %v1117 = vunpack.c.l.b16 %v518
      %v1118 = vunpack.c.l.b16 %v519
      %v1119 = vunpack.c.l.b16 %v520
      %v1120 = vunpack.c.l.b16 %v521
      %v1121 = vunpack.c.l.b16 %v522
      %v1122 = vunpack.c.l.b16 %v523
      %v1123 = vunpack.c.l.b16 %v524
      %v1124 = vunpack.c.l.b16 %v525
      %v1125 = vunpack.c.l.b16 %v526
      %v1126 = vunpack.c.l.b16 %v527
      %v1127 = vunpack.c.l.b16 %v528
      %v1128 = vunpack.c.l.b16 %v529
      %v1129 = vunpack.c.l.b16 %v530
      %v1130 = vunpack.c.l.b16 %v531
      %v1131 = vunpack.c.l.b16 %v532
      %v1132 = vunpack.c.l.b16 %v533
      %v1133 = vunpack.c.l.b16 %v534
      %v1134 = vunpack.c.l.b16 %v535
      %v1135 = vunpack.c.l.b16 %v536
      %v1136 = vunpack.c.l.b16 %v537
      %v1137 = vunpack.c.l.b16 %v538
      %v1138 = vunpack.c.l.b16 %v539
      %v1139 = vunpack.c.l.b16 %v540
      %v1140 = vunpack.c.l.b16 %v541
      %v1141 = vunpack.c.l.b16 %v542
      %v1142 = vunpack.c.l.b16 %v543
      %v1143 = vunpack.c.l.b16 %v544
      %v1144 = vunpack.c.l.b16 %v545
      %v1145 = vunpack.c.l.b16 %v546
      %v1146 = vunpack.c.l.b16 %v547
      %v1147 = vunpack.c.l.b16 %v548
      %v1148 = vunpack.c.l.b16 %v549
      %v1149 = vunpack.c.l.b16 %v550
      %v1150 = vunpack.c.l.b16 %v551
      %v1151 = vunpack.c.l.b16 %v552
      %v1152 = vunpack.c.l.b16 %v553
      %v1153 = vunpack.c.l.b16 %v554
      %v1154 = vunpack.c.l.b16 %v555
      %v1155 = vunpack.c.l.b16 %v556
      %v1156 = vunpack.c.l.b16 %v557
      %v1157 = vpack.c.b16 %v902, %v901
      %v1158 = vpack.c.b16 %v904, %v903
      %v1159 = vpack.c.b16 %v906, %v905
      %v1160 = vpack.c.b16 %v908, %v907
      %v1161 = vpack.c.b16 %v910, %v909
      %v1162 = vpack.c.b16 %v912, %v911
      %v1163 = vpack.c.b16 %v914, %v913
      %v1164 = vpack.c.b16 %v916, %v915
      %v1165 = vpack.c.b16 %v918, %v917
      %v1166 = vpack.c.b16 %v920, %v919
      %v1167 = vpack.c.b16 %v922, %v921
      %v1168 = vpack.c.b16 %v924, %v923
      %v1169 = vpack.c.b16 %v926, %v925
      %v1170 = vpack.c.b16 %v928, %v927
      %v1171 = vpack.c.b16 %v930, %v929
      %v1172 = vpack.c.b16 %v932, %v931
      %v1173 = vpack.c.b16 %v934, %v933
      %v1174 = vpack.c.b16 %v936, %v935
      %v1175 = vpack.c.b16 %v938, %v937
      %v1176 = vpack.c.b16 %v940, %v939
      %v1177 = vpack.c.b16 %v942, %v941
      %v1178 = vpack.c.b16 %v944, %v943
      %v1179 = vpack.c.b16 %v946, %v945
      %v1180 = vpack.c.b16 %v948, %v947
      %v1181 = vpack.c.b16 %v950, %v949
      %v1182 = vpack.c.b16 %v952, %v951
      %v1183 = vpack.c.b16 %v954, %v953
      %v1184 = vpack.c.b16 %v956, %v955
      %v1185 = vpack.c.b16 %v958, %v957
      %v1186 = vpack.c.b16 %v960, %v959
      %v1187 = vpack.c.b16 %v962, %v961
      %v1188 = vpack.c.b16 %v964, %v963
      %v1189 = vpack.c.b16 %v966, %v965
      %v1190 = vpack.c.b16 %v968, %v967
      %v1191 = vpack.c.b16 %v970, %v969
      %v1192 = vpack.c.b16 %v972, %v971
      %v1193 = vpack.c.b16 %v974, %v973
      %v1194 = vpack.c.b16 %v976, %v975
      %v1195 = vpack.c.b16 %v978, %v977
      %v1196 = vpack.c.b16 %v980, %v979
      %v1197 = vpack.c.b16 %v982, %v981
      %v1198 = vpack.c.b16 %v984, %v983
      %v1199 = vpack.c.b16 %v986, %v985
      %v1200 = vpack.c.b16 %v988, %v987
      %v1201 = vpack.c.b16 %v990, %v989
      %v1202 = vpack.c.b16 %v992, %v991
      %v1203 = vpack.c.b16 %v994, %v993
      %v1204 = vpack.c.b16 %v996, %v995
      %v1205 = vpack.c.b16 %v998, %v997
      %v1206 = vpack.c.b16 %v1000, %v999
      %v1207 = vpack.c.b16 %v1002, %v1001
      %v1208 = vpack.c.b16 %v1004, %v1003
      %v1209 = vpack.c.b16 %v1006, %v1005
      %v1210 = vpack.c.b16 %v1008, %v1007
      %v1211 = vpack.c.b16 %v1010, %v1009
      %v1212 = vpack.c.b16 %v1012, %v1011
      %v1213 = vpack.c.b16 %v1014, %v1013
      %v1214 = vpack.c.b16 %v1016, %v1015
      %v1215 = vpack.c.b16 %v1018, %v1017
      %v1216 = vpack.c.b16 %v1020, %v1019
      %v1217 = vpack.c.b16 %v1022, %v1021
      %v1218 = vpack.c.b16 %v1024, %v1023
      %v1219 = vpack.c.b16 %v1026, %v1025
      %v1220 = vpack.c.b16 %v1028, %v1027
      %v1221 = vpack.c.b16 %v1030, %v1029
      %v1222 = vpack.c.b16 %v1032, %v1031
      %v1223 = vpack.c.b16 %v1034, %v1033
      %v1224 = vpack.c.b16 %v1036, %v1035
      %v1225 = vpack.c.b16 %v1038, %v1037
      %v1226 = vpack.c.b16 %v1040, %v1039
      %v1227 = vpack.c.b16 %v1042, %v1041
      %v1228 = vpack.c.b16 %v1044, %v1043
      %v1229 = vpack.c.b16 %v1046, %v1045
      %v1230 = vpack.c.b16 %v1048, %v1047
      %v1231 = vpack.c.b16 %v1050, %v1049
      %v1232 = vpack.c.b16 %v1052, %v1051
      %v1233 = vpack.c.b16 %v1054, %v1053
      %v1234 = vpack.c.b16 %v1056, %v1055
      %v1235 = vpack.c.b16 %v1058, %v1057
      %v1236 = vpack.c.b16 %v1060, %v1059
      %v1237 = vpack.c.b16 %v1062, %v1061
      %v1238 = vpack.c.b16 %v1064, %v1063
      %v1239 = vpack.c.b16 %v1066, %v1065
      %v1240 = vpack.c.b16 %v1068, %v1067
      %v1241 = vpack.c.b16 %v1070, %v1069
      %v1242 = vpack.c.b16 %v1072, %v1071
      %v1243 = vpack.c.b16 %v1074, %v1073
      %v1244 = vpack.c.b16 %v1076, %v1075
      %v1245 = vpack.c.b16 %v1078, %v1077
      %v1246 = vpack.c.b16 %v1080, %v1079
      %v1247 = vpack.c.b16 %v1082, %v1081
      %v1248 = vpack.c.b16 %v1084, %v1083
      %v1249 = vpack.c.b16 %v1086, %v1085
      %v1250 = vpack.c.b16 %v1088, %v1087
      %v1251 = vpack.c.b16 %v1090, %v1089
      %v1252 = vpack.c.b16 %v1092, %v1091
      %v1253 = vpack.c.b16 %v1094, %v1093
      %v1254 = vpack.c.b16 %v1096, %v1095
      %v1255 = vpack.c.b16 %v1098, %v1097
      %v1256 = vpack.c.b16 %v1100, %v1099
      %v1257 = vpack.c.b16 %v1102, %v1101
      %v1258 = vpack.c.b16 %v1104, %v1103
      %v1259 = vpack.c.b16 %v1106, %v1105
      %v1260 = vpack.c.b16 %v1108, %v1107
      %v1261 = vpack.c.b16 %v1110, %v1109
      %v1262 = vpack.c.b16 %v1112, %v1111
      %v1263 = vpack.c.b16 %v1114, %v1113
      %v1264 = vpack.c.b16 %v1116, %v1115
      %v1265 = vpack.c.b16 %v1118, %v1117
      %v1266 = vpack.c.b16 %v1120, %v1119
      %v1267 = vpack.c.b16 %v1122, %v1121
      %v1268 = vpack.c.b16 %v1124, %v1123
      %v1269 = vpack.c.b16 %v1126, %v1125
      %v1270 = vpack.c.b16 %v1128, %v1127
      %v1271 = vpack.c.b16 %v1130, %v1129
      %v1272 = vpack.c.b16 %v1132, %v1131
      %v1273 = vpack.c.b16 %v1134, %v1133
      %v1274 = vpack.c.b16 %v1136, %v1135
      %v1275 = vpack.c.b16 %v1138, %v1137
      %v1276 = vpack.c.b16 %v1140, %v1139
      %v1277 = vpack.c.b16 %v1142, %v1141
      %v1278 = vpack.c.b16 %v1144, %v1143
      %v1279 = vpack.c.b16 %v1146, %v1145
      %v1280 = vpack.c.b16 %v1148, %v1147
      %v1281 = vpack.c.b16 %v1150, %v1149
      %v1282 = vpack.c.b16 %v1152, %v1151
      %v1283 = vpack.c.b16 %v1154, %v1153
      %v1284 = vpack.c.b16 %v1156, %v1155
      %1413 = vmatprep.subr.bf16.mxu0 0
      %1414 = vmatpush1.bf16.msra.mxu0 %v1164
      %1415 = vmatprep.subr.bf16.mxu0 0
      %1416 = vmatpush1.bf16.msra.mxu0 %v1163
      %1417 = vmatprep.subr.bf16.mxu0 0
      %1418 = vmatpush1.bf16.msra.mxu0 %v1162
      %1419 = vmatprep.subr.bf16.mxu0 0
      %1420 = vmatpush1.bf16.msra.mxu0 %v1161
      %1421 = vmatprep.subr.bf16.mxu0 0
      %1422 = vmatpush1.bf16.msra.mxu0 %v1160
      %1423 = vmatprep.subr.bf16.mxu0 0
      %1424 = vmatpush1.bf16.msra.mxu0 %v1159
      %1425 = vmatprep.subr.bf16.mxu0 0
      %1426 = vmatpush1.bf16.msra.mxu0 %v1158
      %1427 = vmatprep.subr.bf16.mxu0 0
      %1428 = vmatpush1.bf16.msra.mxu0 %v1157
      %1429 = vmatprep.subr.bf16.mxu0 0
      %1430 = vmatpush2.bf16.msra.mxu0 %v1172
      %1431 = vmatprep.subr.bf16.mxu0 0
      %1432 = vmatpush2.bf16.msra.mxu0 %v1171
      %1433 = vmatprep.subr.bf16.mxu0 0
      %1434 = vmatpush2.bf16.msra.mxu0 %v1170
      %1435 = vmatprep.subr.bf16.mxu0 0
      %1436 = vmatpush2.bf16.msra.mxu0 %v1169
      %1437 = vmatprep.subr.bf16.mxu0 0
      %1438 = vmatpush2.bf16.msra.mxu0 %v1168
      %1439 = vmatprep.subr.bf16.mxu0 0
      %1440 = vmatpush2.bf16.msra.mxu0 %v1167
      %1441 = vmatprep.subr.bf16.mxu0 0
      %1442 = vmatpush2.bf16.msra.mxu0 %v1166
      %1443 = vmatprep.subr.bf16.mxu0 0
      %1444 = vmatpush2.bf16.msra.mxu0 %v1165
      %1445 = vmatprep.mubr.bf16.mxu0 %v614
      %1446 = vmatmul.mubr.bf16.gmra.mxu0 %v613
      %v1447 = vpop.f32.mrf.mxu0
      %v1448 = vadd.f32 %v563, %v1447
      %v1449 = vpop.f32.mrf.mxu0
      %v1450 = vpop.f32.mrf.mxu0
      %v1451 = vadd.f32 %v563, %v1450
      %v1452 = vpop.f32.mrf.mxu0
      %1453 = vdwg.mxu0
      %1454 = vmatprep.subr.bf16.mxu0 0
      %1455 = vmatpush1.bf16.msra.mxu0 %v1180
      %1456 = vmatprep.subr.bf16.mxu0 0
      %1457 = vmatpush1.bf16.msra.mxu0 %v1179
      %1458 = vmatprep.subr.bf16.mxu0 0
      %1459 = vmatpush1.bf16.msra.mxu0 %v1178
      %1460 = vmatprep.subr.bf16.mxu0 0
      %1461 = vmatpush1.bf16.msra.mxu0 %v1177
      %1462 = vmatprep.subr.bf16.mxu0 0
      %1463 = vmatpush1.bf16.msra.mxu0 %v1176
      %1464 = vmatprep.subr.bf16.mxu0 0
      %1465 = vmatpush1.bf16.msra.mxu0 %v1175
      %1466 = vmatprep.subr.bf16.mxu0 0
      %1467 = vmatpush1.bf16.msra.mxu0 %v1174
      %1468 = vmatprep.subr.bf16.mxu0 0
      %1469 = vmatpush1.bf16.msra.mxu0 %v1173
      %1470 = vmatprep.subr.bf16.mxu0 0
      %1471 = vmatpush2.bf16.msra.mxu0 %v1188
      %1472 = vmatprep.subr.bf16.mxu0 0
      %1473 = vmatpush2.bf16.msra.mxu0 %v1187
      %1474 = vmatprep.subr.bf16.mxu0 0
      %1475 = vmatpush2.bf16.msra.mxu0 %v1186
      %1476 = vmatprep.subr.bf16.mxu0 0
      %1477 = vmatpush2.bf16.msra.mxu0 %v1185
      %1478 = vmatprep.subr.bf16.mxu0 0
      %1479 = vmatpush2.bf16.msra.mxu0 %v1184
      %1480 = vmatprep.subr.bf16.mxu0 0
      %1481 = vmatpush2.bf16.msra.mxu0 %v1183
      %1482 = vmatprep.subr.bf16.mxu0 0
      %1483 = vmatpush2.bf16.msra.mxu0 %v1182
      %1484 = vmatprep.subr.bf16.mxu0 0
      %1485 = vmatpush2.bf16.msra.mxu0 %v1181
      %1486 = vmatprep.mubr.bf16.mxu0 %v616
      %1487 = vmatmul.mubr.bf16.gmra.mxu0 %v615
      %v1488 = vpop.f32.mrf.mxu0
      %v1489 = vadd.f32 %v1448, %v1488
      %v1490 = vpop.f32.mrf.mxu0
      %v1491 = vpop.f32.mrf.mxu0
      %v1492 = vadd.f32 %v1451, %v1491
      %v1493 = vpop.f32.mrf.mxu0
      %1494 = vdwg.mxu0
      %1495 = vmatprep.subr.bf16.mxu0 0
      %1496 = vmatpush1.bf16.msra.mxu0 %v1196
      %1497 = vmatprep.subr.bf16.mxu0 0
      %1498 = vmatpush1.bf16.msra.mxu0 %v1195
      %1499 = vmatprep.subr.bf16.mxu0 0
      %1500 = vmatpush1.bf16.msra.mxu0 %v1194
      %1501 = vmatprep.subr.bf16.mxu0 0
      %1502 = vmatpush1.bf16.msra.mxu0 %v1193
      %1503 = vmatprep.subr.bf16.mxu0 0
      %1504 = vmatpush1.bf16.msra.mxu0 %v1192
      %1505 = vmatprep.subr.bf16.mxu0 0
      %1506 = vmatpush1.bf16.msra.mxu0 %v1191
      %1507 = vmatprep.subr.bf16.mxu0 0
      %1508 = vmatpush1.bf16.msra.mxu0 %v1190
      %1509 = vmatprep.subr.bf16.mxu0 0
      %1510 = vmatpush1.bf16.msra.mxu0 %v1189
      %1511 = vmatprep.subr.bf16.mxu0 0
      %1512 = vmatpush2.bf16.msra.mxu0 %v1204
      %1513 = vmatprep.subr.bf16.mxu0 0
      %1514 = vmatpush2.bf16.msra.mxu0 %v1203
      %1515 = vmatprep.subr.bf16.mxu0 0
      %1516 = vmatpush2.bf16.msra.mxu0 %v1202
      %1517 = vmatprep.subr.bf16.mxu0 0
      %1518 = vmatpush2.bf16.msra.mxu0 %v1201
      %1519 = vmatprep.subr.bf16.mxu0 0
      %1520 = vmatpush2.bf16.msra.mxu0 %v1200
      %1521 = vmatprep.subr.bf16.mxu0 0
      %1522 = vmatpush2.bf16.msra.mxu0 %v1199
      %1523 = vmatprep.subr.bf16.mxu0 0
      %1524 = vmatpush2.bf16.msra.mxu0 %v1198
      %1525 = vmatprep.subr.bf16.mxu0 0
      %1526 = vmatpush2.bf16.msra.mxu0 %v1197
      %1527 = vmatprep.mubr.bf16.mxu0 %v618
      %1528 = vmatmul.mubr.bf16.gmra.mxu0 %v617
      %v1529 = vpop.f32.mrf.mxu0
      %v1530 = vadd.f32 %v1489, %v1529
      %v1531 = vpop.f32.mrf.mxu0
      %v1532 = vpop.f32.mrf.mxu0
      %v1533 = vadd.f32 %v1492, %v1532
      %v1534 = vpop.f32.mrf.mxu0
      %1535 = vdwg.mxu0
      %1536 = vmatprep.subr.bf16.mxu0 0
      %1537 = vmatpush1.bf16.msra.mxu0 %v1212
      %1538 = vmatprep.subr.bf16.mxu0 0
      %1539 = vmatpush1.bf16.msra.mxu0 %v1211
      %1540 = vmatprep.subr.bf16.mxu0 0
      %1541 = vmatpush1.bf16.msra.mxu0 %v1210
      %1542 = vmatprep.subr.bf16.mxu0 0
      %1543 = vmatpush1.bf16.msra.mxu0 %v1209
      %1544 = vmatprep.subr.bf16.mxu0 0
      %1545 = vmatpush1.bf16.msra.mxu0 %v1208
      %1546 = vmatprep.subr.bf16.mxu0 0
      %1547 = vmatpush1.bf16.msra.mxu0 %v1207
      %1548 = vmatprep.subr.bf16.mxu0 0
      %1549 = vmatpush1.bf16.msra.mxu0 %v1206
      %1550 = vmatprep.subr.bf16.mxu0 0
      %1551 = vmatpush1.bf16.msra.mxu0 %v1205
      %1552 = vmatprep.subr.bf16.mxu0 0
      %1553 = vmatpush2.bf16.msra.mxu0 %v1220
      %1554 = vmatprep.subr.bf16.mxu0 0
      %1555 = vmatpush2.bf16.msra.mxu0 %v1219
      %1556 = vmatprep.subr.bf16.mxu0 0
      %1557 = vmatpush2.bf16.msra.mxu0 %v1218
      %1558 = vmatprep.subr.bf16.mxu0 0
      %1559 = vmatpush2.bf16.msra.mxu0 %v1217
      %1560 = vmatprep.subr.bf16.mxu0 0
      %1561 = vmatpush2.bf16.msra.mxu0 %v1216
      %1562 = vmatprep.subr.bf16.mxu0 0
      %1563 = vmatpush2.bf16.msra.mxu0 %v1215
      %1564 = vmatprep.subr.bf16.mxu0 0
      %1565 = vmatpush2.bf16.msra.mxu0 %v1214
      %1566 = vmatprep.subr.bf16.mxu0 0
      %1567 = vmatpush2.bf16.msra.mxu0 %v1213
      %1568 = vmatprep.mubr.bf16.mxu0 %v620
      %1569 = vmatmul.mubr.bf16.gmra.mxu0 %v619
      %v1570 = vpop.f32.mrf.mxu0
      %v1571 = vadd.f32 %v1530, %v1570
      %v1572 = vpop.f32.mrf.mxu0
      %v1573 = vpop.f32.mrf.mxu0
      %v1574 = vadd.f32 %v1533, %v1573
      %v1575 = vpop.f32.mrf.mxu0
      %1576 = vdwg.mxu0
      %1577 = vmatprep.subr.bf16.mxu0 0
      %1578 = vmatpush1.bf16.msra.mxu0 %v1228
      %1579 = vmatprep.subr.bf16.mxu0 0
      %1580 = vmatpush1.bf16.msra.mxu0 %v1227
      %1581 = vmatprep.subr.bf16.mxu0 0
      %1582 = vmatpush1.bf16.msra.mxu0 %v1226
      %1583 = vmatprep.subr.bf16.mxu0 0
      %1584 = vmatpush1.bf16.msra.mxu0 %v1225
      %1585 = vmatprep.subr.bf16.mxu0 0
      %1586 = vmatpush1.bf16.msra.mxu0 %v1224
      %1587 = vmatprep.subr.bf16.mxu0 0
      %1588 = vmatpush1.bf16.msra.mxu0 %v1223
      %1589 = vmatprep.subr.bf16.mxu0 0
      %1590 = vmatpush1.bf16.msra.mxu0 %v1222
      %1591 = vmatprep.subr.bf16.mxu0 0
      %1592 = vmatpush1.bf16.msra.mxu0 %v1221
      %1593 = vmatprep.subr.bf16.mxu0 0
      %1594 = vmatpush2.bf16.msra.mxu0 %v1236
      %1595 = vmatprep.subr.bf16.mxu0 0
      %1596 = vmatpush2.bf16.msra.mxu0 %v1235
      %1597 = vmatprep.subr.bf16.mxu0 0
      %1598 = vmatpush2.bf16.msra.mxu0 %v1234
      %1599 = vmatprep.subr.bf16.mxu0 0
      %1600 = vmatpush2.bf16.msra.mxu0 %v1233
      %1601 = vmatprep.subr.bf16.mxu0 0
      %1602 = vmatpush2.bf16.msra.mxu0 %v1232
      %1603 = vmatprep.subr.bf16.mxu0 0
      %1604 = vmatpush2.bf16.msra.mxu0 %v1231
      %1605 = vmatprep.subr.bf16.mxu0 0
      %1606 = vmatpush2.bf16.msra.mxu0 %v1230
      %1607 = vmatprep.subr.bf16.mxu0 0
      %1608 = vmatpush2.bf16.msra.mxu0 %v1229
      %1609 = vmatprep.mubr.bf16.mxu0 %v622
      %1610 = vmatmul.mubr.bf16.gmra.mxu0 %v621
      %v1611 = vpop.f32.mrf.mxu0
      %v1612 = vadd.f32 %v1571, %v1611
      %v1613 = vpop.f32.mrf.mxu0
      %v1614 = vpop.f32.mrf.mxu0
      %v1615 = vadd.f32 %v1574, %v1614
      %v1616 = vpop.f32.mrf.mxu0
      %1617 = vdwg.mxu0
      %1618 = vmatprep.subr.bf16.mxu0 0
      %1619 = vmatpush1.bf16.msra.mxu0 %v1244
      %1620 = vmatprep.subr.bf16.mxu0 0
      %1621 = vmatpush1.bf16.msra.mxu0 %v1243
      %1622 = vmatprep.subr.bf16.mxu0 0
      %1623 = vmatpush1.bf16.msra.mxu0 %v1242
      %1624 = vmatprep.subr.bf16.mxu0 0
      %1625 = vmatpush1.bf16.msra.mxu0 %v1241
      %1626 = vmatprep.subr.bf16.mxu0 0
      %1627 = vmatpush1.bf16.msra.mxu0 %v1240
      %1628 = vmatprep.subr.bf16.mxu0 0
      %1629 = vmatpush1.bf16.msra.mxu0 %v1239
      %1630 = vmatprep.subr.bf16.mxu0 0
      %1631 = vmatpush1.bf16.msra.mxu0 %v1238
      %1632 = vmatprep.subr.bf16.mxu0 0
      %1633 = vmatpush1.bf16.msra.mxu0 %v1237
      %1634 = vmatprep.subr.bf16.mxu0 0
      %1635 = vmatpush2.bf16.msra.mxu0 %v1252
      %1636 = vmatprep.subr.bf16.mxu0 0
      %1637 = vmatpush2.bf16.msra.mxu0 %v1251
      %1638 = vmatprep.subr.bf16.mxu0 0
      %1639 = vmatpush2.bf16.msra.mxu0 %v1250
      %1640 = vmatprep.subr.bf16.mxu0 0
      %1641 = vmatpush2.bf16.msra.mxu0 %v1249
      %1642 = vmatprep.subr.bf16.mxu0 0
      %1643 = vmatpush2.bf16.msra.mxu0 %v1248
      %1644 = vmatprep.subr.bf16.mxu0 0
      %1645 = vmatpush2.bf16.msra.mxu0 %v1247
      %1646 = vmatprep.subr.bf16.mxu0 0
      %1647 = vmatpush2.bf16.msra.mxu0 %v1246
      %1648 = vmatprep.subr.bf16.mxu0 0
      %1649 = vmatpush2.bf16.msra.mxu0 %v1245
      %1650 = vmatprep.mubr.bf16.mxu0 %v624
      %1651 = vmatmul.mubr.bf16.gmra.mxu0 %v623
      %v1652 = vpop.f32.mrf.mxu0
      %v1653 = vadd.f32 %v1612, %v1652
      %v1654 = vpop.f32.mrf.mxu0
      %v1655 = vpop.f32.mrf.mxu0
      %v1656 = vadd.f32 %v1615, %v1655
      %v1657 = vpop.f32.mrf.mxu0
      %1658 = vdwg.mxu0
      %1659 = vmatprep.subr.bf16.mxu0 0
      %1660 = vmatpush1.bf16.msra.mxu0 %v1260
      %1661 = vmatprep.subr.bf16.mxu0 0
      %1662 = vmatpush1.bf16.msra.mxu0 %v1259
      %1663 = vmatprep.subr.bf16.mxu0 0
      %1664 = vmatpush1.bf16.msra.mxu0 %v1258
      %1665 = vmatprep.subr.bf16.mxu0 0
      %1666 = vmatpush1.bf16.msra.mxu0 %v1257
      %1667 = vmatprep.subr.bf16.mxu0 0
      %1668 = vmatpush1.bf16.msra.mxu0 %v1256
      %1669 = vmatprep.subr.bf16.mxu0 0
      %1670 = vmatpush1.bf16.msra.mxu0 %v1255
      %1671 = vmatprep.subr.bf16.mxu0 0
      %1672 = vmatpush1.bf16.msra.mxu0 %v1254
      %1673 = vmatprep.subr.bf16.mxu0 0
      %1674 = vmatpush1.bf16.msra.mxu0 %v1253
      %1675 = vmatprep.subr.bf16.mxu0 0
      %1676 = vmatpush2.bf16.msra.mxu0 %v1268
      %1677 = vmatprep.subr.bf16.mxu0 0
      %1678 = vmatpush2.bf16.msra.mxu0 %v1267
      %1679 = vmatprep.subr.bf16.mxu0 0
      %1680 = vmatpush2.bf16.msra.mxu0 %v1266
      %1681 = vmatprep.subr.bf16.mxu0 0
      %1682 = vmatpush2.bf16.msra.mxu0 %v1265
      %1683 = vmatprep.subr.bf16.mxu0 0
      %1684 = vmatpush2.bf16.msra.mxu0 %v1264
      %1685 = vmatprep.subr.bf16.mxu0 0
      %1686 = vmatpush2.bf16.msra.mxu0 %v1263
      %1687 = vmatprep.subr.bf16.mxu0 0
      %1688 = vmatpush2.bf16.msra.mxu0 %v1262
      %1689 = vmatprep.subr.bf16.mxu0 0
      %1690 = vmatpush2.bf16.msra.mxu0 %v1261
      %1691 = vmatprep.mubr.bf16.mxu0 %v626
      %1692 = vmatmul.mubr.bf16.gmra.mxu0 %v625
      %v1693 = vpop.f32.mrf.mxu0
      %v1694 = vadd.f32 %v1653, %v1693
      %v1695 = vpop.f32.mrf.mxu0
      %v1696 = vpop.f32.mrf.mxu0
      %v1697 = vadd.f32 %v1656, %v1696
      %v1698 = vpop.f32.mrf.mxu0
      %1699 = vdwg.mxu0
      %1700 = vmatprep.subr.bf16.mxu0 0
      %1701 = vmatpush1.bf16.msra.mxu0 %v1276
      %1702 = vmatprep.subr.bf16.mxu0 0
      %1703 = vmatpush1.bf16.msra.mxu0 %v1275
      %1704 = vmatprep.subr.bf16.mxu0 0
      %1705 = vmatpush1.bf16.msra.mxu0 %v1274
      %1706 = vmatprep.subr.bf16.mxu0 0
      %1707 = vmatpush1.bf16.msra.mxu0 %v1273
      %1708 = vmatprep.subr.bf16.mxu0 0
      %1709 = vmatpush1.bf16.msra.mxu0 %v1272
      %1710 = vmatprep.subr.bf16.mxu0 0
      %1711 = vmatpush1.bf16.msra.mxu0 %v1271
      %1712 = vmatprep.subr.bf16.mxu0 0
      %1713 = vmatpush1.bf16.msra.mxu0 %v1270
      %1714 = vmatprep.subr.bf16.mxu0 0
      %1715 = vmatpush1.bf16.msra.mxu0 %v1269
      %1716 = vmatprep.subr.bf16.mxu0 0
      %1717 = vmatpush2.bf16.msra.mxu0 %v1284
      %1718 = vmatprep.subr.bf16.mxu0 0
      %1719 = vmatpush2.bf16.msra.mxu0 %v1283
      %1720 = vmatprep.subr.bf16.mxu0 0
      %1721 = vmatpush2.bf16.msra.mxu0 %v1282
      %1722 = vmatprep.subr.bf16.mxu0 0
      %1723 = vmatpush2.bf16.msra.mxu0 %v1281
      %1724 = vmatprep.subr.bf16.mxu0 0
      %1725 = vmatpush2.bf16.msra.mxu0 %v1280
      %1726 = vmatprep.subr.bf16.mxu0 0
      %1727 = vmatpush2.bf16.msra.mxu0 %v1279
      %1728 = vmatprep.subr.bf16.mxu0 0
      %1729 = vmatpush2.bf16.msra.mxu0 %v1278
      %1730 = vmatprep.subr.bf16.mxu0 0
      %1731 = vmatpush2.bf16.msra.mxu0 %v1277
      %1732 = vmatprep.mubr.bf16.mxu0 %v628
      %1733 = vmatmul.mubr.bf16.gmra.mxu0 %v627
      %v1734 = vpop.f32.mrf.mxu0
      %v1735 = vadd.f32 %v1694, %v1734
      %v1736 = vpop.f32.mrf.mxu0
      %v1737 = vpop.f32.mrf.mxu0
      %v1738 = vadd.f32 %v1697, %v1737
      %v1739 = vpop.f32.mrf.mxu0
      %1740 = vdwg.mxu0
      %v1741 = vmax.f32 %v1735, 0.0
      %v1742 = vmax.f32 %v1738, 0.0
      %v1743 = vpack.c.bf16 %v1742, %v1741
      %v1744 = vld [vmem:[%s3] sm:$0xf]
      %v1745 = vld [vmem:[%s3 + $0x4] sm:$0xf]
      %v1746 = vld [vmem:[%s3 + $0x8] sm:$0xf]
      %v1747 = vld [vmem:[%s3 + $0xc] sm:$0xf]
      %v1748 = vld [vmem:[%s3 + $0x10] sm:$0xf]
      %v1749 = vld [vmem:[%s3 + $0x14] sm:$0xf]
      %v1750 = vld [vmem:[%s3 + $0x18] sm:$0xf]
      %v1751 = vld [vmem:[%s3 + $0x1c] sm:$0xf]
      %v1752 = vld [vmem:[%s3 + $0x20] sm:$0xf]
      %v1753 = vld [vmem:[%s3 + $0x24] sm:$0xf]
      %v1754 = vld [vmem:[%s3 + $0x28] sm:$0xf]
      %v1755 = vld [vmem:[%s3 + $0x2c] sm:$0xf]
      %v1756 = vld [vmem:[%s3 + $0x30] sm:$0xf]
      %v1757 = vld [vmem:[%s3 + $0x34] sm:$0xf]
      %v1758 = vld [vmem:[%s3 + $0x38] sm:$0xf]
      %v1759 = vld [vmem:[%s3 + $0x3c] sm:$0xf]
      %v1760 = vld [vmem:[%s4] sm:$0x1]
      %v1762 = vlaneseq
      %v1763 = vshrl.u32 %v1762, 7
      %v1764 = vsub.s32 0, %v1763
      %v1765 = vrot.slane %v1760, %v1764
      %v1783 = vunpack.c.l.b16 %v1744
      %v1784 = vunpack.c.l.b16 %v1745
      %v1785 = vunpack.c.l.b16 %v1746
      %v1786 = vunpack.c.l.b16 %v1747
      %v1787 = vunpack.c.l.b16 %v1748
      %v1788 = vunpack.c.l.b16 %v1749
      %v1789 = vunpack.c.l.b16 %v1750
      %v1790 = vunpack.c.l.b16 %v1751
      %v1791 = vunpack.c.l.b16 %v1752
      %v1792 = vunpack.c.l.b16 %v1753
      %v1793 = vunpack.c.l.b16 %v1754
      %v1794 = vunpack.c.l.b16 %v1755
      %v1795 = vunpack.c.l.b16 %v1756
      %v1796 = vunpack.c.l.b16 %v1757
      %v1797 = vunpack.c.l.b16 %v1758
      %v1798 = vunpack.c.l.b16 %v1759
      %v1799 = vpack.c.b16 %v1784, %v1783
      %v1800 = vpack.c.b16 %v1786, %v1785
      %v1801 = vpack.c.b16 %v1788, %v1787
      %v1802 = vpack.c.b16 %v1790, %v1789
      %v1803 = vpack.c.b16 %v1792, %v1791
      %v1804 = vpack.c.b16 %v1794, %v1793
      %v1805 = vpack.c.b16 %v1796, %v1795
      %v1806 = vpack.c.b16 %v1798, %v1797
      %1815 = vmatprep.subr.bf16.mxu0 0
      %1816 = vmatpush1.bf16.msra.mxu0 %v1806
      %1817 = vmatprep.subr.bf16.mxu0 0
      %1818 = vmatpush1.bf16.msra.mxu0 %v1805
      %1819 = vmatprep.subr.bf16.mxu0 0
      %1820 = vmatpush1.bf16.msra.mxu0 %v1804
      %1821 = vmatprep.subr.bf16.mxu0 0
      %1822 = vmatpush1.bf16.msra.mxu0 %v1803
      %1823 = vmatprep.subr.bf16.mxu0 0
      %1824 = vmatpush1.bf16.msra.mxu0 %v1802
      %1825 = vmatprep.subr.bf16.mxu0 0
      %1826 = vmatpush1.bf16.msra.mxu0 %v1801
      %1827 = vmatprep.subr.bf16.mxu0 0
      %1828 = vmatpush1.bf16.msra.mxu0 %v1800
      %1829 = vmatprep.subr.bf16.mxu0 0
      %1830 = vmatpush1.bf16.msra.mxu0 %v1799
      %1831 = vmatprep.subr.bf16.mxu0 0
      %1832 = vmatpush2.bf16.msra.mxu0 0
      %1833 = vmatprep.subr.bf16.mxu0 0
      %1834 = vmatpush2.bf16.msra.mxu0 0
      %1835 = vmatprep.subr.bf16.mxu0 0
      %1836 = vmatpush2.bf16.msra.mxu0 0
      %1837 = vmatprep.subr.bf16.mxu0 0
      %1838 = vmatpush2.bf16.msra.mxu0 0
      %1839 = vmatprep.subr.bf16.mxu0 0
      %1840 = vmatpush2.bf16.msra.mxu0 0
      %1841 = vmatprep.subr.bf16.mxu0 0
      %1842 = vmatpush2.bf16.msra.mxu0 0
      %1843 = vmatprep.subr.bf16.mxu0 0
      %1844 = vmatpush2.bf16.msra.mxu0 0
      %1845 = vmatprep.subr.bf16.mxu0 0
      %1846 = vmatpush2.bf16.msra.mxu0 0
      %1847 = vmatprep.mubr.bf16.mxu0 0
      %1848 = vmatmul.mubr.bf16.gmra.mxu0 %v1743
      %v1849 = vpop.f32.mrf.mxu0
      %v1850 = vadd.f32 %v1765, %v1849
      %v1851 = vpop.f32.mrf.mxu0
      %v1852 = vpop.f32.mrf.mxu0
      %v1853 = vadd.f32 %v1765, %v1852
      %v1854 = vpop.f32.mrf.mxu0
      %1855 = vdwg.mxu0
      %v1856 = vmax.f32 %v1850, 0.0
      %v1857 = vmax.f32 %v1853, 0.0
      %v1858 = vpack.c.bf16 %v1857, %v1856
      %v1859 = vld [vmem:[%s5] sm:$0xf]
      %v1860 = vld [vmem:[%s5 + $0x4] sm:$0xf]
      %v1861 = vld [vmem:[%s5 + $0x8] sm:$0xf]
      %v1862 = vld [vmem:[%s5 + $0xc] sm:$0xf]
      %v1863 = vld [vmem:[%s5 + $0x10] sm:$0xf]
      %v1864 = vld [vmem:[%s5 + $0x14] sm:$0xf]
      %v1865 = vld [vmem:[%s5 + $0x18] sm:$0xf]
      %v1866 = vld [vmem:[%s5 + $0x1c] sm:$0xf]
      %v1867 = vld [vmem:[%s5 + $0x20] sm:$0xf]
      %v1868 = vld [vmem:[%s5 + $0x24] sm:$0xf]
      %v1869 = vld [vmem:[%s5 + $0x28] sm:$0xf]
      %v1870 = vld [vmem:[%s5 + $0x2c] sm:$0xf]
      %v1871 = vld [vmem:[%s5 + $0x30] sm:$0xf]
      %v1872 = vld [vmem:[%s5 + $0x34] sm:$0xf]
      %v1873 = vld [vmem:[%s5 + $0x38] sm:$0xf]
      %v1874 = vld [vmem:[%s5 + $0x3c] sm:$0xf]
      %v1875 = vld [vmem:[%s6] sm:$0x1]
      %v1877 = vlaneseq
      %v1878 = vshrl.u32 %v1877, 7
      %v1879 = vsub.s32 0, %v1878
      %v1880 = vrot.slane %v1875, %v1879
      %v1898 = vunpack.c.l.b16 %v1859
      %v1899 = vunpack.c.l.b16 %v1860
      %v1900 = vunpack.c.l.b16 %v1861
      %v1901 = vunpack.c.l.b16 %v1862
      %v1902 = vunpack.c.l.b16 %v1863
      %v1903 = vunpack.c.l.b16 %v1864
      %v1904 = vunpack.c.l.b16 %v1865
      %v1905 = vunpack.c.l.b16 %v1866
      %v1906 = vunpack.c.l.b16 %v1867
      %v1907 = vunpack.c.l.b16 %v1868
      %v1908 = vunpack.c.l.b16 %v1869
      %v1909 = vunpack.c.l.b16 %v1870
      %v1910 = vunpack.c.l.b16 %v1871
      %v1911 = vunpack.c.l.b16 %v1872
      %v1912 = vunpack.c.l.b16 %v1873
      %v1913 = vunpack.c.l.b16 %v1874
      %v1914 = vpack.c.b16 %v1899, %v1898
      %v1915 = vpack.c.b16 %v1901, %v1900
      %v1916 = vpack.c.b16 %v1903, %v1902
      %v1917 = vpack.c.b16 %v1905, %v1904
      %v1918 = vpack.c.b16 %v1907, %v1906
      %v1919 = vpack.c.b16 %v1909, %v1908
      %v1920 = vpack.c.b16 %v1911, %v1910
      %v1921 = vpack.c.b16 %v1913, %v1912
      %1930 = vmatprep.subr.bf16.mxu0 0
      %1931 = vmatpush1.bf16.msra.mxu0 %v1921
      %1932 = vmatprep.subr.bf16.mxu0 0
      %1933 = vmatpush1.bf16.msra.mxu0 %v1920
      %1934 = vmatprep.subr.bf16.mxu0 0
      %1935 = vmatpush1.bf16.msra.mxu0 %v1919
      %1936 = vmatprep.subr.bf16.mxu0 0
      %1937 = vmatpush1.bf16.msra.mxu0 %v1918
      %1938 = vmatprep.subr.bf16.mxu0 0
      %1939 = vmatpush1.bf16.msra.mxu0 %v1917
      %1940 = vmatprep.subr.bf16.mxu0 0
      %1941 = vmatpush1.bf16.msra.mxu0 %v1916
      %1942 = vmatprep.subr.bf16.mxu0 0
      %1943 = vmatpush1.bf16.msra.mxu0 %v1915
      %1944 = vmatprep.subr.bf16.mxu0 0
      %1945 = vmatpush1.bf16.msra.mxu0 %v1914
      %1946 = vmatprep.subr.bf16.mxu0 0
      %1947 = vmatpush2.bf16.msra.mxu0 0
      %1948 = vmatprep.subr.bf16.mxu0 0
      %1949 = vmatpush2.bf16.msra.mxu0 0
      %1950 = vmatprep.subr.bf16.mxu0 0
      %1951 = vmatpush2.bf16.msra.mxu0 0
      %1952 = vmatprep.subr.bf16.mxu0 0
      %1953 = vmatpush2.bf16.msra.mxu0 0
      %1954 = vmatprep.subr.bf16.mxu0 0
      %1955 = vmatpush2.bf16.msra.mxu0 0
      %1956 = vmatprep.subr.bf16.mxu0 0
      %1957 = vmatpush2.bf16.msra.mxu0 0
      %1958 = vmatprep.subr.bf16.mxu0 0
      %1959 = vmatpush2.bf16.msra.mxu0 0
      %1960 = vmatprep.subr.bf16.mxu0 0
      %1961 = vmatpush2.bf16.msra.mxu0 0
      %1962 = vmatprep.mubr.bf16.mxu0 0
      %1963 = vmatmul.mubr.bf16.gmra.mxu0 %v1858
      %v1964 = vpop.f32.mrf.mxu0
      %v1965 = vadd.f32 %v1880, %v1964
      %v1966 = vpop.f32.mrf.mxu0
      %v1967 = vpop.f32.mrf.mxu0
      %v1968 = vadd.f32 %v1880, %v1967
      %v1969 = vpop.f32.mrf.mxu0
      %1970 = vdwg.mxu0
      %1971 = vst [vmem:[%s283] sm:$0xff] %v1965
      %1972 = vst [vmem:[%s283 + $0x8] sm:$0xff] %v1968
      %s1973 = smul.u32 2, %s18
      %p1974 = scmp.lt.s32.totalorder %s1973, 3
      %s1975 = scalar_select %p1974, %s1973, 3
      %s1976 = smul.addr %s1975, 8
      %s1977 = scalar_lea.vmem %s7, %s1976
      // Predicated region
      $region49: #{lenet_forward.5} parent=47 // pred_check
        %p1978 = pneg %p188
      $region50: #{lenet_forward.5} parent=47 // pred_check_branch
        %1980 = sbr.rel (%p1978) target = $region52
      $region51: #{lenet_forward.5} parent=47 // pred_region
        %s1981 = smul.u32 2, %s18
      $region52: #{lenet_forward.5} parent=47 // pred_fallthru
        _
    $region48: #{lenet_forward.5} parent=5 // pred_fallthru
      _
    %p1982 = scmp.le.s32.totalorder 2, %s13
    // Predicated region
    $region53: #{lenet_forward.5} parent=5 // pred_check
      %p1983 = pneg %p1982
    $region54: #{lenet_forward.5} parent=5 // pred_check_branch
      %1985 = sbr.rel (%p1983) target = $region56
    $region55: #{lenet_forward.5} parent=5 // pred_region
      %s1986 = ssub.s32 %s13, 2
      // Predicated region
      $region57: #{lenet_forward.5} parent=55 // pred_check
        %p1987 = pneg %p194
      $region58: #{lenet_forward.5} parent=55 // pred_check_branch
        %1989 = sbr.rel (%p1987) target = $region60
      $region59: #{lenet_forward.5} parent=55 // pred_region
        %s1990 = smul.u32 2, %s19
        %p1991 = scmp.lt.s32.totalorder %s1990, 3
        %s1992 = scalar_select %p1991, %s1990, 3
        %s1993 = smul.addr %s1992, 8
        %s1994 = scalar_lea.vmem %s7, %s1993
      $region60: #{lenet_forward.5} parent=55 // pred_fallthru
        _
    $region56: #{lenet_forward.5} parent=5 // pred_fallthru
      _
  $region6: #{lenet_forward.5} parent=0 // loop_footer
    %s17 = sadd.s32 1, %s13
  $region7: #{lenet_forward.5} parent=0 // loop_footer_branch
    %12 = sbr.rel target = $region3
  $region8: #{lenet_forward.5} parent=0 // loop_exit
    _

</llo_original>
